<compile_context>
chip_gen: v7x
topology: tpu7x:2x2x1
jax: 0.10.0
libtpu: 0.0.40
codegen_flags: <defaults>
</compile_context>

<pallas_src>
import functools
import math

import jax
import jax.numpy as jnp
from jax.experimental import pallas as pl
from jax.experimental.pallas import tpu as pltpu


# ----------------------------------------------------------------------------
# Fused Pallas kernel: one grid step == one batch element.
# ----------------------------------------------------------------------------
_N_FIXED = 6          # x, p, mask_bias, y, fc_w, fc_b
_N_PER_LAYER = 14     # wqk,bqk, wv,bv, wo,bo, ln1_g,ln1_b, w1,b1, w2,b2, ln2_g,ln2_b


def _predict_kernel(*refs, H, n_layers):
    eps = 1e-5
    n_in = _N_FIXED + _N_PER_LAYER * n_layers + 2
    in_refs = refs[:n_in]
    feat_ref, yhat_ref, bce_ref = refs[n_in], refs[n_in + 1], refs[n_in + 2]

    x_ref, p_ref, mb_ref, y_ref, fc_w_ref, fc_b_ref = in_refs[:_N_FIXED]
    hw_ref, hb_ref = in_refs[n_in - 2], in_refs[n_in - 1]

    x = x_ref[...]                        # (Sp, Din)  f32 (one batch element)
    p = p_ref[...]                        # (Sp, D)    f32
    mb = mb_ref[0][0:1, :]                # (1, Sp)    additive key-mask bias
    Sp, D = p.shape
    Dh = D // H

    # ---- input projection (RAPT fc): bf16 operands, f32 accumulate ----
    h = jnp.dot(x.astype(jnp.bfloat16), fc_w_ref[...],
                preferred_element_type=jnp.float32) + fc_b_ref[...]

    # ---- transformer encoder layers (statically unrolled; all weights are
    # VMEM-resident, fine at demo scale). ----
    # TODO(synk): for non-toy configs make the layer index a second grid axis
    # ("arbitrary") over stacked per-layer weights so layer l+1 weights stream
    # behind layer l compute (caps VMEM footprint at ~2 layers).
    for li in range(n_layers):
        base = _N_FIXED + li * _N_PER_LAYER
        (wqk_r, bqk_r, wv_r, bv_r, wo_r, bo_r,
         ln1g_r, ln1b_r, w1_r, b1_r, w2_r, b2_r,
         ln2g_r, ln2b_r) = in_refs[base:base + _N_PER_LAYER]

        # Time-aware Q/K see the week positional encoding; V sees raw x.
        # 1/sqrt(Dh) is folded into wq/bq at packing time (wrapper).
        xp = (h + p).astype(jnp.bfloat16)
        qk = jnp.dot(xp, wqk_r[...],
                     preferred_element_type=jnp.float32) + bqk_r[...]
        v = jnp.dot(h.astype(jnp.bfloat16), wv_r[...],
                    preferred_element_type=jnp.float32) + bv_r[...]
        q = qk[:, :D].astype(jnp.bfloat16)
        k = qk[:, D:].astype(jnp.bfloat16)
        vb = v.astype(jnp.bfloat16)

        # Multi-head attention: each head's context goes into its Dh-wide
        # column slot, then a single (Sp,D)x(D,D) dot applies Wo (K=D).
        ctx_cols = []
        for hh in range(H):
            c0 = hh * Dh
            q_h = q[:, c0:c0 + Dh]                         # (Sp, Dh)
            k_h = k[:, c0:c0 + Dh]
            v_h = vb[:, c0:c0 + Dh]
            s = jax.lax.dot_general(                       # (Sp, Sp) f32
                q_h, k_h, (((1,), (1,)), ((), ())),
                preferred_element_type=jnp.float32)
            s = s + mb                                     # additive key mask
            s = s - jnp.max(s, axis=-1, keepdims=True)
            e = jnp.exp(s)
            pa = e * pl.reciprocal(jnp.sum(e, axis=-1, keepdims=True),
                                   approx=True)            # EUP slot
            ctx = jnp.dot(pa.astype(jnp.bfloat16), v_h,
                          preferred_element_type=jnp.float32)   # (Sp, Dh)
            ctx_cols.append(ctx)
        ctx_all = jnp.concatenate(ctx_cols, axis=-1).astype(jnp.bfloat16)
        attn = jnp.dot(ctx_all, wo_r[...], preferred_element_type=jnp.float32)

        # Add & LayerNorm 1 (output bias + residual folded into the value
        # chain -- no scratch slab store/reload).
        h1 = attn + bo_r[...] + h
        mu = jnp.mean(h1, axis=-1, keepdims=True)
        var = jnp.mean((h1 - mu) ** 2, axis=-1, keepdims=True)
        h1 = (h1 - mu) * jax.lax.rsqrt(var + eps) * ln1g_r[...] + ln1b_r[...]

        # Feed-forward.
        f = jnp.dot(h1.astype(jnp.bfloat16), w1_r[...],
                    preferred_element_type=jnp.float32) + b1_r[...]
        f = jnp.maximum(f, 0.0)
        f = jnp.dot(f.astype(jnp.bfloat16), w2_r[...],
                    preferred_element_type=jnp.float32) + b2_r[...]

        # Add & LayerNorm 2.
        h2 = f + h1
        mu = jnp.mean(h2, axis=-1, keepdims=True)
        var = jnp.mean((h2 - mu) ** 2, axis=-1, keepdims=True)
        h = (h2 - mu) * jax.lax.rsqrt(var + eps) * ln2g_r[...] + ln2b_r[...]

    # ---- feature = CLS row of this batch element (no gather loop) ----
    cls_row = h[0:1, :]                                    # (1, D)
    feat_ref[0] = jnp.broadcast_to(cls_row, feat_ref.shape[1:])

    # ---- head: z = fc(dropout(feature)); stable sigmoid + BCE ----
    z = jnp.sum(cls_row * hw_ref[...], axis=-1, keepdims=True) + hb_ref[...]
    log1p_term = jnp.log(1.0 + jnp.exp(-jnp.abs(z)))
    sp_pos = jnp.maximum(z, 0.0) + log1p_term      # softplus(z)  = -log(1-y_hat)
    sp_neg = jnp.maximum(-z, 0.0) + log1p_term     # softplus(-z) = -log(y_hat)
    y_hat = jnp.exp(-sp_neg)                       # stable sigmoid(z)
    yv = y_ref[0][0:1, :]                          # (1, 1) label
    bce = yv * sp_neg + (1.0 - yv) * sp_pos
    yhat_ref[0] = jnp.broadcast_to(y_hat, yhat_ref.shape[1:])
    bce_ref[0] = jnp.broadcast_to(bce, bce_ref.shape[1:])


# ----------------------------------------------------------------------------
# Plain-JAX glue (tiny preamble index ops + positional encoding + packing).
# ----------------------------------------------------------------------------
def positional_encoding(week, d_model):
    """Sinusoidal PE indexed by week values.  week: (B, S) int -> (B, S, D)."""
    pos = week.astype(jnp.float32)[..., None]                       # (B, S, 1)
    div = jnp.exp(jnp.arange(0, d_model, 2, dtype=jnp.float32)
                  * (-math.log(10000.0) / d_model))                 # (D/2,)
    ang = pos * div                                                  # (B, S, D/2)
    pe = jnp.stack([jnp.sin(ang), jnp.cos(ang)], axis=-1)
    return pe.reshape(week.shape + (d_model,))


def _full_spec(a):
    """Whole-array BlockSpec (same block for every grid step -> fetched once)."""
    nd = a.ndim
    return pl.BlockSpec(a.shape, lambda b, _nd=nd: (0,) * _nd)


@functools.partial(jax.jit, static_argnames=("head_num",))
def predict_forward(params, x, mask, week, y, head_num):
    """Reproduces Predict.forward (mode='pre', eval-mode dropout)."""
    B, T, Din = x.shape
    D = params["fc_w"].shape[1]
    n_layers = len(params["layers"])
    assert D % head_num == 0
    scale = 1.0 / math.sqrt(D // head_num)

    # --- RAPT 'pre' preamble (cheap index ops, plain XLA) ---
    cls = jnp.broadcast_to(params["cls"][None, None, :], (B, 1, Din))
    x = jnp.concatenate([cls, x], axis=1)                            # (B, S, Din)
    lengths = jnp.sum(mask, axis=-1).astype(jnp.int32)               # (B,)
    last_week = jnp.take_along_axis(week, (lengths - 1)[:, None], axis=1)
    week = jnp.concatenate([last_week + 1, week], axis=1)            # (B, S)
    mask = jnp.concatenate([jnp.ones((B, 1), mask.dtype), mask], axis=1)
    S = T + 1

    # --- pad sequence axis to a sublane multiple so every per-batch slab is
    # (8,128)-aligned (full-vreg loads/stores, no masked partial stores) ---
    Sp = ((S + 7) // 8) * 8
    pad = Sp - S
    x = jnp.pad(x, ((0, 0), (0, pad), (0, 0)))
    week = jnp.pad(week, ((0, 0), (0, pad)))
    mask = jnp.pad(mask, ((0, 0), (0, pad)))                         # pads masked

    p = positional_encoding(week, D).reshape(B * Sp, D)
    mask_bias = (1.0 - mask.astype(jnp.float32)) * jnp.float32(-1e9)  # (B, Sp)
    mask_bias = jnp.broadcast_to(mask_bias[:, None, :], (B, 8, Sp))
    x_flat = x.reshape(B * Sp, Din)
    y_in = jnp.broadcast_to(y.reshape(B, 1, 1).astype(jnp.float32), (B, 8, 1))

    bf16 = jnp.bfloat16
    inputs = [x_flat, p, mask_bias, y_in,
              params["fc_w"].astype(bf16), params["fc_b"].reshape(1, D)]
    for lp in params["layers"]:
        # Fold the attention scale into Wq / bq; pack Q and K projections.
        wqk = jnp.concatenate([lp["wq"] * scale, lp["wk"]], axis=1).astype(bf16)
        bqk = jnp.concatenate([lp["bq"] * scale, lp["bk"]],
                              axis=0).reshape(1, 2 * D)
        inputs += [
            wqk, bqk,
            lp["wv"].astype(bf16), lp["bv"].reshape(1, D),
            lp["wo"].astype(bf16), lp["bo"].reshape(1, D),
            lp["ln1_g"].reshape(1, D), lp["ln1_b"].reshape(1, D),
            lp["w1"].astype(bf16), lp["b1"].reshape(1, D),
            lp["w2"].astype(bf16), lp["b2"].reshape(1, D),
            lp["ln2_g"].reshape(1, D), lp["ln2_b"].reshape(1, D),
        ]
    inputs += [params["head_w"].reshape(1, D), params["head_b"].reshape(1, 1)]

    in_specs = [
        pl.BlockSpec((Sp, Din), lambda b: (b, 0)),        # x   (per batch)
        pl.BlockSpec((Sp, D), lambda b: (b, 0)),          # p   (per batch)
        pl.BlockSpec((1, 8, Sp), lambda b: (b, 0, 0)),    # mask bias
        pl.BlockSpec((1, 8, 1), lambda b: (b, 0, 0)),     # label
    ] + [_full_spec(a) for a in inputs[4:]]               # weights (resident)

    out_shape = (jax.ShapeDtypeStruct((B, 8, D), jnp.float32),   # feature
                 jax.ShapeDtypeStruct((B, 8, 1), jnp.float32),   # y_hat
                 jax.ShapeDtypeStruct((B, 8, 1), jnp.float32))   # per-sample bce
    out_specs = (pl.BlockSpec((1, 8, D), lambda b: (b, 0, 0)),
                 pl.BlockSpec((1, 8, 1), lambda b: (b, 0, 0)),
                 pl.BlockSpec((1, 8, 1), lambda b: (b, 0, 0)))

    # Explicit scoped-VMEM budget: weights (double-buffer headroom) +
    # activation slabs + slack; clamped to stay valid on v5e/v6e/v7x.
    param_bytes = sum(int(a.size) * a.dtype.itemsize for a in inputs)
    vmem_limit = int(min(max(2 * param_bytes + (4 << 20), 16 << 20), 64 << 20))

    kernel = functools.partial(_predict_kernel, H=head_num, n_layers=n_layers)
    feat_pad, yhat_pad, bce_pad = pl.pallas_call(
        kernel,
        grid=(B,),
        in_specs=in_specs,
        out_specs=out_specs,
        out_shape=out_shape,
        compiler_params=pltpu.CompilerParams(
            dimension_semantics=("parallel",),     # batch across TCs on v7x
            vmem_limit_bytes=vmem_limit),
    )(*inputs)

    feature = feat_pad[:, 0, :]
    y_hat = yhat_pad[:, 0, 0]
    loss = jnp.mean(bce_pad[:, 0, 0])              # BCE mean reduction
    return loss, y_hat, y.reshape(-1).astype(jnp.float32), feature


def init_predict_params(key, input_dim, hidden_dim, layer_num):
    def dense(k, fan_in, fan_out):
        kw, kb = jax.random.split(k)
        lim = 1.0 / math.sqrt(fan_in)
        w = jax.random.uniform(kw, (fan_in, fan_out), jnp.float32, -lim, lim)
        b = jax.random.uniform(kb, (fan_out,), jnp.float32, -lim, lim)
        return w, b

    keys = jax.random.split(key, 3 + layer_num)
    params = {"cls": jax.random.normal(keys[0], (input_dim,), jnp.float32)}
    params["fc_w"], params["fc_b"] = dense(keys[1], input_dim, hidden_dim)
    params["head_w"], params["head_b"] = dense(keys[2], hidden_dim, 1)
    layers = []
    for i in range(layer_num):
        lk = jax.random.split(keys[3 + i], 6)
        lp = {}
        lp["wq"], lp["bq"] = dense(lk[0], hidden_dim, hidden_dim)
        lp["wk"], lp["bk"] = dense(lk[1], hidden_dim, hidden_dim)
        lp["wv"], lp["bv"] = dense(lk[2], hidden_dim, hidden_dim)
        lp["wo"], lp["bo"] = dense(lk[3], hidden_dim, hidden_dim)
        lp["w1"], lp["b1"] = dense(lk[4], hidden_dim, hidden_dim)
        lp["w2"], lp["b2"] = dense(lk[5], hidden_dim, hidden_dim)
        lp["ln1_g"] = jnp.ones((hidden_dim,), jnp.float32)
        lp["ln1_b"] = jnp.zeros((hidden_dim,), jnp.float32)
        lp["ln2_g"] = jnp.ones((hidden_dim,), jnp.float32)
        lp["ln2_b"] = jnp.zeros((hidden_dim,), jnp.float32)
        layers.append(lp)
    params["layers"] = layers
    return params


# ----------------------------------------------------------------------------
if __name__ == "__main__":
    B, T = 2, 8                 # batch, sequence length (visits)
    INPUT_DIM = 8
    HIDDEN_DIM = 32
    HEAD_NUM = 4
    LAYER_NUM = 2

    key = jax.random.PRNGKey(0)
    kp, kx, kw, ky = jax.random.split(key, 4)

    params = init_predict_params(kp, INPUT_DIM, HIDDEN_DIM, LAYER_NUM)

    x = jax.random.normal(kx, (B, T, INPUT_DIM), dtype=jnp.float32)
    lengths = jnp.array([T, 5], dtype=jnp.int32)          # padded sequences
    mask = (jnp.arange(T)[None, :] < lengths[:, None]).astype(jnp.int32)
    week = jax.random.randint(kw, (B, T), 0, 20).astype(jnp.int32)
    y = jax.random.bernoulli(ky, 0.5, (B, 1)).astype(jnp.float32)

    loss, y_hat, y_out, feature = predict_forward(
        params, x, mask, week, y, head_num=HEAD_NUM)
    jax.block_until_ready((loss, y_hat, y_out, feature))

    assert y_hat.shape == (B,) and feature.shape == (B, HIDDEN_DIM)
    assert bool(jnp.isfinite(loss)) and bool(jnp.all(jnp.isfinite(y_hat)))
    assert bool(jnp.all((y_hat >= 0.0) & (y_hat <= 1.0)))
    print("KERNEL_OK")
</pallas_src>

<mosaic_0001>
module attributes {stable_mosaic.version = 11 : i64} {
  func.func @_predict_kernel(%arg0: i32, %arg1: memref<16x8xf32, #tpu.memory_space<vmem>>, %arg2: memref<16x32xf32, #tpu.memory_space<vmem>>, %arg3: memref<1x8x16xf32, #tpu.memory_space<vmem>>, %arg4: memref<1x8x1xf32, #tpu.memory_space<vmem>>, %arg5: memref<8x32xbf16, #tpu.memory_space<vmem>>, %arg6: memref<1x32xf32, #tpu.memory_space<vmem>>, %arg7: memref<32x64xbf16, #tpu.memory_space<vmem>>, %arg8: memref<1x64xf32, #tpu.memory_space<vmem>>, %arg9: memref<32x32xbf16, #tpu.memory_space<vmem>>, %arg10: memref<1x32xf32, #tpu.memory_space<vmem>>, %arg11: memref<32x32xbf16, #tpu.memory_space<vmem>>, %arg12: memref<1x32xf32, #tpu.memory_space<vmem>>, %arg13: memref<1x32xf32, #tpu.memory_space<vmem>>, %arg14: memref<1x32xf32, #tpu.memory_space<vmem>>, %arg15: memref<32x32xbf16, #tpu.memory_space<vmem>>, %arg16: memref<1x32xf32, #tpu.memory_space<vmem>>, %arg17: memref<32x32xbf16, #tpu.memory_space<vmem>>, %arg18: memref<1x32xf32, #tpu.memory_space<vmem>>, %arg19: memref<1x32xf32, #tpu.memory_space<vmem>>, %arg20: memref<1x32xf32, #tpu.memory_space<vmem>>, %arg21: memref<32x64xbf16, #tpu.memory_space<vmem>>, %arg22: memref<1x64xf32, #tpu.memory_space<vmem>>, %arg23: memref<32x32xbf16, #tpu.memory_space<vmem>>, %arg24: memref<1x32xf32, #tpu.memory_space<vmem>>, %arg25: memref<32x32xbf16, #tpu.memory_space<vmem>>, %arg26: memref<1x32xf32, #tpu.memory_space<vmem>>, %arg27: memref<1x32xf32, #tpu.memory_space<vmem>>, %arg28: memref<1x32xf32, #tpu.memory_space<vmem>>, %arg29: memref<32x32xbf16, #tpu.memory_space<vmem>>, %arg30: memref<1x32xf32, #tpu.memory_space<vmem>>, %arg31: memref<32x32xbf16, #tpu.memory_space<vmem>>, %arg32: memref<1x32xf32, #tpu.memory_space<vmem>>, %arg33: memref<1x32xf32, #tpu.memory_space<vmem>>, %arg34: memref<1x32xf32, #tpu.memory_space<vmem>>, %arg35: memref<1x32xf32, #tpu.memory_space<vmem>>, %arg36: memref<1x1xf32, #tpu.memory_space<vmem>>, %arg37: memref<1x8x32xf32, #tpu.memory_space<vmem>>, %arg38: memref<1x8x1xf32, #tpu.memory_space<vmem>>, %arg39: memref<1x8x1xf32, #tpu.memory_space<vmem>>) attributes {dimension_semantics = [#tpu.dimension_semantics<parallel>], iteration_bounds = array<i64: 2>, scalar_prefetch = 0 : i64, scratch_operands = 0 : i64, tpu.core_type = #tpu.core_type<tc>, window_params = [{transform_indices = @transform_0, window_bounds = array<i64: 16, 8>}, {transform_indices = @transform_1, window_bounds = array<i64: 16, 32>}, {transform_indices = @transform_2, window_bounds = array<i64: 1, 8, 16>}, {transform_indices = @transform_3, window_bounds = array<i64: 1, 8, 1>}, {pipeline_mode = #tpu.pipeline_mode<synchronous>, transform_indices = @transform_4, window_bounds = array<i64: 8, 32>}, {pipeline_mode = #tpu.pipeline_mode<synchronous>, transform_indices = @transform_5, window_bounds = array<i64: 1, 32>}, {pipeline_mode = #tpu.pipeline_mode<synchronous>, transform_indices = @transform_6, window_bounds = array<i64: 32, 64>}, {pipeline_mode = #tpu.pipeline_mode<synchronous>, transform_indices = @transform_7, window_bounds = array<i64: 1, 64>}, {pipeline_mode = #tpu.pipeline_mode<synchronous>, transform_indices = @transform_8, window_bounds = array<i64: 32, 32>}, {pipeline_mode = #tpu.pipeline_mode<synchronous>, transform_indices = @transform_9, window_bounds = array<i64: 1, 32>}, {pipeline_mode = #tpu.pipeline_mode<synchronous>, transform_indices = @transform_10, window_bounds = array<i64: 32, 32>}, {pipeline_mode = #tpu.pipeline_mode<synchronous>, transform_indices = @transform_11, window_bounds = array<i64: 1, 32>}, {pipeline_mode = #tpu.pipeline_mode<synchronous>, transform_indices = @transform_12, window_bounds = array<i64: 1, 32>}, {pipeline_mode = #tpu.pipeline_mode<synchronous>, transform_indices = @transform_13, window_bounds = array<i64: 1, 32>}, {pipeline_mode = #tpu.pipeline_mode<synchronous>, transform_indices = @transform_14, window_bounds = array<i64: 32, 32>}, {pipeline_mode = #tpu.pipeline_mode<synchronous>, transform_indices = @transform_15, window_bounds = array<i64: 1, 32>}, {pipeline_mode = #tpu.pipeline_mode<synchronous>, transform_indices = @transform_16, window_bounds = array<i64: 32, 32>}, {pipeline_mode = #tpu.pipeline_mode<synchronous>, transform_indices = @transform_17, window_bounds = array<i64: 1, 32>}, {pipeline_mode = #tpu.pipeline_mode<synchronous>, transform_indices = @transform_18, window_bounds = array<i64: 1, 32>}, {pipeline_mode = #tpu.pipeline_mode<synchronous>, transform_indices = @transform_19, window_bounds = array<i64: 1, 32>}, {pipeline_mode = #tpu.pipeline_mode<synchronous>, transform_indices = @transform_20, window_bounds = array<i64: 32, 64>}, {pipeline_mode = #tpu.pipeline_mode<synchronous>, transform_indices = @transform_21, window_bounds = array<i64: 1, 64>}, {pipeline_mode = #tpu.pipeline_mode<synchronous>, transform_indices = @transform_22, window_bounds = array<i64: 32, 32>}, {pipeline_mode = #tpu.pipeline_mode<synchronous>, transform_indices = @transform_23, window_bounds = array<i64: 1, 32>}, {pipeline_mode = #tpu.pipeline_mode<synchronous>, transform_indices = @transform_24, window_bounds = array<i64: 32, 32>}, {pipeline_mode = #tpu.pipeline_mode<synchronous>, transform_indices = @transform_25, window_bounds = array<i64: 1, 32>}, {pipeline_mode = #tpu.pipeline_mode<synchronous>, transform_indices = @transform_26, window_bounds = array<i64: 1, 32>}, {pipeline_mode = #tpu.pipeline_mode<synchronous>, transform_indices = @transform_27, window_bounds = array<i64: 1, 32>}, {pipeline_mode = #tpu.pipeline_mode<synchronous>, transform_indices = @transform_28, window_bounds = array<i64: 32, 32>}, {pipeline_mode = #tpu.pipeline_mode<synchronous>, transform_indices = @transform_29, window_bounds = array<i64: 1, 32>}, {pipeline_mode = #tpu.pipeline_mode<synchronous>, transform_indices = @transform_30, window_bounds = array<i64: 32, 32>}, {pipeline_mode = #tpu.pipeline_mode<synchronous>, transform_indices = @transform_31, window_bounds = array<i64: 1, 32>}, {pipeline_mode = #tpu.pipeline_mode<synchronous>, transform_indices = @transform_32, window_bounds = array<i64: 1, 32>}, {pipeline_mode = #tpu.pipeline_mode<synchronous>, transform_indices = @transform_33, window_bounds = array<i64: 1, 32>}, {pipeline_mode = #tpu.pipeline_mode<synchronous>, transform_indices = @transform_34, window_bounds = array<i64: 1, 32>}, {pipeline_mode = #tpu.pipeline_mode<synchronous>, transform_indices = @transform_35, window_bounds = array<i64: 1, 1>}, {transform_indices = @transform_36, window_bounds = array<i64: 1, 8, 32>}, {transform_indices = @transform_37, window_bounds = array<i64: 1, 8, 1>}, {transform_indices = @transform_38, window_bounds = array<i64: 1, 8, 1>}]} {
    %c0 = arith.constant 0 : index
    %c0_0 = arith.constant 0 : index
    %0 = vector.load %arg1[%c0, %c0_0] : memref<16x8xf32, #tpu.memory_space<vmem>>, vector<16x8xf32>
    %c0_1 = arith.constant 0 : index
    %c0_2 = arith.constant 0 : index
    %1 = vector.load %arg2[%c0_1, %c0_2] : memref<16x32xf32, #tpu.memory_space<vmem>>, vector<16x32xf32>
    %c0_3 = arith.constant 0 : index
    %c0_4 = arith.constant 0 : index
    %c0_5 = arith.constant 0 : index
    %2 = vector.load %arg3[%c0_3, %c0_4, %c0_5] : memref<1x8x16xf32, #tpu.memory_space<vmem>>, vector<1x8x16xf32>
    %3 = vector.shape_cast %2 : vector<1x8x16xf32> to vector<8x16xf32>
    %4 = vector.extract_strided_slice %3 {offsets = [0, 0], sizes = [1, 16], strides = [1, 1]} : vector<8x16xf32> to vector<1x16xf32>
    %5 = arith.truncf %0 : vector<16x8xf32> to vector<16x8xbf16>
    %c0_6 = arith.constant 0 : index
    %c0_7 = arith.constant 0 : index
    %6 = vector.load %arg5[%c0_6, %c0_7] : memref<8x32xbf16, #tpu.memory_space<vmem>>, vector<8x32xbf16>
    %cst = arith.constant dense<0.000000e+00> : vector<16x32xf32>
    %7 = tpu.matmul %5, %6, %cst {dimension_numbers = #tpu.dot_dimension_numbers<[1], [0], [0], [1], [0, 0, 1, 1], [], []>} : vector<16x8xbf16>, vector<8x32xbf16>, vector<16x32xf32> -> vector<16x32xf32>
    %c0_8 = arith.constant 0 : index
    %c0_9 = arith.constant 0 : index
    %8 = vector.load %arg6[%c0_8, %c0_9] : memref<1x32xf32, #tpu.memory_space<vmem>>, vector<1x32xf32>
    %9 = vector.broadcast %8 : vector<1x32xf32> to vector<16x32xf32>
    %10 = arith.addf %7, %9 : vector<16x32xf32>
    %11 = arith.addf %10, %1 : vector<16x32xf32>
    %12 = arith.truncf %11 : vector<16x32xf32> to vector<16x32xbf16>
    %c0_10 = arith.constant 0 : index
    %c0_11 = arith.constant 0 : index
    %13 = vector.load %arg7[%c0_10, %c0_11] : memref<32x64xbf16, #tpu.memory_space<vmem>>, vector<32x64xbf16>
    %cst_12 = arith.constant dense<0.000000e+00> : vector<16x64xf32>
    %14 = tpu.matmul %12, %13, %cst_12 {dimension_numbers = #tpu.dot_dimension_numbers<[1], [0], [0], [1], [0, 0, 1, 1], [], []>} : vector<16x32xbf16>, vector<32x64xbf16>, vector<16x64xf32> -> vector<16x64xf32>
    %c0_13 = arith.constant 0 : index
    %c0_14 = arith.constant 0 : index
    %15 = vector.load %arg8[%c0_13, %c0_14] : memref<1x64xf32, #tpu.memory_space<vmem>>, vector<1x64xf32>
    %16 = vector.broadcast %15 : vector<1x64xf32> to vector<16x64xf32>
    %17 = arith.addf %14, %16 : vector<16x64xf32>
    %18 = arith.truncf %10 : vector<16x32xf32> to vector<16x32xbf16>
    %c0_15 = arith.constant 0 : index
    %c0_16 = arith.constant 0 : index
    %19 = vector.load %arg9[%c0_15, %c0_16] : memref<32x32xbf16, #tpu.memory_space<vmem>>, vector<32x32xbf16>
    %cst_17 = arith.constant dense<0.000000e+00> : vector<16x32xf32>
    %20 = tpu.matmul %18, %19, %cst_17 {dimension_numbers = #tpu.dot_dimension_numbers<[1], [0], [0], [1], [0, 0, 1, 1], [], []>} : vector<16x32xbf16>, vector<32x32xbf16>, vector<16x32xf32> -> vector<16x32xf32>
    %c0_18 = arith.constant 0 : index
    %c0_19 = arith.constant 0 : index
    %21 = vector.load %arg10[%c0_18, %c0_19] : memref<1x32xf32, #tpu.memory_space<vmem>>, vector<1x32xf32>
    %22 = vector.broadcast %21 : vector<1x32xf32> to vector<16x32xf32>
    %23 = arith.addf %20, %22 : vector<16x32xf32>
    %24 = vector.extract_strided_slice %17 {offsets = [0, 0], sizes = [16, 32], strides = [1, 1]} : vector<16x64xf32> to vector<16x32xf32>
    %25 = arith.truncf %24 : vector<16x32xf32> to vector<16x32xbf16>
    %26 = vector.extract_strided_slice %17 {offsets = [0, 32], sizes = [16, 32], strides = [1, 1]} : vector<16x64xf32> to vector<16x32xf32>
    %27 = arith.truncf %26 : vector<16x32xf32> to vector<16x32xbf16>
    %28 = arith.truncf %23 : vector<16x32xf32> to vector<16x32xbf16>
    %29 = vector.extract_strided_slice %25 {offsets = [0, 0], sizes = [16, 8], strides = [1, 1]} : vector<16x32xbf16> to vector<16x8xbf16>
    %30 = vector.extract_strided_slice %27 {offsets = [0, 0], sizes = [16, 8], strides = [1, 1]} : vector<16x32xbf16> to vector<16x8xbf16>
    %31 = vector.extract_strided_slice %28 {offsets = [0, 0], sizes = [16, 8], strides = [1, 1]} : vector<16x32xbf16> to vector<16x8xbf16>
    %cst_20 = arith.constant dense<0.000000e+00> : vector<16x16xf32>
    %32 = tpu.matmul %29, %30, %cst_20 {dimension_numbers = #tpu.dot_dimension_numbers<[1], [1], [0], [0], [0, 0, 1, 0], [], []>} : vector<16x8xbf16>, vector<16x8xbf16>, vector<16x16xf32> -> vector<16x16xf32>
    %33 = vector.broadcast %4 : vector<1x16xf32> to vector<16x16xf32>
    %34 = arith.addf %32, %33 : vector<16x16xf32>
    %cst_21 = arith.constant dense<0xFF800000> : vector<16xf32>
    %35 = vector.multi_reduction <maximumf>, %34, %cst_21 [1] : vector<16x16xf32> to vector<16xf32>
    %36 = vector.shape_cast %35 : vector<16xf32> to vector<16x1xf32>
    %37 = vector.broadcast %36 : vector<16x1xf32> to vector<16x16xf32>
    %38 = arith.subf %34, %37 : vector<16x16xf32>
    %39 = math.exp %38 : vector<16x16xf32>
    %cst_22 = arith.constant dense<0.000000e+00> : vector<16xf32>
    %40 = vector.multi_reduction <add>, %39, %cst_22 [1] : vector<16x16xf32> to vector<16xf32>
    %41 = vector.shape_cast %40 : vector<16xf32> to vector<16x1xf32>
    %42 = tpu.reciprocal %41 {approx = true} : vector<16x1xf32> -> vector<16x1xf32>
    %43 = vector.broadcast %42 : vector<16x1xf32> to vector<16x16xf32>
    %44 = arith.mulf %39, %43 : vector<16x16xf32>
    %45 = arith.truncf %44 : vector<16x16xf32> to vector<16x16xbf16>
    %cst_23 = arith.constant dense<0.000000e+00> : vector<16x8xf32>
    %46 = tpu.matmul %45, %31, %cst_23 {dimension_numbers = #tpu.dot_dimension_numbers<[1], [0], [0], [1], [0, 0, 1, 1], [], []>} : vector<16x16xbf16>, vector<16x8xbf16>, vector<16x8xf32> -> vector<16x8xf32>
    %47 = vector.extract_strided_slice %25 {offsets = [0, 8], sizes = [16, 8], strides = [1, 1]} : vector<16x32xbf16> to vector<16x8xbf16>
    %48 = vector.extract_strided_slice %27 {offsets = [0, 8], sizes = [16, 8], strides = [1, 1]} : vector<16x32xbf16> to vector<16x8xbf16>
    %49 = vector.extract_strided_slice %28 {offsets = [0, 8], sizes = [16, 8], strides = [1, 1]} : vector<16x32xbf16> to vector<16x8xbf16>
    %cst_24 = arith.constant dense<0.000000e+00> : vector<16x16xf32>
    %50 = tpu.matmul %47, %48, %cst_24 {dimension_numbers = #tpu.dot_dimension_numbers<[1], [1], [0], [0], [0, 0, 1, 0], [], []>} : vector<16x8xbf16>, vector<16x8xbf16>, vector<16x16xf32> -> vector<16x16xf32>
    %51 = vector.broadcast %4 : vector<1x16xf32> to vector<16x16xf32>
    %52 = arith.addf %50, %51 : vector<16x16xf32>
    %cst_25 = arith.constant dense<0xFF800000> : vector<16xf32>
    %53 = vector.multi_reduction <maximumf>, %52, %cst_25 [1] : vector<16x16xf32> to vector<16xf32>
    %54 = vector.shape_cast %53 : vector<16xf32> to vector<16x1xf32>
    %55 = vector.broadcast %54 : vector<16x1xf32> to vector<16x16xf32>
    %56 = arith.subf %52, %55 : vector<16x16xf32>
    %57 = math.exp %56 : vector<16x16xf32>
    %cst_26 = arith.constant dense<0.000000e+00> : vector<16xf32>
    %58 = vector.multi_reduction <add>, %57, %cst_26 [1] : vector<16x16xf32> to vector<16xf32>
    %59 = vector.shape_cast %58 : vector<16xf32> to vector<16x1xf32>
    %60 = tpu.reciprocal %59 {approx = true} : vector<16x1xf32> -> vector<16x1xf32>
    %61 = vector.broadcast %60 : vector<16x1xf32> to vector<16x16xf32>
    %62 = arith.mulf %57, %61 : vector<16x16xf32>
    %63 = arith.truncf %62 : vector<16x16xf32> to vector<16x16xbf16>
    %cst_27 = arith.constant dense<0.000000e+00> : vector<16x8xf32>
    %64 = tpu.matmul %63, %49, %cst_27 {dimension_numbers = #tpu.dot_dimension_numbers<[1], [0], [0], [1], [0, 0, 1, 1], [], []>} : vector<16x16xbf16>, vector<16x8xbf16>, vector<16x8xf32> -> vector<16x8xf32>
    %65 = vector.extract_strided_slice %25 {offsets = [0, 16], sizes = [16, 8], strides = [1, 1]} : vector<16x32xbf16> to vector<16x8xbf16>
    %66 = vector.extract_strided_slice %27 {offsets = [0, 16], sizes = [16, 8], strides = [1, 1]} : vector<16x32xbf16> to vector<16x8xbf16>
    %67 = vector.extract_strided_slice %28 {offsets = [0, 16], sizes = [16, 8], strides = [1, 1]} : vector<16x32xbf16> to vector<16x8xbf16>
    %cst_28 = arith.constant dense<0.000000e+00> : vector<16x16xf32>
    %68 = tpu.matmul %65, %66, %cst_28 {dimension_numbers = #tpu.dot_dimension_numbers<[1], [1], [0], [0], [0, 0, 1, 0], [], []>} : vector<16x8xbf16>, vector<16x8xbf16>, vector<16x16xf32> -> vector<16x16xf32>
    %69 = vector.broadcast %4 : vector<1x16xf32> to vector<16x16xf32>
    %70 = arith.addf %68, %69 : vector<16x16xf32>
    %cst_29 = arith.constant dense<0xFF800000> : vector<16xf32>
    %71 = vector.multi_reduction <maximumf>, %70, %cst_29 [1] : vector<16x16xf32> to vector<16xf32>
    %72 = vector.shape_cast %71 : vector<16xf32> to vector<16x1xf32>
    %73 = vector.broadcast %72 : vector<16x1xf32> to vector<16x16xf32>
    %74 = arith.subf %70, %73 : vector<16x16xf32>
    %75 = math.exp %74 : vector<16x16xf32>
    %cst_30 = arith.constant dense<0.000000e+00> : vector<16xf32>
    %76 = vector.multi_reduction <add>, %75, %cst_30 [1] : vector<16x16xf32> to vector<16xf32>
    %77 = vector.shape_cast %76 : vector<16xf32> to vector<16x1xf32>
    %78 = tpu.reciprocal %77 {approx = true} : vector<16x1xf32> -> vector<16x1xf32>
    %79 = vector.broadcast %78 : vector<16x1xf32> to vector<16x16xf32>
    %80 = arith.mulf %75, %79 : vector<16x16xf32>
    %81 = arith.truncf %80 : vector<16x16xf32> to vector<16x16xbf16>
    %cst_31 = arith.constant dense<0.000000e+00> : vector<16x8xf32>
    %82 = tpu.matmul %81, %67, %cst_31 {dimension_numbers = #tpu.dot_dimension_numbers<[1], [0], [0], [1], [0, 0, 1, 1], [], []>} : vector<16x16xbf16>, vector<16x8xbf16>, vector<16x8xf32> -> vector<16x8xf32>
    %83 = vector.extract_strided_slice %25 {offsets = [0, 24], sizes = [16, 8], strides = [1, 1]} : vector<16x32xbf16> to vector<16x8xbf16>
    %84 = vector.extract_strided_slice %27 {offsets = [0, 24], sizes = [16, 8], strides = [1, 1]} : vector<16x32xbf16> to vector<16x8xbf16>
    %85 = vector.extract_strided_slice %28 {offsets = [0, 24], sizes = [16, 8], strides = [1, 1]} : vector<16x32xbf16> to vector<16x8xbf16>
    %cst_32 = arith.constant dense<0.000000e+00> : vector<16x16xf32>
    %86 = tpu.matmul %83, %84, %cst_32 {dimension_numbers = #tpu.dot_dimension_numbers<[1], [1], [0], [0], [0, 0, 1, 0], [], []>} : vector<16x8xbf16>, vector<16x8xbf16>, vector<16x16xf32> -> vector<16x16xf32>
    %87 = vector.broadcast %4 : vector<1x16xf32> to vector<16x16xf32>
    %88 = arith.addf %86, %87 : vector<16x16xf32>
    %cst_33 = arith.constant dense<0xFF800000> : vector<16xf32>
    %89 = vector.multi_reduction <maximumf>, %88, %cst_33 [1] : vector<16x16xf32> to vector<16xf32>
    %90 = vector.shape_cast %89 : vector<16xf32> to vector<16x1xf32>
    %91 = vector.broadcast %90 : vector<16x1xf32> to vector<16x16xf32>
    %92 = arith.subf %88, %91 : vector<16x16xf32>
    %93 = math.exp %92 : vector<16x16xf32>
    %cst_34 = arith.constant dense<0.000000e+00> : vector<16xf32>
    %94 = vector.multi_reduction <add>, %93, %cst_34 [1] : vector<16x16xf32> to vector<16xf32>
    %95 = vector.shape_cast %94 : vector<16xf32> to vector<16x1xf32>
    %96 = tpu.reciprocal %95 {approx = true} : vector<16x1xf32> -> vector<16x1xf32>
    %97 = vector.broadcast %96 : vector<16x1xf32> to vector<16x16xf32>
    %98 = arith.mulf %93, %97 : vector<16x16xf32>
    %99 = arith.truncf %98 : vector<16x16xf32> to vector<16x16xbf16>
    %cst_35 = arith.constant dense<0.000000e+00> : vector<16x8xf32>
    %100 = tpu.matmul %99, %85, %cst_35 {dimension_numbers = #tpu.dot_dimension_numbers<[1], [0], [0], [1], [0, 0, 1, 1], [], []>} : vector<16x16xbf16>, vector<16x8xbf16>, vector<16x8xf32> -> vector<16x8xf32>
    %101 = tpu.concatenate %46, %64, %82, %100 in 1 : vector<16x8xf32>, vector<16x8xf32>, vector<16x8xf32>, vector<16x8xf32> -> vector<16x32xf32>
    %102 = arith.truncf %101 : vector<16x32xf32> to vector<16x32xbf16>
    %c0_36 = arith.constant 0 : index
    %c0_37 = arith.constant 0 : index
    %103 = vector.load %arg11[%c0_36, %c0_37] : memref<32x32xbf16, #tpu.memory_space<vmem>>, vector<32x32xbf16>
    %cst_38 = arith.constant dense<0.000000e+00> : vector<16x32xf32>
    %104 = tpu.matmul %102, %103, %cst_38 {dimension_numbers = #tpu.dot_dimension_numbers<[1], [0], [0], [1], [0, 0, 1, 1], [], []>} : vector<16x32xbf16>, vector<32x32xbf16>, vector<16x32xf32> -> vector<16x32xf32>
    %c0_39 = arith.constant 0 : index
    %c0_40 = arith.constant 0 : index
    %105 = vector.load %arg12[%c0_39, %c0_40] : memref<1x32xf32, #tpu.memory_space<vmem>>, vector<1x32xf32>
    %106 = vector.broadcast %105 : vector<1x32xf32> to vector<16x32xf32>
    %107 = arith.addf %104, %106 : vector<16x32xf32>
    %108 = arith.addf %107, %10 : vector<16x32xf32>
    %cst_41 = arith.constant dense<0.000000e+00> : vector<16xf32>
    %109 = vector.multi_reduction <add>, %108, %cst_41 [1] : vector<16x32xf32> to vector<16xf32>
    %110 = vector.shape_cast %109 : vector<16xf32> to vector<16x1xf32>
    %cst_42 = arith.constant 3.200000e+01 : f32
    %111 = vector.broadcast %cst_42 : f32 to vector<16x1xf32>
    %112 = arith.divf %110, %111 : vector<16x1xf32>
    %113 = vector.broadcast %112 : vector<16x1xf32> to vector<16x32xf32>
    %114 = arith.subf %108, %113 : vector<16x32xf32>
    %115 = arith.mulf %114, %114 : vector<16x32xf32>
    %cst_43 = arith.constant dense<0.000000e+00> : vector<16xf32>
    %116 = vector.multi_reduction <add>, %115, %cst_43 [1] : vector<16x32xf32> to vector<16xf32>
    %117 = vector.shape_cast %116 : vector<16xf32> to vector<16x1xf32>
    %cst_44 = arith.constant 3.200000e+01 : f32
    %118 = vector.broadcast %cst_44 : f32 to vector<16x1xf32>
    %119 = arith.divf %117, %118 : vector<16x1xf32>
    %120 = vector.broadcast %112 : vector<16x1xf32> to vector<16x32xf32>
    %121 = arith.subf %108, %120 : vector<16x32xf32>
    %cst_45 = arith.constant 9.99999974E-6 : f32
    %122 = vector.broadcast %cst_45 : f32 to vector<16x1xf32>
    %123 = arith.addf %119, %122 : vector<16x1xf32>
    %124 = math.rsqrt %123 : vector<16x1xf32>
    %125 = vector.broadcast %124 : vector<16x1xf32> to vector<16x32xf32>
    %126 = arith.mulf %121, %125 : vector<16x32xf32>
    %c0_46 = arith.constant 0 : index
    %c0_47 = arith.constant 0 : index
    %127 = vector.load %arg13[%c0_46, %c0_47] : memref<1x32xf32, #tpu.memory_space<vmem>>, vector<1x32xf32>
    %128 = vector.broadcast %127 : vector<1x32xf32> to vector<16x32xf32>
    %129 = arith.mulf %126, %128 : vector<16x32xf32>
    %c0_48 = arith.constant 0 : index
    %c0_49 = arith.constant 0 : index
    %130 = vector.load %arg14[%c0_48, %c0_49] : memref<1x32xf32, #tpu.memory_space<vmem>>, vector<1x32xf32>
    %131 = vector.broadcast %130 : vector<1x32xf32> to vector<16x32xf32>
    %132 = arith.addf %129, %131 : vector<16x32xf32>
    %133 = arith.truncf %132 : vector<16x32xf32> to vector<16x32xbf16>
    %c0_50 = arith.constant 0 : index
    %c0_51 = arith.constant 0 : index
    %134 = vector.load %arg15[%c0_50, %c0_51] : memref<32x32xbf16, #tpu.memory_space<vmem>>, vector<32x32xbf16>
    %cst_52 = arith.constant dense<0.000000e+00> : vector<16x32xf32>
    %135 = tpu.matmul %133, %134, %cst_52 {dimension_numbers = #tpu.dot_dimension_numbers<[1], [0], [0], [1], [0, 0, 1, 1], [], []>} : vector<16x32xbf16>, vector<32x32xbf16>, vector<16x32xf32> -> vector<16x32xf32>
    %c0_53 = arith.constant 0 : index
    %c0_54 = arith.constant 0 : index
    %136 = vector.load %arg16[%c0_53, %c0_54] : memref<1x32xf32, #tpu.memory_space<vmem>>, vector<1x32xf32>
    %137 = vector.broadcast %136 : vector<1x32xf32> to vector<16x32xf32>
    %138 = arith.addf %135, %137 : vector<16x32xf32>
    %cst_55 = arith.constant 0.000000e+00 : f32
    %139 = vector.broadcast %cst_55 : f32 to vector<16x32xf32>
    %140 = arith.maximumf %138, %139 : vector<16x32xf32>
    %141 = arith.truncf %140 : vector<16x32xf32> to vector<16x32xbf16>
    %c0_56 = arith.constant 0 : index
    %c0_57 = arith.constant 0 : index
    %142 = vector.load %arg17[%c0_56, %c0_57] : memref<32x32xbf16, #tpu.memory_space<vmem>>, vector<32x32xbf16>
    %cst_58 = arith.constant dense<0.000000e+00> : vector<16x32xf32>
    %143 = tpu.matmul %141, %142, %cst_58 {dimension_numbers = #tpu.dot_dimension_numbers<[1], [0], [0], [1], [0, 0, 1, 1], [], []>} : vector<16x32xbf16>, vector<32x32xbf16>, vector<16x32xf32> -> vector<16x32xf32>
    %c0_59 = arith.constant 0 : index
    %c0_60 = arith.constant 0 : index
    %144 = vector.load %arg18[%c0_59, %c0_60] : memref<1x32xf32, #tpu.memory_space<vmem>>, vector<1x32xf32>
    %145 = vector.broadcast %144 : vector<1x32xf32> to vector<16x32xf32>
    %146 = arith.addf %143, %145 : vector<16x32xf32>
    %147 = arith.addf %146, %132 : vector<16x32xf32>
    %cst_61 = arith.constant dense<0.000000e+00> : vector<16xf32>
    %148 = vector.multi_reduction <add>, %147, %cst_61 [1] : vector<16x32xf32> to vector<16xf32>
    %149 = vector.shape_cast %148 : vector<16xf32> to vector<16x1xf32>
    %cst_62 = arith.constant 3.200000e+01 : f32
    %150 = vector.broadcast %cst_62 : f32 to vector<16x1xf32>
    %151 = arith.divf %149, %150 : vector<16x1xf32>
    %152 = vector.broadcast %151 : vector<16x1xf32> to vector<16x32xf32>
    %153 = arith.subf %147, %152 : vector<16x32xf32>
    %154 = arith.mulf %153, %153 : vector<16x32xf32>
    %cst_63 = arith.constant dense<0.000000e+00> : vector<16xf32>
    %155 = vector.multi_reduction <add>, %154, %cst_63 [1] : vector<16x32xf32> to vector<16xf32>
    %156 = vector.shape_cast %155 : vector<16xf32> to vector<16x1xf32>
    %cst_64 = arith.constant 3.200000e+01 : f32
    %157 = vector.broadcast %cst_64 : f32 to vector<16x1xf32>
    %158 = arith.divf %156, %157 : vector<16x1xf32>
    %159 = vector.broadcast %151 : vector<16x1xf32> to vector<16x32xf32>
    %160 = arith.subf %147, %159 : vector<16x32xf32>
    %cst_65 = arith.constant 9.99999974E-6 : f32
    %161 = vector.broadcast %cst_65 : f32 to vector<16x1xf32>
    %162 = arith.addf %158, %161 : vector<16x1xf32>
    %163 = math.rsqrt %162 : vector<16x1xf32>
    %164 = vector.broadcast %163 : vector<16x1xf32> to vector<16x32xf32>
    %165 = arith.mulf %160, %164 : vector<16x32xf32>
    %c0_66 = arith.constant 0 : index
    %c0_67 = arith.constant 0 : index
    %166 = vector.load %arg19[%c0_66, %c0_67] : memref<1x32xf32, #tpu.memory_space<vmem>>, vector<1x32xf32>
    %167 = vector.broadcast %166 : vector<1x32xf32> to vector<16x32xf32>
    %168 = arith.mulf %165, %167 : vector<16x32xf32>
    %c0_68 = arith.constant 0 : index
    %c0_69 = arith.constant 0 : index
    %169 = vector.load %arg20[%c0_68, %c0_69] : memref<1x32xf32, #tpu.memory_space<vmem>>, vector<1x32xf32>
    %170 = vector.broadcast %169 : vector<1x32xf32> to vector<16x32xf32>
    %171 = arith.addf %168, %170 : vector<16x32xf32>
    %172 = arith.addf %171, %1 : vector<16x32xf32>
    %173 = arith.truncf %172 : vector<16x32xf32> to vector<16x32xbf16>
    %c0_70 = arith.constant 0 : index
    %c0_71 = arith.constant 0 : index
    %174 = vector.load %arg21[%c0_70, %c0_71] : memref<32x64xbf16, #tpu.memory_space<vmem>>, vector<32x64xbf16>
    %cst_72 = arith.constant dense<0.000000e+00> : vector<16x64xf32>
    %175 = tpu.matmul %173, %174, %cst_72 {dimension_numbers = #tpu.dot_dimension_numbers<[1], [0], [0], [1], [0, 0, 1, 1], [], []>} : vector<16x32xbf16>, vector<32x64xbf16>, vector<16x64xf32> -> vector<16x64xf32>
    %c0_73 = arith.constant 0 : index
    %c0_74 = arith.constant 0 : index
    %176 = vector.load %arg22[%c0_73, %c0_74] : memref<1x64xf32, #tpu.memory_space<vmem>>, vector<1x64xf32>
    %177 = vector.broadcast %176 : vector<1x64xf32> to vector<16x64xf32>
    %178 = arith.addf %175, %177 : vector<16x64xf32>
    %179 = arith.truncf %171 : vector<16x32xf32> to vector<16x32xbf16>
    %c0_75 = arith.constant 0 : index
    %c0_76 = arith.constant 0 : index
    %180 = vector.load %arg23[%c0_75, %c0_76] : memref<32x32xbf16, #tpu.memory_space<vmem>>, vector<32x32xbf16>
    %cst_77 = arith.constant dense<0.000000e+00> : vector<16x32xf32>
    %181 = tpu.matmul %179, %180, %cst_77 {dimension_numbers = #tpu.dot_dimension_numbers<[1], [0], [0], [1], [0, 0, 1, 1], [], []>} : vector<16x32xbf16>, vector<32x32xbf16>, vector<16x32xf32> -> vector<16x32xf32>
    %c0_78 = arith.constant 0 : index
    %c0_79 = arith.constant 0 : index
    %182 = vector.load %arg24[%c0_78, %c0_79] : memref<1x32xf32, #tpu.memory_space<vmem>>, vector<1x32xf32>
    %183 = vector.broadcast %182 : vector<1x32xf32> to vector<16x32xf32>
    %184 = arith.addf %181, %183 : vector<16x32xf32>
    %185 = vector.extract_strided_slice %178 {offsets = [0, 0], sizes = [16, 32], strides = [1, 1]} : vector<16x64xf32> to vector<16x32xf32>
    %186 = arith.truncf %185 : vector<16x32xf32> to vector<16x32xbf16>
    %187 = vector.extract_strided_slice %178 {offsets = [0, 32], sizes = [16, 32], strides = [1, 1]} : vector<16x64xf32> to vector<16x32xf32>
    %188 = arith.truncf %187 : vector<16x32xf32> to vector<16x32xbf16>
    %189 = arith.truncf %184 : vector<16x32xf32> to vector<16x32xbf16>
    %190 = vector.extract_strided_slice %186 {offsets = [0, 0], sizes = [16, 8], strides = [1, 1]} : vector<16x32xbf16> to vector<16x8xbf16>
    %191 = vector.extract_strided_slice %188 {offsets = [0, 0], sizes = [16, 8], strides = [1, 1]} : vector<16x32xbf16> to vector<16x8xbf16>
    %192 = vector.extract_strided_slice %189 {offsets = [0, 0], sizes = [16, 8], strides = [1, 1]} : vector<16x32xbf16> to vector<16x8xbf16>
    %cst_80 = arith.constant dense<0.000000e+00> : vector<16x16xf32>
    %193 = tpu.matmul %190, %191, %cst_80 {dimension_numbers = #tpu.dot_dimension_numbers<[1], [1], [0], [0], [0, 0, 1, 0], [], []>} : vector<16x8xbf16>, vector<16x8xbf16>, vector<16x16xf32> -> vector<16x16xf32>
    %194 = vector.broadcast %4 : vector<1x16xf32> to vector<16x16xf32>
    %195 = arith.addf %193, %194 : vector<16x16xf32>
    %cst_81 = arith.constant dense<0xFF800000> : vector<16xf32>
    %196 = vector.multi_reduction <maximumf>, %195, %cst_81 [1] : vector<16x16xf32> to vector<16xf32>
    %197 = vector.shape_cast %196 : vector<16xf32> to vector<16x1xf32>
    %198 = vector.broadcast %197 : vector<16x1xf32> to vector<16x16xf32>
    %199 = arith.subf %195, %198 : vector<16x16xf32>
    %200 = math.exp %199 : vector<16x16xf32>
    %cst_82 = arith.constant dense<0.000000e+00> : vector<16xf32>
    %201 = vector.multi_reduction <add>, %200, %cst_82 [1] : vector<16x16xf32> to vector<16xf32>
    %202 = vector.shape_cast %201 : vector<16xf32> to vector<16x1xf32>
    %203 = tpu.reciprocal %202 {approx = true} : vector<16x1xf32> -> vector<16x1xf32>
    %204 = vector.broadcast %203 : vector<16x1xf32> to vector<16x16xf32>
    %205 = arith.mulf %200, %204 : vector<16x16xf32>
    %206 = arith.truncf %205 : vector<16x16xf32> to vector<16x16xbf16>
    %cst_83 = arith.constant dense<0.000000e+00> : vector<16x8xf32>
    %207 = tpu.matmul %206, %192, %cst_83 {dimension_numbers = #tpu.dot_dimension_numbers<[1], [0], [0], [1], [0, 0, 1, 1], [], []>} : vector<16x16xbf16>, vector<16x8xbf16>, vector<16x8xf32> -> vector<16x8xf32>
    %208 = vector.extract_strided_slice %186 {offsets = [0, 8], sizes = [16, 8], strides = [1, 1]} : vector<16x32xbf16> to vector<16x8xbf16>
    %209 = vector.extract_strided_slice %188 {offsets = [0, 8], sizes = [16, 8], strides = [1, 1]} : vector<16x32xbf16> to vector<16x8xbf16>
    %210 = vector.extract_strided_slice %189 {offsets = [0, 8], sizes = [16, 8], strides = [1, 1]} : vector<16x32xbf16> to vector<16x8xbf16>
    %cst_84 = arith.constant dense<0.000000e+00> : vector<16x16xf32>
    %211 = tpu.matmul %208, %209, %cst_84 {dimension_numbers = #tpu.dot_dimension_numbers<[1], [1], [0], [0], [0, 0, 1, 0], [], []>} : vector<16x8xbf16>, vector<16x8xbf16>, vector<16x16xf32> -> vector<16x16xf32>
    %212 = vector.broadcast %4 : vector<1x16xf32> to vector<16x16xf32>
    %213 = arith.addf %211, %212 : vector<16x16xf32>
    %cst_85 = arith.constant dense<0xFF800000> : vector<16xf32>
    %214 = vector.multi_reduction <maximumf>, %213, %cst_85 [1] : vector<16x16xf32> to vector<16xf32>
    %215 = vector.shape_cast %214 : vector<16xf32> to vector<16x1xf32>
    %216 = vector.broadcast %215 : vector<16x1xf32> to vector<16x16xf32>
    %217 = arith.subf %213, %216 : vector<16x16xf32>
    %218 = math.exp %217 : vector<16x16xf32>
    %cst_86 = arith.constant dense<0.000000e+00> : vector<16xf32>
    %219 = vector.multi_reduction <add>, %218, %cst_86 [1] : vector<16x16xf32> to vector<16xf32>
    %220 = vector.shape_cast %219 : vector<16xf32> to vector<16x1xf32>
    %221 = tpu.reciprocal %220 {approx = true} : vector<16x1xf32> -> vector<16x1xf32>
    %222 = vector.broadcast %221 : vector<16x1xf32> to vector<16x16xf32>
    %223 = arith.mulf %218, %222 : vector<16x16xf32>
    %224 = arith.truncf %223 : vector<16x16xf32> to vector<16x16xbf16>
    %cst_87 = arith.constant dense<0.000000e+00> : vector<16x8xf32>
    %225 = tpu.matmul %224, %210, %cst_87 {dimension_numbers = #tpu.dot_dimension_numbers<[1], [0], [0], [1], [0, 0, 1, 1], [], []>} : vector<16x16xbf16>, vector<16x8xbf16>, vector<16x8xf32> -> vector<16x8xf32>
    %226 = vector.extract_strided_slice %186 {offsets = [0, 16], sizes = [16, 8], strides = [1, 1]} : vector<16x32xbf16> to vector<16x8xbf16>
    %227 = vector.extract_strided_slice %188 {offsets = [0, 16], sizes = [16, 8], strides = [1, 1]} : vector<16x32xbf16> to vector<16x8xbf16>
    %228 = vector.extract_strided_slice %189 {offsets = [0, 16], sizes = [16, 8], strides = [1, 1]} : vector<16x32xbf16> to vector<16x8xbf16>
    %cst_88 = arith.constant dense<0.000000e+00> : vector<16x16xf32>
    %229 = tpu.matmul %226, %227, %cst_88 {dimension_numbers = #tpu.dot_dimension_numbers<[1], [1], [0], [0], [0, 0, 1, 0], [], []>} : vector<16x8xbf16>, vector<16x8xbf16>, vector<16x16xf32> -> vector<16x16xf32>
    %230 = vector.broadcast %4 : vector<1x16xf32> to vector<16x16xf32>
    %231 = arith.addf %229, %230 : vector<16x16xf32>
    %cst_89 = arith.constant dense<0xFF800000> : vector<16xf32>
    %232 = vector.multi_reduction <maximumf>, %231, %cst_89 [1] : vector<16x16xf32> to vector<16xf32>
    %233 = vector.shape_cast %232 : vector<16xf32> to vector<16x1xf32>
    %234 = vector.broadcast %233 : vector<16x1xf32> to vector<16x16xf32>
    %235 = arith.subf %231, %234 : vector<16x16xf32>
    %236 = math.exp %235 : vector<16x16xf32>
    %cst_90 = arith.constant dense<0.000000e+00> : vector<16xf32>
    %237 = vector.multi_reduction <add>, %236, %cst_90 [1] : vector<16x16xf32> to vector<16xf32>
    %238 = vector.shape_cast %237 : vector<16xf32> to vector<16x1xf32>
    %239 = tpu.reciprocal %238 {approx = true} : vector<16x1xf32> -> vector<16x1xf32>
    %240 = vector.broadcast %239 : vector<16x1xf32> to vector<16x16xf32>
    %241 = arith.mulf %236, %240 : vector<16x16xf32>
    %242 = arith.truncf %241 : vector<16x16xf32> to vector<16x16xbf16>
    %cst_91 = arith.constant dense<0.000000e+00> : vector<16x8xf32>
    %243 = tpu.matmul %242, %228, %cst_91 {dimension_numbers = #tpu.dot_dimension_numbers<[1], [0], [0], [1], [0, 0, 1, 1], [], []>} : vector<16x16xbf16>, vector<16x8xbf16>, vector<16x8xf32> -> vector<16x8xf32>
    %244 = vector.extract_strided_slice %186 {offsets = [0, 24], sizes = [16, 8], strides = [1, 1]} : vector<16x32xbf16> to vector<16x8xbf16>
    %245 = vector.extract_strided_slice %188 {offsets = [0, 24], sizes = [16, 8], strides = [1, 1]} : vector<16x32xbf16> to vector<16x8xbf16>
    %246 = vector.extract_strided_slice %189 {offsets = [0, 24], sizes = [16, 8], strides = [1, 1]} : vector<16x32xbf16> to vector<16x8xbf16>
    %cst_92 = arith.constant dense<0.000000e+00> : vector<16x16xf32>
    %247 = tpu.matmul %244, %245, %cst_92 {dimension_numbers = #tpu.dot_dimension_numbers<[1], [1], [0], [0], [0, 0, 1, 0], [], []>} : vector<16x8xbf16>, vector<16x8xbf16>, vector<16x16xf32> -> vector<16x16xf32>
    %248 = vector.broadcast %4 : vector<1x16xf32> to vector<16x16xf32>
    %249 = arith.addf %247, %248 : vector<16x16xf32>
    %cst_93 = arith.constant dense<0xFF800000> : vector<16xf32>
    %250 = vector.multi_reduction <maximumf>, %249, %cst_93 [1] : vector<16x16xf32> to vector<16xf32>
    %251 = vector.shape_cast %250 : vector<16xf32> to vector<16x1xf32>
    %252 = vector.broadcast %251 : vector<16x1xf32> to vector<16x16xf32>
    %253 = arith.subf %249, %252 : vector<16x16xf32>
    %254 = math.exp %253 : vector<16x16xf32>
    %cst_94 = arith.constant dense<0.000000e+00> : vector<16xf32>
    %255 = vector.multi_reduction <add>, %254, %cst_94 [1] : vector<16x16xf32> to vector<16xf32>
    %256 = vector.shape_cast %255 : vector<16xf32> to vector<16x1xf32>
    %257 = tpu.reciprocal %256 {approx = true} : vector<16x1xf32> -> vector<16x1xf32>
    %258 = vector.broadcast %257 : vector<16x1xf32> to vector<16x16xf32>
    %259 = arith.mulf %254, %258 : vector<16x16xf32>
    %260 = arith.truncf %259 : vector<16x16xf32> to vector<16x16xbf16>
    %cst_95 = arith.constant dense<0.000000e+00> : vector<16x8xf32>
    %261 = tpu.matmul %260, %246, %cst_95 {dimension_numbers = #tpu.dot_dimension_numbers<[1], [0], [0], [1], [0, 0, 1, 1], [], []>} : vector<16x16xbf16>, vector<16x8xbf16>, vector<16x8xf32> -> vector<16x8xf32>
    %262 = tpu.concatenate %207, %225, %243, %261 in 1 : vector<16x8xf32>, vector<16x8xf32>, vector<16x8xf32>, vector<16x8xf32> -> vector<16x32xf32>
    %263 = arith.truncf %262 : vector<16x32xf32> to vector<16x32xbf16>
    %c0_96 = arith.constant 0 : index
    %c0_97 = arith.constant 0 : index
    %264 = vector.load %arg25[%c0_96, %c0_97] : memref<32x32xbf16, #tpu.memory_space<vmem>>, vector<32x32xbf16>
    %cst_98 = arith.constant dense<0.000000e+00> : vector<16x32xf32>
    %265 = tpu.matmul %263, %264, %cst_98 {dimension_numbers = #tpu.dot_dimension_numbers<[1], [0], [0], [1], [0, 0, 1, 1], [], []>} : vector<16x32xbf16>, vector<32x32xbf16>, vector<16x32xf32> -> vector<16x32xf32>
    %c0_99 = arith.constant 0 : index
    %c0_100 = arith.constant 0 : index
    %266 = vector.load %arg26[%c0_99, %c0_100] : memref<1x32xf32, #tpu.memory_space<vmem>>, vector<1x32xf32>
    %267 = vector.broadcast %266 : vector<1x32xf32> to vector<16x32xf32>
    %268 = arith.addf %265, %267 : vector<16x32xf32>
    %269 = arith.addf %268, %171 : vector<16x32xf32>
    %cst_101 = arith.constant dense<0.000000e+00> : vector<16xf32>
    %270 = vector.multi_reduction <add>, %269, %cst_101 [1] : vector<16x32xf32> to vector<16xf32>
    %271 = vector.shape_cast %270 : vector<16xf32> to vector<16x1xf32>
    %cst_102 = arith.constant 3.200000e+01 : f32
    %272 = vector.broadcast %cst_102 : f32 to vector<16x1xf32>
    %273 = arith.divf %271, %272 : vector<16x1xf32>
    %274 = vector.broadcast %273 : vector<16x1xf32> to vector<16x32xf32>
    %275 = arith.subf %269, %274 : vector<16x32xf32>
    %276 = arith.mulf %275, %275 : vector<16x32xf32>
    %cst_103 = arith.constant dense<0.000000e+00> : vector<16xf32>
    %277 = vector.multi_reduction <add>, %276, %cst_103 [1] : vector<16x32xf32> to vector<16xf32>
    %278 = vector.shape_cast %277 : vector<16xf32> to vector<16x1xf32>
    %cst_104 = arith.constant 3.200000e+01 : f32
    %279 = vector.broadcast %cst_104 : f32 to vector<16x1xf32>
    %280 = arith.divf %278, %279 : vector<16x1xf32>
    %281 = vector.broadcast %273 : vector<16x1xf32> to vector<16x32xf32>
    %282 = arith.subf %269, %281 : vector<16x32xf32>
    %cst_105 = arith.constant 9.99999974E-6 : f32
    %283 = vector.broadcast %cst_105 : f32 to vector<16x1xf32>
    %284 = arith.addf %280, %283 : vector<16x1xf32>
    %285 = math.rsqrt %284 : vector<16x1xf32>
    %286 = vector.broadcast %285 : vector<16x1xf32> to vector<16x32xf32>
    %287 = arith.mulf %282, %286 : vector<16x32xf32>
    %c0_106 = arith.constant 0 : index
    %c0_107 = arith.constant 0 : index
    %288 = vector.load %arg27[%c0_106, %c0_107] : memref<1x32xf32, #tpu.memory_space<vmem>>, vector<1x32xf32>
    %289 = vector.broadcast %288 : vector<1x32xf32> to vector<16x32xf32>
    %290 = arith.mulf %287, %289 : vector<16x32xf32>
    %c0_108 = arith.constant 0 : index
    %c0_109 = arith.constant 0 : index
    %291 = vector.load %arg28[%c0_108, %c0_109] : memref<1x32xf32, #tpu.memory_space<vmem>>, vector<1x32xf32>
    %292 = vector.broadcast %291 : vector<1x32xf32> to vector<16x32xf32>
    %293 = arith.addf %290, %292 : vector<16x32xf32>
    %294 = arith.truncf %293 : vector<16x32xf32> to vector<16x32xbf16>
    %c0_110 = arith.constant 0 : index
    %c0_111 = arith.constant 0 : index
    %295 = vector.load %arg29[%c0_110, %c0_111] : memref<32x32xbf16, #tpu.memory_space<vmem>>, vector<32x32xbf16>
    %cst_112 = arith.constant dense<0.000000e+00> : vector<16x32xf32>
    %296 = tpu.matmul %294, %295, %cst_112 {dimension_numbers = #tpu.dot_dimension_numbers<[1], [0], [0], [1], [0, 0, 1, 1], [], []>} : vector<16x32xbf16>, vector<32x32xbf16>, vector<16x32xf32> -> vector<16x32xf32>
    %c0_113 = arith.constant 0 : index
    %c0_114 = arith.constant 0 : index
    %297 = vector.load %arg30[%c0_113, %c0_114] : memref<1x32xf32, #tpu.memory_space<vmem>>, vector<1x32xf32>
    %298 = vector.broadcast %297 : vector<1x32xf32> to vector<16x32xf32>
    %299 = arith.addf %296, %298 : vector<16x32xf32>
    %cst_115 = arith.constant 0.000000e+00 : f32
    %300 = vector.broadcast %cst_115 : f32 to vector<16x32xf32>
    %301 = arith.maximumf %299, %300 : vector<16x32xf32>
    %302 = arith.truncf %301 : vector<16x32xf32> to vector<16x32xbf16>
    %c0_116 = arith.constant 0 : index
    %c0_117 = arith.constant 0 : index
    %303 = vector.load %arg31[%c0_116, %c0_117] : memref<32x32xbf16, #tpu.memory_space<vmem>>, vector<32x32xbf16>
    %cst_118 = arith.constant dense<0.000000e+00> : vector<16x32xf32>
    %304 = tpu.matmul %302, %303, %cst_118 {dimension_numbers = #tpu.dot_dimension_numbers<[1], [0], [0], [1], [0, 0, 1, 1], [], []>} : vector<16x32xbf16>, vector<32x32xbf16>, vector<16x32xf32> -> vector<16x32xf32>
    %c0_119 = arith.constant 0 : index
    %c0_120 = arith.constant 0 : index
    %305 = vector.load %arg32[%c0_119, %c0_120] : memref<1x32xf32, #tpu.memory_space<vmem>>, vector<1x32xf32>
    %306 = vector.broadcast %305 : vector<1x32xf32> to vector<16x32xf32>
    %307 = arith.addf %304, %306 : vector<16x32xf32>
    %308 = arith.addf %307, %293 : vector<16x32xf32>
    %cst_121 = arith.constant dense<0.000000e+00> : vector<16xf32>
    %309 = vector.multi_reduction <add>, %308, %cst_121 [1] : vector<16x32xf32> to vector<16xf32>
    %310 = vector.shape_cast %309 : vector<16xf32> to vector<16x1xf32>
    %cst_122 = arith.constant 3.200000e+01 : f32
    %311 = vector.broadcast %cst_122 : f32 to vector<16x1xf32>
    %312 = arith.divf %310, %311 : vector<16x1xf32>
    %313 = vector.broadcast %312 : vector<16x1xf32> to vector<16x32xf32>
    %314 = arith.subf %308, %313 : vector<16x32xf32>
    %315 = arith.mulf %314, %314 : vector<16x32xf32>
    %cst_123 = arith.constant dense<0.000000e+00> : vector<16xf32>
    %316 = vector.multi_reduction <add>, %315, %cst_123 [1] : vector<16x32xf32> to vector<16xf32>
    %317 = vector.shape_cast %316 : vector<16xf32> to vector<16x1xf32>
    %cst_124 = arith.constant 3.200000e+01 : f32
    %318 = vector.broadcast %cst_124 : f32 to vector<16x1xf32>
    %319 = arith.divf %317, %318 : vector<16x1xf32>
    %320 = vector.broadcast %312 : vector<16x1xf32> to vector<16x32xf32>
    %321 = arith.subf %308, %320 : vector<16x32xf32>
    %cst_125 = arith.constant 9.99999974E-6 : f32
    %322 = vector.broadcast %cst_125 : f32 to vector<16x1xf32>
    %323 = arith.addf %319, %322 : vector<16x1xf32>
    %324 = math.rsqrt %323 : vector<16x1xf32>
    %325 = vector.broadcast %324 : vector<16x1xf32> to vector<16x32xf32>
    %326 = arith.mulf %321, %325 : vector<16x32xf32>
    %c0_126 = arith.constant 0 : index
    %c0_127 = arith.constant 0 : index
    %327 = vector.load %arg33[%c0_126, %c0_127] : memref<1x32xf32, #tpu.memory_space<vmem>>, vector<1x32xf32>
    %328 = vector.broadcast %327 : vector<1x32xf32> to vector<16x32xf32>
    %329 = arith.mulf %326, %328 : vector<16x32xf32>
    %c0_128 = arith.constant 0 : index
    %c0_129 = arith.constant 0 : index
    %330 = vector.load %arg34[%c0_128, %c0_129] : memref<1x32xf32, #tpu.memory_space<vmem>>, vector<1x32xf32>
    %331 = vector.broadcast %330 : vector<1x32xf32> to vector<16x32xf32>
    %332 = arith.addf %329, %331 : vector<16x32xf32>
    %333 = vector.extract_strided_slice %332 {offsets = [0, 0], sizes = [1, 32], strides = [1, 1]} : vector<16x32xf32> to vector<1x32xf32>
    %334 = vector.shape_cast %333 : vector<1x32xf32> to vector<1x32xf32>
    %335 = vector.broadcast %334 : vector<1x32xf32> to vector<8x32xf32>
    %c0_130 = arith.constant 0 : index
    %c0_131 = arith.constant 0 : index
    %c0_132 = arith.constant 0 : index
    %336 = vector.load %arg37[%c0_130, %c0_131, %c0_132] : memref<1x8x32xf32, #tpu.memory_space<vmem>>, vector<1x8x32xf32>
    %337 = vector.shape_cast %336 : vector<1x8x32xf32> to vector<8x32xf32>
    %338 = vector.shape_cast %335 : vector<8x32xf32> to vector<1x8x32xf32>
    tpu.vector_store %arg37[%c0_130, %c0_131, %c0_132], %338 {strides = array<i32>} : memref<1x8x32xf32, #tpu.memory_space<vmem>>, vector<1x8x32xf32>,
    %c0_133 = arith.constant 0 : index
    %c0_134 = arith.constant 0 : index
    %339 = vector.load %arg35[%c0_133, %c0_134] : memref<1x32xf32, #tpu.memory_space<vmem>>, vector<1x32xf32>
    %340 = arith.mulf %333, %339 : vector<1x32xf32>
    %cst_135 = arith.constant dense<0.000000e+00> : vector<1xf32>
    %341 = vector.multi_reduction <add>, %340, %cst_135 [1] : vector<1x32xf32> to vector<1xf32>
    %342 = vector.shape_cast %341 : vector<1xf32> to vector<1x1xf32>
    %c0_136 = arith.constant 0 : index
    %c0_137 = arith.constant 0 : index
    %343 = vector.load %arg36[%c0_136, %c0_137] : memref<1x1xf32, #tpu.memory_space<vmem>>, vector<1x1xf32>
    %344 = arith.addf %342, %343 : vector<1x1xf32>
    %345 = math.absf %344 : vector<1x1xf32>
    %cst_138 = arith.constant 0.000000e+00 : f32
    %346 = vector.broadcast %cst_138 : f32 to vector<1x1xf32>
    %347 = arith.subf %346, %345 : vector<1x1xf32>
    %348 = math.exp %347 : vector<1x1xf32>
    %cst_139 = arith.constant 1.000000e+00 : f32
    %349 = vector.broadcast %cst_139 : f32 to vector<1x1xf32>
    %350 = arith.addf %349, %348 : vector<1x1xf32>
    %351 = math.log %350 : vector<1x1xf32>
    %cst_140 = arith.constant 0.000000e+00 : f32
    %352 = vector.broadcast %cst_140 : f32 to vector<1x1xf32>
    %353 = arith.maximumf %344, %352 : vector<1x1xf32>
    %354 = arith.addf %353, %351 : vector<1x1xf32>
    %cst_141 = arith.constant 0.000000e+00 : f32
    %355 = vector.broadcast %cst_141 : f32 to vector<1x1xf32>
    %356 = arith.subf %355, %344 : vector<1x1xf32>
    %cst_142 = arith.constant 0.000000e+00 : f32
    %357 = vector.broadcast %cst_142 : f32 to vector<1x1xf32>
    %358 = arith.maximumf %356, %357 : vector<1x1xf32>
    %359 = arith.addf %358, %351 : vector<1x1xf32>
    %cst_143 = arith.constant 0.000000e+00 : f32
    %360 = vector.broadcast %cst_143 : f32 to vector<1x1xf32>
    %361 = arith.subf %360, %359 : vector<1x1xf32>
    %362 = math.exp %361 : vector<1x1xf32>
    %c0_144 = arith.constant 0 : index
    %c0_145 = arith.constant 0 : index
    %c0_146 = arith.constant 0 : index
    %363 = vector.load %arg4[%c0_144, %c0_145, %c0_146] : memref<1x8x1xf32, #tpu.memory_space<vmem>>, vector<1x8x1xf32>
    %364 = vector.shape_cast %363 : vector<1x8x1xf32> to vector<8x1xf32>
    %365 = vector.extract_strided_slice %364 {offsets = [0, 0], sizes = [1, 1], strides = [1, 1]} : vector<8x1xf32> to vector<1x1xf32>
    %366 = arith.mulf %365, %359 : vector<1x1xf32>
    %cst_147 = arith.constant 1.000000e+00 : f32
    %367 = vector.broadcast %cst_147 : f32 to vector<1x1xf32>
    %368 = arith.subf %367, %365 : vector<1x1xf32>
    %369 = arith.mulf %368, %354 : vector<1x1xf32>
    %370 = arith.addf %366, %369 : vector<1x1xf32>
    %371 = vector.shape_cast %362 : vector<1x1xf32> to vector<1x1xf32>
    %372 = vector.broadcast %371 : vector<1x1xf32> to vector<8x1xf32>
    %c0_148 = arith.constant 0 : index
    %c0_149 = arith.constant 0 : index
    %c0_150 = arith.constant 0 : index
    %373 = vector.load %arg38[%c0_148, %c0_149, %c0_150] : memref<1x8x1xf32, #tpu.memory_space<vmem>>, vector<1x8x1xf32>
    %374 = vector.shape_cast %373 : vector<1x8x1xf32> to vector<8x1xf32>
    %375 = vector.shape_cast %372 : vector<8x1xf32> to vector<1x8x1xf32>
    tpu.vector_store %arg38[%c0_148, %c0_149, %c0_150], %375 {strides = array<i32>} : memref<1x8x1xf32, #tpu.memory_space<vmem>>, vector<1x8x1xf32>,
    %376 = vector.shape_cast %370 : vector<1x1xf32> to vector<1x1xf32>
    %377 = vector.broadcast %376 : vector<1x1xf32> to vector<8x1xf32>
    %c0_151 = arith.constant 0 : index
    %c0_152 = arith.constant 0 : index
    %c0_153 = arith.constant 0 : index
    %378 = vector.load %arg39[%c0_151, %c0_152, %c0_153] : memref<1x8x1xf32, #tpu.memory_space<vmem>>, vector<1x8x1xf32>
    %379 = vector.shape_cast %378 : vector<1x8x1xf32> to vector<8x1xf32>
    %380 = vector.shape_cast %377 : vector<8x1xf32> to vector<1x8x1xf32>
    tpu.vector_store %arg39[%c0_151, %c0_152, %c0_153], %380 {strides = array<i32>} : memref<1x8x1xf32, #tpu.memory_space<vmem>>, vector<1x8x1xf32>,
    return
  }
  func.func @transform_0(%arg0: i32) -> (i32, i32) {
    %c0_i32 = arith.constant 0 : i32
    %c0_i32_0 = arith.constant 0 : i32
    return %arg0, %c0_i32 : i32, i32
  }
  func.func @transform_1(%arg0: i32) -> (i32, i32) {
    %c0_i32 = arith.constant 0 : i32
    %c0_i32_0 = arith.constant 0 : i32
    return %arg0, %c0_i32 : i32, i32
  }
  func.func @transform_2(%arg0: i32) -> (i32, i32, i32) {
    %c0_i32 = arith.constant 0 : i32
    %c0_i32_0 = arith.constant 0 : i32
    %c0_i32_1 = arith.constant 0 : i32
    return %arg0, %c0_i32, %c0_i32_0 : i32, i32, i32
  }
  func.func @transform_3(%arg0: i32) -> (i32, i32, i32) {
    %c0_i32 = arith.constant 0 : i32
    %c0_i32_0 = arith.constant 0 : i32
    %c0_i32_1 = arith.constant 0 : i32
    return %arg0, %c0_i32, %c0_i32_0 : i32, i32, i32
  }
  func.func @transform_4(%arg0: i32) -> (i32, i32) {
    %c0_i32 = arith.constant 0 : i32
    %c0_i32_0 = arith.constant 0 : i32
    %c0_i32_1 = arith.constant 0 : i32
    return %c0_i32, %c0_i32_0 : i32, i32
  }
  func.func @transform_5(%arg0: i32) -> (i32, i32) {
    %c0_i32 = arith.constant 0 : i32
    %c0_i32_0 = arith.constant 0 : i32
    %c0_i32_1 = arith.constant 0 : i32
    return %c0_i32, %c0_i32_0 : i32, i32
  }
  func.func @transform_6(%arg0: i32) -> (i32, i32) {
    %c0_i32 = arith.constant 0 : i32
    %c0_i32_0 = arith.constant 0 : i32
    %c0_i32_1 = arith.constant 0 : i32
    return %c0_i32, %c0_i32_0 : i32, i32
  }
  func.func @transform_7(%arg0: i32) -> (i32, i32) {
    %c0_i32 = arith.constant 0 : i32
    %c0_i32_0 = arith.constant 0 : i32
    %c0_i32_1 = arith.constant 0 : i32
    return %c0_i32, %c0_i32_0 : i32, i32
  }
  func.func @transform_8(%arg0: i32) -> (i32, i32) {
    %c0_i32 = arith.constant 0 : i32
    %c0_i32_0 = arith.constant 0 : i32
    %c0_i32_1 = arith.constant 0 : i32
    return %c0_i32, %c0_i32_0 : i32, i32
  }
  func.func @transform_9(%arg0: i32) -> (i32, i32) {
    %c0_i32 = arith.constant 0 : i32
    %c0_i32_0 = arith.constant 0 : i32
    %c0_i32_1 = arith.constant 0 : i32
    return %c0_i32, %c0_i32_0 : i32, i32
  }
  func.func @transform_10(%arg0: i32) -> (i32, i32) {
    %c0_i32 = arith.constant 0 : i32
    %c0_i32_0 = arith.constant 0 : i32
    %c0_i32_1 = arith.constant 0 : i32
    return %c0_i32, %c0_i32_0 : i32, i32
  }
  func.func @transform_11(%arg0: i32) -> (i32, i32) {
    %c0_i32 = arith.constant 0 : i32
    %c0_i32_0 = arith.constant 0 : i32
    %c0_i32_1 = arith.constant 0 : i32
    return %c0_i32, %c0_i32_0 : i32, i32
  }
  func.func @transform_12(%arg0: i32) -> (i32, i32) {
    %c0_i32 = arith.constant 0 : i32
    %c0_i32_0 = arith.constant 0 : i32
    %c0_i32_1 = arith.constant 0 : i32
    return %c0_i32, %c0_i32_0 : i32, i32
  }
  func.func @transform_13(%arg0: i32) -> (i32, i32) {
    %c0_i32 = arith.constant 0 : i32
    %c0_i32_0 = arith.constant 0 : i32
    %c0_i32_1 = arith.constant 0 : i32
    return %c0_i32, %c0_i32_0 : i32, i32
  }
  func.func @transform_14(%arg0: i32) -> (i32, i32) {
    %c0_i32 = arith.constant 0 : i32
    %c0_i32_0 = arith.constant 0 : i32
    %c0_i32_1 = arith.constant 0 : i32
    return %c0_i32, %c0_i32_0 : i32, i32
  }
  func.func @transform_15(%arg0: i32) -> (i32, i32) {
    %c0_i32 = arith.constant 0 : i32
    %c0_i32_0 = arith.constant 0 : i32
    %c0_i32_1 = arith.constant 0 : i32
    return %c0_i32, %c0_i32_0 : i32, i32
  }
  func.func @transform_16(%arg0: i32) -> (i32, i32) {
    %c0_i32 = arith.constant 0 : i32
    %c0_i32_0 = arith.constant 0 : i32
    %c0_i32_1 = arith.constant 0 : i32
    return %c0_i32, %c0_i32_0 : i32, i32
  }
  func.func @transform_17(%arg0: i32) -> (i32, i32) {
    %c0_i32 = arith.constant 0 : i32
    %c0_i32_0 = arith.constant 0 : i32
    %c0_i32_1 = arith.constant 0 : i32
    return %c0_i32, %c0_i32_0 : i32, i32
  }
  func.func @transform_18(%arg0: i32) -> (i32, i32) {
    %c0_i32 = arith.constant 0 : i32
    %c0_i32_0 = arith.constant 0 : i32
    %c0_i32_1 = arith.constant 0 : i32
    return %c0_i32, %c0_i32_0 : i32, i32
  }
  func.func @transform_19(%arg0: i32) -> (i32, i32) {
    %c0_i32 = arith.constant 0 : i32
    %c0_i32_0 = arith.constant 0 : i32
    %c0_i32_1 = arith.constant 0 : i32
    return %c0_i32, %c0_i32_0 : i32, i32
  }
  func.func @transform_20(%arg0: i32) -> (i32, i32) {
    %c0_i32 = arith.constant 0 : i32
    %c0_i32_0 = arith.constant 0 : i32
    %c0_i32_1 = arith.constant 0 : i32
    return %c0_i32, %c0_i32_0 : i32, i32
  }
  func.func @transform_21(%arg0: i32) -> (i32, i32) {
    %c0_i32 = arith.constant 0 : i32
    %c0_i32_0 = arith.constant 0 : i32
    %c0_i32_1 = arith.constant 0 : i32
    return %c0_i32, %c0_i32_0 : i32, i32
  }
  func.func @transform_22(%arg0: i32) -> (i32, i32) {
    %c0_i32 = arith.constant 0 : i32
    %c0_i32_0 = arith.constant 0 : i32
    %c0_i32_1 = arith.constant 0 : i32
    return %c0_i32, %c0_i32_0 : i32, i32
  }
  func.func @transform_23(%arg0: i32) -> (i32, i32) {
    %c0_i32 = arith.constant 0 : i32
    %c0_i32_0 = arith.constant 0 : i32
    %c0_i32_1 = arith.constant 0 : i32
    return %c0_i32, %c0_i32_0 : i32, i32
  }
  func.func @transform_24(%arg0: i32) -> (i32, i32) {
    %c0_i32 = arith.constant 0 : i32
    %c0_i32_0 = arith.constant 0 : i32
    %c0_i32_1 = arith.constant 0 : i32
    return %c0_i32, %c0_i32_0 : i32, i32
  }
  func.func @transform_25(%arg0: i32) -> (i32, i32) {
    %c0_i32 = arith.constant 0 : i32
    %c0_i32_0 = arith.constant 0 : i32
    %c0_i32_1 = arith.constant 0 : i32
    return %c0_i32, %c0_i32_0 : i32, i32
  }
  func.func @transform_26(%arg0: i32) -> (i32, i32) {
    %c0_i32 = arith.constant 0 : i32
    %c0_i32_0 = arith.constant 0 : i32
    %c0_i32_1 = arith.constant 0 : i32
    return %c0_i32, %c0_i32_0 : i32, i32
  }
  func.func @transform_27(%arg0: i32) -> (i32, i32) {
    %c0_i32 = arith.constant 0 : i32
    %c0_i32_0 = arith.constant 0 : i32
    %c0_i32_1 = arith.constant 0 : i32
    return %c0_i32, %c0_i32_0 : i32, i32
  }
  func.func @transform_28(%arg0: i32) -> (i32, i32) {
    %c0_i32 = arith.constant 0 : i32
    %c0_i32_0 = arith.constant 0 : i32
    %c0_i32_1 = arith.constant 0 : i32
    return %c0_i32, %c0_i32_0 : i32, i32
  }
  func.func @transform_29(%arg0: i32) -> (i32, i32) {
    %c0_i32 = arith.constant 0 : i32
    %c0_i32_0 = arith.constant 0 : i32
    %c0_i32_1 = arith.constant 0 : i32
    return %c0_i32, %c0_i32_0 : i32, i32
  }
  func.func @transform_30(%arg0: i32) -> (i32, i32) {
    %c0_i32 = arith.constant 0 : i32
    %c0_i32_0 = arith.constant 0 : i32
    %c0_i32_1 = arith.constant 0 : i32
    return %c0_i32, %c0_i32_0 : i32, i32
  }
  func.func @transform_31(%arg0: i32) -> (i32, i32) {
    %c0_i32 = arith.constant 0 : i32
    %c0_i32_0 = arith.constant 0 : i32
    %c0_i32_1 = arith.constant 0 : i32
    return %c0_i32, %c0_i32_0 : i32, i32
  }
  func.func @transform_32(%arg0: i32) -> (i32, i32) {
    %c0_i32 = arith.constant 0 : i32
    %c0_i32_0 = arith.constant 0 : i32
    %c0_i32_1 = arith.constant 0 : i32
    return %c0_i32, %c0_i32_0 : i32, i32
  }
  func.func @transform_33(%arg0: i32) -> (i32, i32) {
    %c0_i32 = arith.constant 0 : i32
    %c0_i32_0 = arith.constant 0 : i32
    %c0_i32_1 = arith.constant 0 : i32
    return %c0_i32, %c0_i32_0 : i32, i32
  }
  func.func @transform_34(%arg0: i32) -> (i32, i32) {
    %c0_i32 = arith.constant 0 : i32
    %c0_i32_0 = arith.constant 0 : i32
    %c0_i32_1 = arith.constant 0 : i32
    return %c0_i32, %c0_i32_0 : i32, i32
  }
  func.func @transform_35(%arg0: i32) -> (i32, i32) {
    %c0_i32 = arith.constant 0 : i32
    %c0_i32_0 = arith.constant 0 : i32
    %c0_i32_1 = arith.constant 0 : i32
    return %c0_i32, %c0_i32_0 : i32, i32
  }
  func.func @transform_36(%arg0: i32) -> (i32, i32, i32) {
    %c0_i32 = arith.constant 0 : i32
    %c0_i32_0 = arith.constant 0 : i32
    %c0_i32_1 = arith.constant 0 : i32
    return %arg0, %c0_i32, %c0_i32_0 : i32, i32, i32
  }
  func.func @transform_37(%arg0: i32) -> (i32, i32, i32) {
    %c0_i32 = arith.constant 0 : i32
    %c0_i32_0 = arith.constant 0 : i32
    %c0_i32_1 = arith.constant 0 : i32
    return %arg0, %c0_i32, %c0_i32_0 : i32, i32, i32
  }
  func.func @transform_38(%arg0: i32) -> (i32, i32, i32) {
    %c0_i32 = arith.constant 0 : i32
    %c0_i32_0 = arith.constant 0 : i32
    %c0_i32_1 = arith.constant 0 : i32
    return %arg0, %c0_i32, %c0_i32_0 : i32, i32, i32
  }
}

</mosaic_0001>

<llo_original>
// kernel: predict_forward.1
$region0: #{predict_forward.1}
  #allocation0 [shape = 'u32[]', space=smem, size = 0x4, offset = 0x4, fixed_abs, tag = 'smem constant byte address 0x4 - core index']
  #allocation1 [shape = 'u32[144,128]{1,0:T(1,128)}', space=vmem, size = 0x12000, scoped, tag = 'internal scratch']
  #allocation2 [shape = 'f32[1,1]{1,0:T(1,128)S(1)}', space=vmem, size = 0x200, scoped, tag = 'scoped memory for predict_forward.1']
  %s0 = inlined_call_operand.smem [shape: u32[39], index: -1, kind: input, shape index: {}]
  %s1 = sld [smem:[%s0]]
  %s2 = scalar_lea.smem %s0, 1
  %s3 = sld [smem:[%s2]]
  %s4 = scalar_lea.smem %s0, 2
  %s5 = sld [smem:[%s4]]
  %s6 = scalar_lea.smem %s0, 3
  %s7 = sld [smem:[%s6]]
  %s8 = scalar_lea.smem %s0, 4
  %s9 = sld [smem:[%s8]]
  %s10 = scalar_lea.smem %s0, 5
  %s11 = sld [smem:[%s10]]
  %s12 = scalar_lea.smem %s0, 6
  %s13 = sld [smem:[%s12]]
  %s14 = scalar_lea.smem %s0, 7
  %s15 = sld [smem:[%s14]]
  %s16 = scalar_lea.smem %s0, 8
  %s17 = sld [smem:[%s16]]
  %s18 = scalar_lea.smem %s0, 9
  %s19 = sld [smem:[%s18]]
  %s20 = scalar_lea.smem %s0, 10
  %s21 = sld [smem:[%s20]]
  %s22 = scalar_lea.smem %s0, 11
  %s23 = sld [smem:[%s22]]
  %s24 = scalar_lea.smem %s0, 12
  %s25 = sld [smem:[%s24]]
  %s26 = scalar_lea.smem %s0, 13
  %s27 = sld [smem:[%s26]]
  %s28 = scalar_lea.smem %s0, 14
  %s29 = sld [smem:[%s28]]
  %s30 = scalar_lea.smem %s0, 15
  %s31 = sld [smem:[%s30]]
  %s32 = scalar_lea.smem %s0, 16
  %s33 = sld [smem:[%s32]]
  %s34 = scalar_lea.smem %s0, 17
  %s35 = sld [smem:[%s34]]
  %s36 = scalar_lea.smem %s0, 18
  %s37 = sld [smem:[%s36]]
  %s38 = scalar_lea.smem %s0, 19
  %s39 = sld [smem:[%s38]]
  %s40 = scalar_lea.smem %s0, 20
  %s41 = sld [smem:[%s40]]
  %s42 = scalar_lea.smem %s0, 21
  %s43 = sld [smem:[%s42]]
  %s44 = scalar_lea.smem %s0, 22
  %s45 = sld [smem:[%s44]]
  %s46 = scalar_lea.smem %s0, 23
  %s47 = sld [smem:[%s46]]
  %s48 = scalar_lea.smem %s0, 24
  %s49 = sld [smem:[%s48]]
  %s50 = scalar_lea.smem %s0, 25
  %s51 = sld [smem:[%s50]]
  %s52 = scalar_lea.smem %s0, 26
  %s53 = sld [smem:[%s52]]
  %s54 = scalar_lea.smem %s0, 27
  %s55 = sld [smem:[%s54]]
  %s56 = scalar_lea.smem %s0, 28
  %s57 = sld [smem:[%s56]]
  %s58 = scalar_lea.smem %s0, 29
  %s59 = sld [smem:[%s58]]
  %s60 = scalar_lea.smem %s0, 30
  %s61 = sld [smem:[%s60]]
  %s62 = scalar_lea.smem %s0, 31
  %s63 = sld [smem:[%s62]]
  %s64 = scalar_lea.smem %s0, 32
  %s65 = sld [smem:[%s64]]
  %s66 = scalar_lea.smem %s0, 33
  %s67 = sld [smem:[%s66]]
  %s68 = scalar_lea.smem %s0, 34
  %s69 = sld [smem:[%s68]]
  %s70 = scalar_lea.smem %s0, 35
  %s71 = sld [smem:[%s70]]
  %s72 = scalar_lea.smem %s0, 36
  %s73 = sld [smem:[%s72]]
  %s74 = scalar_lea.smem %s0, 37
  %s75 = sld [smem:[%s74]]
  %s76 = scalar_lea.smem %s0, 38
  %s77 = sld [smem:[%s76]]
  %78 = xla_tuple %s73, %s75, %s77
  %s79 = sld [smem:[#allocation0]]
  $region193: #{predict_forward.1} parent=0
    _
  %s81 = ssub.s32 1, %s79
  %s82 = scalar_select 0, %s81, %s79
  %v83 = vstv %s71
  %84 = vst [vmem:[#allocation2] sm:$0x1] %v83
  loop: start=0, step=1, limit=4
  $region2: #{predict_forward.1} parent=0 // loop_pre_header
    _
  $region3: #{predict_forward.1} parent=0 // loop_header
    %s86 = sphi 0, %s90
    %p87 = scmp.ge.s32.totalorder %s86, 4
    %s96 = sphi 0, %s98
    %s99 = sphi 0, %s96
    %s100 = sphi 0, %s99
    %s116 = sphi 0, %s100
    %s122 = sphi 0, %s124
    %s125 = sphi 0, %s122
    %s126 = sphi 0, %s125
    %s142 = sphi 0, %s126
    %s148 = sphi 0, %s150
    %s151 = sphi 0, %s148
    %s152 = sphi 0, %s151
    %s168 = sphi 0, %s152
    %s174 = sphi 0, %s176
    %s177 = sphi 0, %s174
    %s178 = sphi 0, %s177
    %s194 = sphi 0, %s178
    %s198 = sphi 0, %s198
    %s200 = sphi 0, %s198
    %s201 = sphi 0, %s200
    %s215 = sphi 0, %s201
    %s219 = sphi 0, %s219
    %s221 = sphi 0, %s219
    %s222 = sphi 0, %s221
    %s236 = sphi 0, %s222
    %s240 = sphi 0, %s240
    %s242 = sphi 0, %s240
    %s243 = sphi 0, %s242
    %s257 = sphi 0, %s243
    %s261 = sphi 0, %s261
    %s263 = sphi 0, %s261
    %s264 = sphi 0, %s263
    %s278 = sphi 0, %s264
    %s282 = sphi 0, %s282
    %s284 = sphi 0, %s282
    %s285 = sphi 0, %s284
    %s299 = sphi 0, %s285
    %s303 = sphi 0, %s303
    %s305 = sphi 0, %s303
    %s306 = sphi 0, %s305
    %s320 = sphi 0, %s306
    %s324 = sphi 0, %s324
    %s326 = sphi 0, %s324
    %s327 = sphi 0, %s326
    %s341 = sphi 0, %s327
    %s345 = sphi 0, %s345
    %s347 = sphi 0, %s345
    %s348 = sphi 0, %s347
    %s362 = sphi 0, %s348
    %s366 = sphi 0, %s366
    %s368 = sphi 0, %s366
    %s369 = sphi 0, %s368
    %s383 = sphi 0, %s369
    %s387 = sphi 0, %s387
    %s389 = sphi 0, %s387
    %s390 = sphi 0, %s389
    %s404 = sphi 0, %s390
    %s408 = sphi 0, %s408
    %s410 = sphi 0, %s408
    %s411 = sphi 0, %s410
    %s425 = sphi 0, %s411
    %s429 = sphi 0, %s429
    %s431 = sphi 0, %s429
    %s432 = sphi 0, %s431
    %s446 = sphi 0, %s432
    %s450 = sphi 0, %s450
    %s452 = sphi 0, %s450
    %s453 = sphi 0, %s452
    %s467 = sphi 0, %s453
    %s471 = sphi 0, %s471
    %s473 = sphi 0, %s471
    %s474 = sphi 0, %s473
    %s488 = sphi 0, %s474
    %s492 = sphi 0, %s492
    %s494 = sphi 0, %s492
    %s495 = sphi 0, %s494
    %s509 = sphi 0, %s495
    %s513 = sphi 0, %s513
    %s515 = sphi 0, %s513
    %s516 = sphi 0, %s515
    %s530 = sphi 0, %s516
    %s534 = sphi 0, %s534
    %s536 = sphi 0, %s534
    %s537 = sphi 0, %s536
    %s551 = sphi 0, %s537
    %s555 = sphi 0, %s555
    %s557 = sphi 0, %s555
    %s558 = sphi 0, %s557
    %s572 = sphi 0, %s558
    %s576 = sphi 0, %s576
    %s578 = sphi 0, %s576
    %s579 = sphi 0, %s578
    %s593 = sphi 0, %s579
    %s597 = sphi 0, %s597
    %s599 = sphi 0, %s597
    %s600 = sphi 0, %s599
    %s614 = sphi 0, %s600
    %s618 = sphi 0, %s618
    %s620 = sphi 0, %s618
    %s621 = sphi 0, %s620
    %s635 = sphi 0, %s621
    %s639 = sphi 0, %s639
    %s641 = sphi 0, %s639
    %s642 = sphi 0, %s641
    %s656 = sphi 0, %s642
    %s660 = sphi 0, %s660
    %s662 = sphi 0, %s660
    %s663 = sphi 0, %s662
    %s677 = sphi 0, %s663
    %s681 = sphi 0, %s681
    %s683 = sphi 0, %s681
    %s684 = sphi 0, %s683
    %s698 = sphi 0, %s684
    %s702 = sphi 0, %s702
    %s704 = sphi 0, %s702
    %s705 = sphi 0, %s704
    %s719 = sphi 0, %s705
    %s723 = sphi 0, %s723
    %s725 = sphi 0, %s723
    %s726 = sphi 0, %s725
    %s740 = sphi 0, %s726
    %s744 = sphi 0, %s744
    %s746 = sphi 0, %s744
    %s747 = sphi 0, %s746
    %s761 = sphi 0, %s747
    %s765 = sphi 0, %s765
    %s767 = sphi 0, %s765
    %s768 = sphi 0, %s767
    %s782 = sphi 0, %s768
    %s786 = sphi 0, %s786
    %s788 = sphi 0, %s786
    %s789 = sphi 0, %s788
    %s803 = sphi 0, %s789
    %s807 = sphi 0, %s807
    %s809 = sphi 0, %s807
    %s810 = sphi 0, %s809
    %s824 = sphi 0, %s810
    %s828 = sphi 0, %s828
    %s830 = sphi 0, %s828
    %s831 = sphi 0, %s830
    %s845 = sphi 0, %s831
    %s849 = sphi 0, %s849
    %s851 = sphi 0, %s849
    %s852 = sphi 0, %s851
    %s866 = sphi 0, %s852
    %s872 = sphi 0, %s874
    %s875 = sphi 0, %s872
    %s876 = sphi 0, %s875
    %s892 = sphi 0, %s876
    %s898 = sphi 0, %s900
    %s901 = sphi 0, %s898
    %s902 = sphi 0, %s901
    %s918 = sphi 0, %s902
    %s924 = sphi 0, %s926
    %s927 = sphi 0, %s924
    %s928 = sphi 0, %s927
    %s944 = sphi 0, %s928
  $region4: #{predict_forward.1} parent=0 // loop_header_branch
    %89 = sbr.rel (%p87) target = $region8
  $region5: #{predict_forward.1} parent=0 // loop_body
    %s91 = ssub.s32 %s86, 1
    %s92 = ssub.s32 %s86, 2
    %s93 = sadd.s32 %s86, 1
    %s94 = ssub.s32 %s86, %s93
    %p95 = scmp.eq.s32.totalorder %s94, 0
    %s97 = sadd.s32 %s96, 1
    %s98 = scalar_select %p95, %s96, %s97
    %p101 = pneg %p95
    %p102 = scmp.eq.s32.totalorder %s86, 1
    %p103 = por %p101, %p102
    %p104 = scmp.ne.s32.totalorder %s96, %s99
    %p105 = scmp.eq.s32.totalorder %s86, 0
    %p106 = por %p104, %p105
    %p107 = scmp.ne.s32.totalorder %s96, %s99
    %p108 = scmp.eq.s32.totalorder %s91, 1
    %p109 = por %p107, %p108
    %p110 = scmp.ne.s32.totalorder %s99, %s100
    %p111 = scmp.eq.s32.totalorder %s91, 0
    %p112 = por %p110, %p111
    %p113 = scmp.ne.s32.totalorder %s99, %s100
    %p114 = scmp.eq.s32.totalorder %s92, 1
    %p115 = por %p113, %p114
    %p117 = scmp.ne.s32.totalorder %s100, %s116
    %p118 = scmp.eq.s32.totalorder %s92, 0
    %p119 = por %p117, %p118
    %s120 = ssub.s32 %s86, %s93
    %p121 = scmp.eq.s32.totalorder %s120, 0
    %s123 = sadd.s32 %s122, 1
    %s124 = scalar_select %p121, %s122, %s123
    %p127 = pneg %p121
    %p128 = scmp.eq.s32.totalorder %s86, 1
    %p129 = por %p127, %p128
    %p130 = scmp.ne.s32.totalorder %s122, %s125
    %p131 = scmp.eq.s32.totalorder %s86, 0
    %p132 = por %p130, %p131
    %p133 = scmp.ne.s32.totalorder %s122, %s125
    %p134 = scmp.eq.s32.totalorder %s91, 1
    %p135 = por %p133, %p134
    %p136 = scmp.ne.s32.totalorder %s125, %s126
    %p137 = scmp.eq.s32.totalorder %s91, 0
    %p138 = por %p136, %p137
    %p139 = scmp.ne.s32.totalorder %s125, %s126
    %p140 = scmp.eq.s32.totalorder %s92, 1
    %p141 = por %p139, %p140
    %p143 = scmp.ne.s32.totalorder %s126, %s142
    %p144 = scmp.eq.s32.totalorder %s92, 0
    %p145 = por %p143, %p144
    %s146 = ssub.s32 %s86, %s93
    %p147 = scmp.eq.s32.totalorder %s146, 0
    %s149 = sadd.s32 %s148, 1
    %s150 = scalar_select %p147, %s148, %s149
    %p153 = pneg %p147
    %p154 = scmp.eq.s32.totalorder %s86, 1
    %p155 = por %p153, %p154
    %p156 = scmp.ne.s32.totalorder %s148, %s151
    %p157 = scmp.eq.s32.totalorder %s86, 0
    %p158 = por %p156, %p157
    %p159 = scmp.ne.s32.totalorder %s148, %s151
    %p160 = scmp.eq.s32.totalorder %s91, 1
    %p161 = por %p159, %p160
    %p162 = scmp.ne.s32.totalorder %s151, %s152
    %p163 = scmp.eq.s32.totalorder %s91, 0
    %p164 = por %p162, %p163
    %p165 = scmp.ne.s32.totalorder %s151, %s152
    %p166 = scmp.eq.s32.totalorder %s92, 1
    %p167 = por %p165, %p166
    %p169 = scmp.ne.s32.totalorder %s152, %s168
    %p170 = scmp.eq.s32.totalorder %s92, 0
    %p171 = por %p169, %p170
    %s172 = ssub.s32 %s86, %s93
    %p173 = scmp.eq.s32.totalorder %s172, 0
    %s175 = sadd.s32 %s174, 1
    %s176 = scalar_select %p173, %s174, %s175
    %p179 = pneg %p173
    %p180 = scmp.eq.s32.totalorder %s86, 1
    %p181 = por %p179, %p180
    %p182 = scmp.ne.s32.totalorder %s174, %s177
    %p183 = scmp.eq.s32.totalorder %s86, 0
    %p184 = por %p182, %p183
    %p185 = scmp.ne.s32.totalorder %s174, %s177
    %p186 = scmp.eq.s32.totalorder %s91, 1
    %p187 = por %p185, %p186
    %p188 = scmp.ne.s32.totalorder %s177, %s178
    %p189 = scmp.eq.s32.totalorder %s91, 0
    %p190 = por %p188, %p189
    %p191 = scmp.ne.s32.totalorder %s177, %s178
    %p192 = scmp.eq.s32.totalorder %s92, 1
    %p193 = por %p191, %p192
    %p195 = scmp.ne.s32.totalorder %s178, %s194
    %p196 = scmp.eq.s32.totalorder %s92, 0
    %p197 = por %p195, %p196
    %s199 = sadd.s32 %s198, 1
    %p202 = scmp.eq.s32.totalorder %s86, 1
    %p203 = scmp.ne.s32.totalorder %s198, %s200
    %p204 = scmp.eq.s32.totalorder %s86, 0
    %p205 = por %p203, %p204
    %p206 = scmp.ne.s32.totalorder %s198, %s200
    %p207 = scmp.eq.s32.totalorder %s91, 1
    %p208 = por %p206, %p207
    %p209 = scmp.ne.s32.totalorder %s200, %s201
    %p210 = scmp.eq.s32.totalorder %s91, 0
    %p211 = por %p209, %p210
    %p212 = scmp.ne.s32.totalorder %s200, %s201
    %p213 = scmp.eq.s32.totalorder %s92, 1
    %p214 = por %p212, %p213
    %p216 = scmp.ne.s32.totalorder %s201, %s215
    %p217 = scmp.eq.s32.totalorder %s92, 0
    %p218 = por %p216, %p217
    %s220 = sadd.s32 %s219, 1
    %p223 = scmp.eq.s32.totalorder %s86, 1
    %p224 = scmp.ne.s32.totalorder %s219, %s221
    %p225 = scmp.eq.s32.totalorder %s86, 0
    %p226 = por %p224, %p225
    %p227 = scmp.ne.s32.totalorder %s219, %s221
    %p228 = scmp.eq.s32.totalorder %s91, 1
    %p229 = por %p227, %p228
    %p230 = scmp.ne.s32.totalorder %s221, %s222
    %p231 = scmp.eq.s32.totalorder %s91, 0
    %p232 = por %p230, %p231
    %p233 = scmp.ne.s32.totalorder %s221, %s222
    %p234 = scmp.eq.s32.totalorder %s92, 1
    %p235 = por %p233, %p234
    %p237 = scmp.ne.s32.totalorder %s222, %s236
    %p238 = scmp.eq.s32.totalorder %s92, 0
    %p239 = por %p237, %p238
    %s241 = sadd.s32 %s240, 1
    %p244 = scmp.eq.s32.totalorder %s86, 1
    %p245 = scmp.ne.s32.totalorder %s240, %s242
    %p246 = scmp.eq.s32.totalorder %s86, 0
    %p247 = por %p245, %p246
    %p248 = scmp.ne.s32.totalorder %s240, %s242
    %p249 = scmp.eq.s32.totalorder %s91, 1
    %p250 = por %p248, %p249
    %p251 = scmp.ne.s32.totalorder %s242, %s243
    %p252 = scmp.eq.s32.totalorder %s91, 0
    %p253 = por %p251, %p252
    %p254 = scmp.ne.s32.totalorder %s242, %s243
    %p255 = scmp.eq.s32.totalorder %s92, 1
    %p256 = por %p254, %p255
    %p258 = scmp.ne.s32.totalorder %s243, %s257
    %p259 = scmp.eq.s32.totalorder %s92, 0
    %p260 = por %p258, %p259
    %s262 = sadd.s32 %s261, 1
    %p265 = scmp.eq.s32.totalorder %s86, 1
    %p266 = scmp.ne.s32.totalorder %s261, %s263
    %p267 = scmp.eq.s32.totalorder %s86, 0
    %p268 = por %p266, %p267
    %p269 = scmp.ne.s32.totalorder %s261, %s263
    %p270 = scmp.eq.s32.totalorder %s91, 1
    %p271 = por %p269, %p270
    %p272 = scmp.ne.s32.totalorder %s263, %s264
    %p273 = scmp.eq.s32.totalorder %s91, 0
    %p274 = por %p272, %p273
    %p275 = scmp.ne.s32.totalorder %s263, %s264
    %p276 = scmp.eq.s32.totalorder %s92, 1
    %p277 = por %p275, %p276
    %p279 = scmp.ne.s32.totalorder %s264, %s278
    %p280 = scmp.eq.s32.totalorder %s92, 0
    %p281 = por %p279, %p280
    %s283 = sadd.s32 %s282, 1
    %p286 = scmp.eq.s32.totalorder %s86, 1
    %p287 = scmp.ne.s32.totalorder %s282, %s284
    %p288 = scmp.eq.s32.totalorder %s86, 0
    %p289 = por %p287, %p288
    %p290 = scmp.ne.s32.totalorder %s282, %s284
    %p291 = scmp.eq.s32.totalorder %s91, 1
    %p292 = por %p290, %p291
    %p293 = scmp.ne.s32.totalorder %s284, %s285
    %p294 = scmp.eq.s32.totalorder %s91, 0
    %p295 = por %p293, %p294
    %p296 = scmp.ne.s32.totalorder %s284, %s285
    %p297 = scmp.eq.s32.totalorder %s92, 1
    %p298 = por %p296, %p297
    %p300 = scmp.ne.s32.totalorder %s285, %s299
    %p301 = scmp.eq.s32.totalorder %s92, 0
    %p302 = por %p300, %p301
    %s304 = sadd.s32 %s303, 1
    %p307 = scmp.eq.s32.totalorder %s86, 1
    %p308 = scmp.ne.s32.totalorder %s303, %s305
    %p309 = scmp.eq.s32.totalorder %s86, 0
    %p310 = por %p308, %p309
    %p311 = scmp.ne.s32.totalorder %s303, %s305
    %p312 = scmp.eq.s32.totalorder %s91, 1
    %p313 = por %p311, %p312
    %p314 = scmp.ne.s32.totalorder %s305, %s306
    %p315 = scmp.eq.s32.totalorder %s91, 0
    %p316 = por %p314, %p315
    %p317 = scmp.ne.s32.totalorder %s305, %s306
    %p318 = scmp.eq.s32.totalorder %s92, 1
    %p319 = por %p317, %p318
    %p321 = scmp.ne.s32.totalorder %s306, %s320
    %p322 = scmp.eq.s32.totalorder %s92, 0
    %p323 = por %p321, %p322
    %s325 = sadd.s32 %s324, 1
    %p328 = scmp.eq.s32.totalorder %s86, 1
    %p329 = scmp.ne.s32.totalorder %s324, %s326
    %p330 = scmp.eq.s32.totalorder %s86, 0
    %p331 = por %p329, %p330
    %p332 = scmp.ne.s32.totalorder %s324, %s326
    %p333 = scmp.eq.s32.totalorder %s91, 1
    %p334 = por %p332, %p333
    %p335 = scmp.ne.s32.totalorder %s326, %s327
    %p336 = scmp.eq.s32.totalorder %s91, 0
    %p337 = por %p335, %p336
    %p338 = scmp.ne.s32.totalorder %s326, %s327
    %p339 = scmp.eq.s32.totalorder %s92, 1
    %p340 = por %p338, %p339
    %p342 = scmp.ne.s32.totalorder %s327, %s341
    %p343 = scmp.eq.s32.totalorder %s92, 0
    %p344 = por %p342, %p343
    %s346 = sadd.s32 %s345, 1
    %p349 = scmp.eq.s32.totalorder %s86, 1
    %p350 = scmp.ne.s32.totalorder %s345, %s347
    %p351 = scmp.eq.s32.totalorder %s86, 0
    %p352 = por %p350, %p351
    %p353 = scmp.ne.s32.totalorder %s345, %s347
    %p354 = scmp.eq.s32.totalorder %s91, 1
    %p355 = por %p353, %p354
    %p356 = scmp.ne.s32.totalorder %s347, %s348
    %p357 = scmp.eq.s32.totalorder %s91, 0
    %p358 = por %p356, %p357
    %p359 = scmp.ne.s32.totalorder %s347, %s348
    %p360 = scmp.eq.s32.totalorder %s92, 1
    %p361 = por %p359, %p360
    %p363 = scmp.ne.s32.totalorder %s348, %s362
    %p364 = scmp.eq.s32.totalorder %s92, 0
    %p365 = por %p363, %p364
    %s367 = sadd.s32 %s366, 1
    %p370 = scmp.eq.s32.totalorder %s86, 1
    %p371 = scmp.ne.s32.totalorder %s366, %s368
    %p372 = scmp.eq.s32.totalorder %s86, 0
    %p373 = por %p371, %p372
    %p374 = scmp.ne.s32.totalorder %s366, %s368
    %p375 = scmp.eq.s32.totalorder %s91, 1
    %p376 = por %p374, %p375
    %p377 = scmp.ne.s32.totalorder %s368, %s369
    %p378 = scmp.eq.s32.totalorder %s91, 0
    %p379 = por %p377, %p378
    %p380 = scmp.ne.s32.totalorder %s368, %s369
    %p381 = scmp.eq.s32.totalorder %s92, 1
    %p382 = por %p380, %p381
    %p384 = scmp.ne.s32.totalorder %s369, %s383
    %p385 = scmp.eq.s32.totalorder %s92, 0
    %p386 = por %p384, %p385
    %s388 = sadd.s32 %s387, 1
    %p391 = scmp.eq.s32.totalorder %s86, 1
    %p392 = scmp.ne.s32.totalorder %s387, %s389
    %p393 = scmp.eq.s32.totalorder %s86, 0
    %p394 = por %p392, %p393
    %p395 = scmp.ne.s32.totalorder %s387, %s389
    %p396 = scmp.eq.s32.totalorder %s91, 1
    %p397 = por %p395, %p396
    %p398 = scmp.ne.s32.totalorder %s389, %s390
    %p399 = scmp.eq.s32.totalorder %s91, 0
    %p400 = por %p398, %p399
    %p401 = scmp.ne.s32.totalorder %s389, %s390
    %p402 = scmp.eq.s32.totalorder %s92, 1
    %p403 = por %p401, %p402
    %p405 = scmp.ne.s32.totalorder %s390, %s404
    %p406 = scmp.eq.s32.totalorder %s92, 0
    %p407 = por %p405, %p406
    %s409 = sadd.s32 %s408, 1
    %p412 = scmp.eq.s32.totalorder %s86, 1
    %p413 = scmp.ne.s32.totalorder %s408, %s410
    %p414 = scmp.eq.s32.totalorder %s86, 0
    %p415 = por %p413, %p414
    %p416 = scmp.ne.s32.totalorder %s408, %s410
    %p417 = scmp.eq.s32.totalorder %s91, 1
    %p418 = por %p416, %p417
    %p419 = scmp.ne.s32.totalorder %s410, %s411
    %p420 = scmp.eq.s32.totalorder %s91, 0
    %p421 = por %p419, %p420
    %p422 = scmp.ne.s32.totalorder %s410, %s411
    %p423 = scmp.eq.s32.totalorder %s92, 1
    %p424 = por %p422, %p423
    %p426 = scmp.ne.s32.totalorder %s411, %s425
    %p427 = scmp.eq.s32.totalorder %s92, 0
    %p428 = por %p426, %p427
    %s430 = sadd.s32 %s429, 1
    %p433 = scmp.eq.s32.totalorder %s86, 1
    %p434 = scmp.ne.s32.totalorder %s429, %s431
    %p435 = scmp.eq.s32.totalorder %s86, 0
    %p436 = por %p434, %p435
    %p437 = scmp.ne.s32.totalorder %s429, %s431
    %p438 = scmp.eq.s32.totalorder %s91, 1
    %p439 = por %p437, %p438
    %p440 = scmp.ne.s32.totalorder %s431, %s432
    %p441 = scmp.eq.s32.totalorder %s91, 0
    %p442 = por %p440, %p441
    %p443 = scmp.ne.s32.totalorder %s431, %s432
    %p444 = scmp.eq.s32.totalorder %s92, 1
    %p445 = por %p443, %p444
    %p447 = scmp.ne.s32.totalorder %s432, %s446
    %p448 = scmp.eq.s32.totalorder %s92, 0
    %p449 = por %p447, %p448
    %s451 = sadd.s32 %s450, 1
    %p454 = scmp.eq.s32.totalorder %s86, 1
    %p455 = scmp.ne.s32.totalorder %s450, %s452
    %p456 = scmp.eq.s32.totalorder %s86, 0
    %p457 = por %p455, %p456
    %p458 = scmp.ne.s32.totalorder %s450, %s452
    %p459 = scmp.eq.s32.totalorder %s91, 1
    %p460 = por %p458, %p459
    %p461 = scmp.ne.s32.totalorder %s452, %s453
    %p462 = scmp.eq.s32.totalorder %s91, 0
    %p463 = por %p461, %p462
    %p464 = scmp.ne.s32.totalorder %s452, %s453
    %p465 = scmp.eq.s32.totalorder %s92, 1
    %p466 = por %p464, %p465
    %p468 = scmp.ne.s32.totalorder %s453, %s467
    %p469 = scmp.eq.s32.totalorder %s92, 0
    %p470 = por %p468, %p469
    %s472 = sadd.s32 %s471, 1
    %p475 = scmp.eq.s32.totalorder %s86, 1
    %p476 = scmp.ne.s32.totalorder %s471, %s473
    %p477 = scmp.eq.s32.totalorder %s86, 0
    %p478 = por %p476, %p477
    %p479 = scmp.ne.s32.totalorder %s471, %s473
    %p480 = scmp.eq.s32.totalorder %s91, 1
    %p481 = por %p479, %p480
    %p482 = scmp.ne.s32.totalorder %s473, %s474
    %p483 = scmp.eq.s32.totalorder %s91, 0
    %p484 = por %p482, %p483
    %p485 = scmp.ne.s32.totalorder %s473, %s474
    %p486 = scmp.eq.s32.totalorder %s92, 1
    %p487 = por %p485, %p486
    %p489 = scmp.ne.s32.totalorder %s474, %s488
    %p490 = scmp.eq.s32.totalorder %s92, 0
    %p491 = por %p489, %p490
    %s493 = sadd.s32 %s492, 1
    %p496 = scmp.eq.s32.totalorder %s86, 1
    %p497 = scmp.ne.s32.totalorder %s492, %s494
    %p498 = scmp.eq.s32.totalorder %s86, 0
    %p499 = por %p497, %p498
    %p500 = scmp.ne.s32.totalorder %s492, %s494
    %p501 = scmp.eq.s32.totalorder %s91, 1
    %p502 = por %p500, %p501
    %p503 = scmp.ne.s32.totalorder %s494, %s495
    %p504 = scmp.eq.s32.totalorder %s91, 0
    %p505 = por %p503, %p504
    %p506 = scmp.ne.s32.totalorder %s494, %s495
    %p507 = scmp.eq.s32.totalorder %s92, 1
    %p508 = por %p506, %p507
    %p510 = scmp.ne.s32.totalorder %s495, %s509
    %p511 = scmp.eq.s32.totalorder %s92, 0
    %p512 = por %p510, %p511
    %s514 = sadd.s32 %s513, 1
    %p517 = scmp.eq.s32.totalorder %s86, 1
    %p518 = scmp.ne.s32.totalorder %s513, %s515
    %p519 = scmp.eq.s32.totalorder %s86, 0
    %p520 = por %p518, %p519
    %p521 = scmp.ne.s32.totalorder %s513, %s515
    %p522 = scmp.eq.s32.totalorder %s91, 1
    %p523 = por %p521, %p522
    %p524 = scmp.ne.s32.totalorder %s515, %s516
    %p525 = scmp.eq.s32.totalorder %s91, 0
    %p526 = por %p524, %p525
    %p527 = scmp.ne.s32.totalorder %s515, %s516
    %p528 = scmp.eq.s32.totalorder %s92, 1
    %p529 = por %p527, %p528
    %p531 = scmp.ne.s32.totalorder %s516, %s530
    %p532 = scmp.eq.s32.totalorder %s92, 0
    %p533 = por %p531, %p532
    %s535 = sadd.s32 %s534, 1
    %p538 = scmp.eq.s32.totalorder %s86, 1
    %p539 = scmp.ne.s32.totalorder %s534, %s536
    %p540 = scmp.eq.s32.totalorder %s86, 0
    %p541 = por %p539, %p540
    %p542 = scmp.ne.s32.totalorder %s534, %s536
    %p543 = scmp.eq.s32.totalorder %s91, 1
    %p544 = por %p542, %p543
    %p545 = scmp.ne.s32.totalorder %s536, %s537
    %p546 = scmp.eq.s32.totalorder %s91, 0
    %p547 = por %p545, %p546
    %p548 = scmp.ne.s32.totalorder %s536, %s537
    %p549 = scmp.eq.s32.totalorder %s92, 1
    %p550 = por %p548, %p549
    %p552 = scmp.ne.s32.totalorder %s537, %s551
    %p553 = scmp.eq.s32.totalorder %s92, 0
    %p554 = por %p552, %p553
    %s556 = sadd.s32 %s555, 1
    %p559 = scmp.eq.s32.totalorder %s86, 1
    %p560 = scmp.ne.s32.totalorder %s555, %s557
    %p561 = scmp.eq.s32.totalorder %s86, 0
    %p562 = por %p560, %p561
    %p563 = scmp.ne.s32.totalorder %s555, %s557
    %p564 = scmp.eq.s32.totalorder %s91, 1
    %p565 = por %p563, %p564
    %p566 = scmp.ne.s32.totalorder %s557, %s558
    %p567 = scmp.eq.s32.totalorder %s91, 0
    %p568 = por %p566, %p567
    %p569 = scmp.ne.s32.totalorder %s557, %s558
    %p570 = scmp.eq.s32.totalorder %s92, 1
    %p571 = por %p569, %p570
    %p573 = scmp.ne.s32.totalorder %s558, %s572
    %p574 = scmp.eq.s32.totalorder %s92, 0
    %p575 = por %p573, %p574
    %s577 = sadd.s32 %s576, 1
    %p580 = scmp.eq.s32.totalorder %s86, 1
    %p581 = scmp.ne.s32.totalorder %s576, %s578
    %p582 = scmp.eq.s32.totalorder %s86, 0
    %p583 = por %p581, %p582
    %p584 = scmp.ne.s32.totalorder %s576, %s578
    %p585 = scmp.eq.s32.totalorder %s91, 1
    %p586 = por %p584, %p585
    %p587 = scmp.ne.s32.totalorder %s578, %s579
    %p588 = scmp.eq.s32.totalorder %s91, 0
    %p589 = por %p587, %p588
    %p590 = scmp.ne.s32.totalorder %s578, %s579
    %p591 = scmp.eq.s32.totalorder %s92, 1
    %p592 = por %p590, %p591
    %p594 = scmp.ne.s32.totalorder %s579, %s593
    %p595 = scmp.eq.s32.totalorder %s92, 0
    %p596 = por %p594, %p595
    %s598 = sadd.s32 %s597, 1
    %p601 = scmp.eq.s32.totalorder %s86, 1
    %p602 = scmp.ne.s32.totalorder %s597, %s599
    %p603 = scmp.eq.s32.totalorder %s86, 0
    %p604 = por %p602, %p603
    %p605 = scmp.ne.s32.totalorder %s597, %s599
    %p606 = scmp.eq.s32.totalorder %s91, 1
    %p607 = por %p605, %p606
    %p608 = scmp.ne.s32.totalorder %s599, %s600
    %p609 = scmp.eq.s32.totalorder %s91, 0
    %p610 = por %p608, %p609
    %p611 = scmp.ne.s32.totalorder %s599, %s600
    %p612 = scmp.eq.s32.totalorder %s92, 1
    %p613 = por %p611, %p612
    %p615 = scmp.ne.s32.totalorder %s600, %s614
    %p616 = scmp.eq.s32.totalorder %s92, 0
    %p617 = por %p615, %p616
    %s619 = sadd.s32 %s618, 1
    %p622 = scmp.eq.s32.totalorder %s86, 1
    %p623 = scmp.ne.s32.totalorder %s618, %s620
    %p624 = scmp.eq.s32.totalorder %s86, 0
    %p625 = por %p623, %p624
    %p626 = scmp.ne.s32.totalorder %s618, %s620
    %p627 = scmp.eq.s32.totalorder %s91, 1
    %p628 = por %p626, %p627
    %p629 = scmp.ne.s32.totalorder %s620, %s621
    %p630 = scmp.eq.s32.totalorder %s91, 0
    %p631 = por %p629, %p630
    %p632 = scmp.ne.s32.totalorder %s620, %s621
    %p633 = scmp.eq.s32.totalorder %s92, 1
    %p634 = por %p632, %p633
    %p636 = scmp.ne.s32.totalorder %s621, %s635
    %p637 = scmp.eq.s32.totalorder %s92, 0
    %p638 = por %p636, %p637
    %s640 = sadd.s32 %s639, 1
    %p643 = scmp.eq.s32.totalorder %s86, 1
    %p644 = scmp.ne.s32.totalorder %s639, %s641
    %p645 = scmp.eq.s32.totalorder %s86, 0
    %p646 = por %p644, %p645
    %p647 = scmp.ne.s32.totalorder %s639, %s641
    %p648 = scmp.eq.s32.totalorder %s91, 1
    %p649 = por %p647, %p648
    %p650 = scmp.ne.s32.totalorder %s641, %s642
    %p651 = scmp.eq.s32.totalorder %s91, 0
    %p652 = por %p650, %p651
    %p653 = scmp.ne.s32.totalorder %s641, %s642
    %p654 = scmp.eq.s32.totalorder %s92, 1
    %p655 = por %p653, %p654
    %p657 = scmp.ne.s32.totalorder %s642, %s656
    %p658 = scmp.eq.s32.totalorder %s92, 0
    %p659 = por %p657, %p658
    %s661 = sadd.s32 %s660, 1
    %p664 = scmp.eq.s32.totalorder %s86, 1
    %p665 = scmp.ne.s32.totalorder %s660, %s662
    %p666 = scmp.eq.s32.totalorder %s86, 0
    %p667 = por %p665, %p666
    %p668 = scmp.ne.s32.totalorder %s660, %s662
    %p669 = scmp.eq.s32.totalorder %s91, 1
    %p670 = por %p668, %p669
    %p671 = scmp.ne.s32.totalorder %s662, %s663
    %p672 = scmp.eq.s32.totalorder %s91, 0
    %p673 = por %p671, %p672
    %p674 = scmp.ne.s32.totalorder %s662, %s663
    %p675 = scmp.eq.s32.totalorder %s92, 1
    %p676 = por %p674, %p675
    %p678 = scmp.ne.s32.totalorder %s663, %s677
    %p679 = scmp.eq.s32.totalorder %s92, 0
    %p680 = por %p678, %p679
    %s682 = sadd.s32 %s681, 1
    %p685 = scmp.eq.s32.totalorder %s86, 1
    %p686 = scmp.ne.s32.totalorder %s681, %s683
    %p687 = scmp.eq.s32.totalorder %s86, 0
    %p688 = por %p686, %p687
    %p689 = scmp.ne.s32.totalorder %s681, %s683
    %p690 = scmp.eq.s32.totalorder %s91, 1
    %p691 = por %p689, %p690
    %p692 = scmp.ne.s32.totalorder %s683, %s684
    %p693 = scmp.eq.s32.totalorder %s91, 0
    %p694 = por %p692, %p693
    %p695 = scmp.ne.s32.totalorder %s683, %s684
    %p696 = scmp.eq.s32.totalorder %s92, 1
    %p697 = por %p695, %p696
    %p699 = scmp.ne.s32.totalorder %s684, %s698
    %p700 = scmp.eq.s32.totalorder %s92, 0
    %p701 = por %p699, %p700
    %s703 = sadd.s32 %s702, 1
    %p706 = scmp.eq.s32.totalorder %s86, 1
    %p707 = scmp.ne.s32.totalorder %s702, %s704
    %p708 = scmp.eq.s32.totalorder %s86, 0
    %p709 = por %p707, %p708
    %p710 = scmp.ne.s32.totalorder %s702, %s704
    %p711 = scmp.eq.s32.totalorder %s91, 1
    %p712 = por %p710, %p711
    %p713 = scmp.ne.s32.totalorder %s704, %s705
    %p714 = scmp.eq.s32.totalorder %s91, 0
    %p715 = por %p713, %p714
    %p716 = scmp.ne.s32.totalorder %s704, %s705
    %p717 = scmp.eq.s32.totalorder %s92, 1
    %p718 = por %p716, %p717
    %p720 = scmp.ne.s32.totalorder %s705, %s719
    %p721 = scmp.eq.s32.totalorder %s92, 0
    %p722 = por %p720, %p721
    %s724 = sadd.s32 %s723, 1
    %p727 = scmp.eq.s32.totalorder %s86, 1
    %p728 = scmp.ne.s32.totalorder %s723, %s725
    %p729 = scmp.eq.s32.totalorder %s86, 0
    %p730 = por %p728, %p729
    %p731 = scmp.ne.s32.totalorder %s723, %s725
    %p732 = scmp.eq.s32.totalorder %s91, 1
    %p733 = por %p731, %p732
    %p734 = scmp.ne.s32.totalorder %s725, %s726
    %p735 = scmp.eq.s32.totalorder %s91, 0
    %p736 = por %p734, %p735
    %p737 = scmp.ne.s32.totalorder %s725, %s726
    %p738 = scmp.eq.s32.totalorder %s92, 1
    %p739 = por %p737, %p738
    %p741 = scmp.ne.s32.totalorder %s726, %s740
    %p742 = scmp.eq.s32.totalorder %s92, 0
    %p743 = por %p741, %p742
    %s745 = sadd.s32 %s744, 1
    %p748 = scmp.eq.s32.totalorder %s86, 1
    %p749 = scmp.ne.s32.totalorder %s744, %s746
    %p750 = scmp.eq.s32.totalorder %s86, 0
    %p751 = por %p749, %p750
    %p752 = scmp.ne.s32.totalorder %s744, %s746
    %p753 = scmp.eq.s32.totalorder %s91, 1
    %p754 = por %p752, %p753
    %p755 = scmp.ne.s32.totalorder %s746, %s747
    %p756 = scmp.eq.s32.totalorder %s91, 0
    %p757 = por %p755, %p756
    %p758 = scmp.ne.s32.totalorder %s746, %s747
    %p759 = scmp.eq.s32.totalorder %s92, 1
    %p760 = por %p758, %p759
    %p762 = scmp.ne.s32.totalorder %s747, %s761
    %p763 = scmp.eq.s32.totalorder %s92, 0
    %p764 = por %p762, %p763
    %s766 = sadd.s32 %s765, 1
    %p769 = scmp.eq.s32.totalorder %s86, 1
    %p770 = scmp.ne.s32.totalorder %s765, %s767
    %p771 = scmp.eq.s32.totalorder %s86, 0
    %p772 = por %p770, %p771
    %p773 = scmp.ne.s32.totalorder %s765, %s767
    %p774 = scmp.eq.s32.totalorder %s91, 1
    %p775 = por %p773, %p774
    %p776 = scmp.ne.s32.totalorder %s767, %s768
    %p777 = scmp.eq.s32.totalorder %s91, 0
    %p778 = por %p776, %p777
    %p779 = scmp.ne.s32.totalorder %s767, %s768
    %p780 = scmp.eq.s32.totalorder %s92, 1
    %p781 = por %p779, %p780
    %p783 = scmp.ne.s32.totalorder %s768, %s782
    %p784 = scmp.eq.s32.totalorder %s92, 0
    %p785 = por %p783, %p784
    %s787 = sadd.s32 %s786, 1
    %p790 = scmp.eq.s32.totalorder %s86, 1
    %p791 = scmp.ne.s32.totalorder %s786, %s788
    %p792 = scmp.eq.s32.totalorder %s86, 0
    %p793 = por %p791, %p792
    %p794 = scmp.ne.s32.totalorder %s786, %s788
    %p795 = scmp.eq.s32.totalorder %s91, 1
    %p796 = por %p794, %p795
    %p797 = scmp.ne.s32.totalorder %s788, %s789
    %p798 = scmp.eq.s32.totalorder %s91, 0
    %p799 = por %p797, %p798
    %p800 = scmp.ne.s32.totalorder %s788, %s789
    %p801 = scmp.eq.s32.totalorder %s92, 1
    %p802 = por %p800, %p801
    %p804 = scmp.ne.s32.totalorder %s789, %s803
    %p805 = scmp.eq.s32.totalorder %s92, 0
    %p806 = por %p804, %p805
    %s808 = sadd.s32 %s807, 1
    %p811 = scmp.eq.s32.totalorder %s86, 1
    %p812 = scmp.ne.s32.totalorder %s807, %s809
    %p813 = scmp.eq.s32.totalorder %s86, 0
    %p814 = por %p812, %p813
    %p815 = scmp.ne.s32.totalorder %s807, %s809
    %p816 = scmp.eq.s32.totalorder %s91, 1
    %p817 = por %p815, %p816
    %p818 = scmp.ne.s32.totalorder %s809, %s810
    %p819 = scmp.eq.s32.totalorder %s91, 0
    %p820 = por %p818, %p819
    %p821 = scmp.ne.s32.totalorder %s809, %s810
    %p822 = scmp.eq.s32.totalorder %s92, 1
    %p823 = por %p821, %p822
    %p825 = scmp.ne.s32.totalorder %s810, %s824
    %p826 = scmp.eq.s32.totalorder %s92, 0
    %p827 = por %p825, %p826
    %s829 = sadd.s32 %s828, 1
    %p832 = scmp.eq.s32.totalorder %s86, 1
    %p833 = scmp.ne.s32.totalorder %s828, %s830
    %p834 = scmp.eq.s32.totalorder %s86, 0
    %p835 = por %p833, %p834
    %p836 = scmp.ne.s32.totalorder %s828, %s830
    %p837 = scmp.eq.s32.totalorder %s91, 1
    %p838 = por %p836, %p837
    %p839 = scmp.ne.s32.totalorder %s830, %s831
    %p840 = scmp.eq.s32.totalorder %s91, 0
    %p841 = por %p839, %p840
    %p842 = scmp.ne.s32.totalorder %s830, %s831
    %p843 = scmp.eq.s32.totalorder %s92, 1
    %p844 = por %p842, %p843
    %p846 = scmp.ne.s32.totalorder %s831, %s845
    %p847 = scmp.eq.s32.totalorder %s92, 0
    %p848 = por %p846, %p847
    %s850 = sadd.s32 %s849, 1
    %p853 = scmp.eq.s32.totalorder %s86, 1
    %p854 = scmp.ne.s32.totalorder %s849, %s851
    %p855 = scmp.eq.s32.totalorder %s86, 0
    %p856 = por %p854, %p855
    %p857 = scmp.ne.s32.totalorder %s849, %s851
    %p858 = scmp.eq.s32.totalorder %s91, 1
    %p859 = por %p857, %p858
    %p860 = scmp.ne.s32.totalorder %s851, %s852
    %p861 = scmp.eq.s32.totalorder %s91, 0
    %p862 = por %p860, %p861
    %p863 = scmp.ne.s32.totalorder %s851, %s852
    %p864 = scmp.eq.s32.totalorder %s92, 1
    %p865 = por %p863, %p864
    %p867 = scmp.ne.s32.totalorder %s852, %s866
    %p868 = scmp.eq.s32.totalorder %s92, 0
    %p869 = por %p867, %p868
    %s870 = ssub.s32 %s86, %s93
    %p871 = scmp.eq.s32.totalorder %s870, 0
    %s873 = sadd.s32 %s872, 1
    %s874 = scalar_select %p871, %s872, %s873
    %p877 = pneg %p871
    %p878 = scmp.eq.s32.totalorder %s86, 1
    %p879 = por %p877, %p878
    %p880 = scmp.ne.s32.totalorder %s872, %s875
    %p881 = scmp.eq.s32.totalorder %s86, 0
    %p882 = por %p880, %p881
    %p883 = scmp.ne.s32.totalorder %s872, %s875
    %p884 = scmp.eq.s32.totalorder %s91, 1
    %p885 = por %p883, %p884
    %p886 = scmp.ne.s32.totalorder %s875, %s876
    %p887 = scmp.eq.s32.totalorder %s91, 0
    %p888 = por %p886, %p887
    %p889 = scmp.ne.s32.totalorder %s875, %s876
    %p890 = scmp.eq.s32.totalorder %s92, 1
    %p891 = por %p889, %p890
    %p893 = scmp.ne.s32.totalorder %s876, %s892
    %p894 = scmp.eq.s32.totalorder %s92, 0
    %p895 = por %p893, %p894
    %s896 = ssub.s32 %s86, %s93
    %p897 = scmp.eq.s32.totalorder %s896, 0
    %s899 = sadd.s32 %s898, 1
    %s900 = scalar_select %p897, %s898, %s899
    %p903 = pneg %p897
    %p904 = scmp.eq.s32.totalorder %s86, 1
    %p905 = por %p903, %p904
    %p906 = scmp.ne.s32.totalorder %s898, %s901
    %p907 = scmp.eq.s32.totalorder %s86, 0
    %p908 = por %p906, %p907
    %p909 = scmp.ne.s32.totalorder %s898, %s901
    %p910 = scmp.eq.s32.totalorder %s91, 1
    %p911 = por %p909, %p910
    %p912 = scmp.ne.s32.totalorder %s901, %s902
    %p913 = scmp.eq.s32.totalorder %s91, 0
    %p914 = por %p912, %p913
    %p915 = scmp.ne.s32.totalorder %s901, %s902
    %p916 = scmp.eq.s32.totalorder %s92, 1
    %p917 = por %p915, %p916
    %p919 = scmp.ne.s32.totalorder %s902, %s918
    %p920 = scmp.eq.s32.totalorder %s92, 0
    %p921 = por %p919, %p920
    %s922 = ssub.s32 %s86, %s93
    %p923 = scmp.eq.s32.totalorder %s922, 0
    %s925 = sadd.s32 %s924, 1
    %s926 = scalar_select %p923, %s924, %s925
    %p929 = pneg %p923
    %p930 = scmp.eq.s32.totalorder %s86, 1
    %p931 = por %p929, %p930
    %p932 = scmp.ne.s32.totalorder %s924, %s927
    %p933 = scmp.eq.s32.totalorder %s86, 0
    %p934 = por %p932, %p933
    %p935 = scmp.ne.s32.totalorder %s924, %s927
    %p936 = scmp.eq.s32.totalorder %s91, 1
    %p937 = por %p935, %p936
    %p938 = scmp.ne.s32.totalorder %s927, %s928
    %p939 = scmp.eq.s32.totalorder %s91, 0
    %p940 = por %p938, %p939
    %p941 = scmp.ne.s32.totalorder %s927, %s928
    %p942 = scmp.eq.s32.totalorder %s92, 1
    %p943 = por %p941, %p942
    %p945 = scmp.ne.s32.totalorder %s928, %s944
    %p946 = scmp.eq.s32.totalorder %s92, 0
    %p947 = por %p945, %p946
    %p948 = scmp.le.s32.totalorder 1, %s86
    %p949 = scmp.lt.s32.totalorder %s86, 3
    %p950 = pnand %p948, %p949
    %p951 = pneg %p950
    // Predicated region
    $region9: #{predict_forward.1} parent=5 // pred_check
      _
    $region10: #{predict_forward.1} parent=5 // pred_check_branch
      %953 = sbr.rel (%p950) target = $region12
    $region11: #{predict_forward.1} parent=5 // pred_region
      %s954 = ssub.s32 %s86, 1
      // Predicated region
      $region13: #{predict_forward.1} parent=11 // pred_check
        %p955 = pneg %p211
      $region14: #{predict_forward.1} parent=11 // pred_check_branch
        %957 = sbr.rel (%p955) target = $region16
      $region15: #{predict_forward.1} parent=11 // pred_region
        _
      $region16: #{predict_forward.1} parent=11 // pred_fallthru
        _
      // Predicated region
      $region17: #{predict_forward.1} parent=11 // pred_check
        %p958 = pneg %p232
      $region18: #{predict_forward.1} parent=11 // pred_check_branch
        %960 = sbr.rel (%p958) target = $region20
      $region19: #{predict_forward.1} parent=11 // pred_region
        _
      $region20: #{predict_forward.1} parent=11 // pred_fallthru
        _
      // Predicated region
      $region21: #{predict_forward.1} parent=11 // pred_check
        %p961 = pneg %p253
      $region22: #{predict_forward.1} parent=11 // pred_check_branch
        %963 = sbr.rel (%p961) target = $region24
      $region23: #{predict_forward.1} parent=11 // pred_region
        _
      $region24: #{predict_forward.1} parent=11 // pred_fallthru
        _
      // Predicated region
      $region25: #{predict_forward.1} parent=11 // pred_check
        %p964 = pneg %p274
      $region26: #{predict_forward.1} parent=11 // pred_check_branch
        %966 = sbr.rel (%p964) target = $region28
      $region27: #{predict_forward.1} parent=11 // pred_region
        _
      $region28: #{predict_forward.1} parent=11 // pred_fallthru
        _
      // Predicated region
      $region29: #{predict_forward.1} parent=11 // pred_check
        %p967 = pneg %p295
      $region30: #{predict_forward.1} parent=11 // pred_check_branch
        %969 = sbr.rel (%p967) target = $region32
      $region31: #{predict_forward.1} parent=11 // pred_region
        _
      $region32: #{predict_forward.1} parent=11 // pred_fallthru
        _
      // Predicated region
      $region33: #{predict_forward.1} parent=11 // pred_check
        %p970 = pneg %p316
      $region34: #{predict_forward.1} parent=11 // pred_check_branch
        %972 = sbr.rel (%p970) target = $region36
      $region35: #{predict_forward.1} parent=11 // pred_region
        _
      $region36: #{predict_forward.1} parent=11 // pred_fallthru
        _
      // Predicated region
      $region37: #{predict_forward.1} parent=11 // pred_check
        %p973 = pneg %p337
      $region38: #{predict_forward.1} parent=11 // pred_check_branch
        %975 = sbr.rel (%p973) target = $region40
      $region39: #{predict_forward.1} parent=11 // pred_region
        _
      $region40: #{predict_forward.1} parent=11 // pred_fallthru
        _
      // Predicated region
      $region41: #{predict_forward.1} parent=11 // pred_check
        %p976 = pneg %p358
      $region42: #{predict_forward.1} parent=11 // pred_check_branch
        %978 = sbr.rel (%p976) target = $region44
      $region43: #{predict_forward.1} parent=11 // pred_region
        _
      $region44: #{predict_forward.1} parent=11 // pred_fallthru
        _
      // Predicated region
      $region45: #{predict_forward.1} parent=11 // pred_check
        %p979 = pneg %p379
      $region46: #{predict_forward.1} parent=11 // pred_check_branch
        %981 = sbr.rel (%p979) target = $region48
      $region47: #{predict_forward.1} parent=11 // pred_region
        _
      $region48: #{predict_forward.1} parent=11 // pred_fallthru
        _
      // Predicated region
      $region49: #{predict_forward.1} parent=11 // pred_check
        %p982 = pneg %p400
      $region50: #{predict_forward.1} parent=11 // pred_check_branch
        %984 = sbr.rel (%p982) target = $region52
      $region51: #{predict_forward.1} parent=11 // pred_region
        _
      $region52: #{predict_forward.1} parent=11 // pred_fallthru
        _
      // Predicated region
      $region53: #{predict_forward.1} parent=11 // pred_check
        %p985 = pneg %p421
      $region54: #{predict_forward.1} parent=11 // pred_check_branch
        %987 = sbr.rel (%p985) target = $region56
      $region55: #{predict_forward.1} parent=11 // pred_region
        _
      $region56: #{predict_forward.1} parent=11 // pred_fallthru
        _
      // Predicated region
      $region57: #{predict_forward.1} parent=11 // pred_check
        %p988 = pneg %p442
      $region58: #{predict_forward.1} parent=11 // pred_check_branch
        %990 = sbr.rel (%p988) target = $region60
      $region59: #{predict_forward.1} parent=11 // pred_region
        _
      $region60: #{predict_forward.1} parent=11 // pred_fallthru
        _
      // Predicated region
      $region61: #{predict_forward.1} parent=11 // pred_check
        %p991 = pneg %p463
      $region62: #{predict_forward.1} parent=11 // pred_check_branch
        %993 = sbr.rel (%p991) target = $region64
      $region63: #{predict_forward.1} parent=11 // pred_region
        _
      $region64: #{predict_forward.1} parent=11 // pred_fallthru
        _
      // Predicated region
      $region65: #{predict_forward.1} parent=11 // pred_check
        %p994 = pneg %p484
      $region66: #{predict_forward.1} parent=11 // pred_check_branch
        %996 = sbr.rel (%p994) target = $region68
      $region67: #{predict_forward.1} parent=11 // pred_region
        _
      $region68: #{predict_forward.1} parent=11 // pred_fallthru
        _
      // Predicated region
      $region69: #{predict_forward.1} parent=11 // pred_check
        %p997 = pneg %p505
      $region70: #{predict_forward.1} parent=11 // pred_check_branch
        %999 = sbr.rel (%p997) target = $region72
      $region71: #{predict_forward.1} parent=11 // pred_region
        _
      $region72: #{predict_forward.1} parent=11 // pred_fallthru
        _
      // Predicated region
      $region73: #{predict_forward.1} parent=11 // pred_check
        %p1000 = pneg %p526
      $region74: #{predict_forward.1} parent=11 // pred_check_branch
        %1002 = sbr.rel (%p1000) target = $region76
      $region75: #{predict_forward.1} parent=11 // pred_region
        _
      $region76: #{predict_forward.1} parent=11 // pred_fallthru
        _
      // Predicated region
      $region77: #{predict_forward.1} parent=11 // pred_check
        %p1003 = pneg %p547
      $region78: #{predict_forward.1} parent=11 // pred_check_branch
        %1005 = sbr.rel (%p1003) target = $region80
      $region79: #{predict_forward.1} parent=11 // pred_region
        _
      $region80: #{predict_forward.1} parent=11 // pred_fallthru
        _
      // Predicated region
      $region81: #{predict_forward.1} parent=11 // pred_check
        %p1006 = pneg %p568
      $region82: #{predict_forward.1} parent=11 // pred_check_branch
        %1008 = sbr.rel (%p1006) target = $region84
      $region83: #{predict_forward.1} parent=11 // pred_region
        _
      $region84: #{predict_forward.1} parent=11 // pred_fallthru
        _
      // Predicated region
      $region85: #{predict_forward.1} parent=11 // pred_check
        %p1009 = pneg %p589
      $region86: #{predict_forward.1} parent=11 // pred_check_branch
        %1011 = sbr.rel (%p1009) target = $region88
      $region87: #{predict_forward.1} parent=11 // pred_region
        _
      $region88: #{predict_forward.1} parent=11 // pred_fallthru
        _
      // Predicated region
      $region89: #{predict_forward.1} parent=11 // pred_check
        %p1012 = pneg %p610
      $region90: #{predict_forward.1} parent=11 // pred_check_branch
        %1014 = sbr.rel (%p1012) target = $region92
      $region91: #{predict_forward.1} parent=11 // pred_region
        _
      $region92: #{predict_forward.1} parent=11 // pred_fallthru
        _
      // Predicated region
      $region93: #{predict_forward.1} parent=11 // pred_check
        %p1015 = pneg %p631
      $region94: #{predict_forward.1} parent=11 // pred_check_branch
        %1017 = sbr.rel (%p1015) target = $region96
      $region95: #{predict_forward.1} parent=11 // pred_region
        _
      $region96: #{predict_forward.1} parent=11 // pred_fallthru
        _
      // Predicated region
      $region97: #{predict_forward.1} parent=11 // pred_check
        %p1018 = pneg %p652
      $region98: #{predict_forward.1} parent=11 // pred_check_branch
        %1020 = sbr.rel (%p1018) target = $region100
      $region99: #{predict_forward.1} parent=11 // pred_region
        _
      $region100: #{predict_forward.1} parent=11 // pred_fallthru
        _
      // Predicated region
      $region101: #{predict_forward.1} parent=11 // pred_check
        %p1021 = pneg %p673
      $region102: #{predict_forward.1} parent=11 // pred_check_branch
        %1023 = sbr.rel (%p1021) target = $region104
      $region103: #{predict_forward.1} parent=11 // pred_region
        _
      $region104: #{predict_forward.1} parent=11 // pred_fallthru
        _
      // Predicated region
      $region105: #{predict_forward.1} parent=11 // pred_check
        %p1024 = pneg %p694
      $region106: #{predict_forward.1} parent=11 // pred_check_branch
        %1026 = sbr.rel (%p1024) target = $region108
      $region107: #{predict_forward.1} parent=11 // pred_region
        _
      $region108: #{predict_forward.1} parent=11 // pred_fallthru
        _
      // Predicated region
      $region109: #{predict_forward.1} parent=11 // pred_check
        %p1027 = pneg %p715
      $region110: #{predict_forward.1} parent=11 // pred_check_branch
        %1029 = sbr.rel (%p1027) target = $region112
      $region111: #{predict_forward.1} parent=11 // pred_region
        _
      $region112: #{predict_forward.1} parent=11 // pred_fallthru
        _
      // Predicated region
      $region113: #{predict_forward.1} parent=11 // pred_check
        %p1030 = pneg %p736
      $region114: #{predict_forward.1} parent=11 // pred_check_branch
        %1032 = sbr.rel (%p1030) target = $region116
      $region115: #{predict_forward.1} parent=11 // pred_region
        _
      $region116: #{predict_forward.1} parent=11 // pred_fallthru
        _
      // Predicated region
      $region117: #{predict_forward.1} parent=11 // pred_check
        %p1033 = pneg %p757
      $region118: #{predict_forward.1} parent=11 // pred_check_branch
        %1035 = sbr.rel (%p1033) target = $region120
      $region119: #{predict_forward.1} parent=11 // pred_region
        _
      $region120: #{predict_forward.1} parent=11 // pred_fallthru
        _
      // Predicated region
      $region121: #{predict_forward.1} parent=11 // pred_check
        %p1036 = pneg %p778
      $region122: #{predict_forward.1} parent=11 // pred_check_branch
        %1038 = sbr.rel (%p1036) target = $region124
      $region123: #{predict_forward.1} parent=11 // pred_region
        _
      $region124: #{predict_forward.1} parent=11 // pred_fallthru
        _
      // Predicated region
      $region125: #{predict_forward.1} parent=11 // pred_check
        %p1039 = pneg %p799
      $region126: #{predict_forward.1} parent=11 // pred_check_branch
        %1041 = sbr.rel (%p1039) target = $region128
      $region127: #{predict_forward.1} parent=11 // pred_region
        _
      $region128: #{predict_forward.1} parent=11 // pred_fallthru
        _
      // Predicated region
      $region129: #{predict_forward.1} parent=11 // pred_check
        %p1042 = pneg %p820
      $region130: #{predict_forward.1} parent=11 // pred_check_branch
        %1044 = sbr.rel (%p1042) target = $region132
      $region131: #{predict_forward.1} parent=11 // pred_region
        _
      $region132: #{predict_forward.1} parent=11 // pred_fallthru
        _
      // Predicated region
      $region133: #{predict_forward.1} parent=11 // pred_check
        %p1045 = pneg %p841
      $region134: #{predict_forward.1} parent=11 // pred_check_branch
        %1047 = sbr.rel (%p1045) target = $region136
      $region135: #{predict_forward.1} parent=11 // pred_region
        _
      $region136: #{predict_forward.1} parent=11 // pred_fallthru
        _
      // Predicated region
      $region137: #{predict_forward.1} parent=11 // pred_check
        %p1048 = pneg %p862
      $region138: #{predict_forward.1} parent=11 // pred_check_branch
        %1050 = sbr.rel (%p1048) target = $region140
      $region139: #{predict_forward.1} parent=11 // pred_region
        _
      $region140: #{predict_forward.1} parent=11 // pred_fallthru
        _
    $region12: #{predict_forward.1} parent=5 // pred_fallthru
      _
    %p1051 = scmp.lt.s32.totalorder %s86, 2
    // Predicated region
    $region141: #{predict_forward.1} parent=5 // pred_check
      %p1052 = pneg %p1051
    $region142: #{predict_forward.1} parent=5 // pred_check_branch
      %1054 = sbr.rel (%p1052) target = $region144
    $region143: #{predict_forward.1} parent=5 // pred_region
      // Predicated region
      $region145: #{predict_forward.1} parent=143 // pred_check
        %p1055 = pneg %p106
      $region146: #{predict_forward.1} parent=143 // pred_check_branch
        %1057 = sbr.rel (%p1055) target = $region148
      $region147: #{predict_forward.1} parent=143 // pred_region
        %s1058 = smul.u32 2, %s86
        %p1059 = scmp.lt.s32.totalorder %s1058, 3
        %s1060 = scalar_select %p1059, %s1058, 3
        %s1061 = smul.addr %s1060, 8
        %s1062 = scalar_lea.vmem %s1, %s1061
        %s1063 = smul.u32 2, %s86
      $region148: #{predict_forward.1} parent=143 // pred_fallthru
        _
      // Predicated region
      $region149: #{predict_forward.1} parent=143 // pred_check
        %p1064 = pneg %p132
      $region150: #{predict_forward.1} parent=143 // pred_check_branch
        %1066 = sbr.rel (%p1064) target = $region152
      $region151: #{predict_forward.1} parent=143 // pred_region
        %s1067 = smul.u32 2, %s86
        %p1068 = scmp.lt.s32.totalorder %s1067, 3
        %s1069 = scalar_select %p1068, %s1067, 3
        %s1070 = smul.addr %s1069, 8
        %s1071 = scalar_lea.vmem %s3, %s1070
        %s1072 = smul.u32 2, %s86
      $region152: #{predict_forward.1} parent=143 // pred_fallthru
        _
      // Predicated region
      $region153: #{predict_forward.1} parent=143 // pred_check
        %p1073 = pneg %p158
      $region154: #{predict_forward.1} parent=143 // pred_check_branch
        %1075 = sbr.rel (%p1073) target = $region156
      $region155: #{predict_forward.1} parent=143 // pred_region
        %p1076 = scmp.lt.s32.totalorder %s86, 1
        %s1077 = scalar_select %p1076, %s86, 1
        %s1078 = smul.addr %s1077, 8
        %s1079 = scalar_lea.vmem %s5, %s1078
      $region156: #{predict_forward.1} parent=143 // pred_fallthru
        _
      // Predicated region
      $region157: #{predict_forward.1} parent=143 // pred_check
        %p1080 = pneg %p184
      $region158: #{predict_forward.1} parent=143 // pred_check_branch
        %1082 = sbr.rel (%p1080) target = $region160
      $region159: #{predict_forward.1} parent=143 // pred_region
        %p1083 = scmp.lt.s32.totalorder %s86, 1
        %s1084 = scalar_select %p1083, %s86, 1
        %s1085 = smul.addr %s1084, 8
        %s1086 = scalar_lea.vmem %s7, %s1085
      $region160: #{predict_forward.1} parent=143 // pred_fallthru
        _
    $region144: #{predict_forward.1} parent=5 // pred_fallthru
      _
    %p1087 = scmp.le.s32.totalorder 1, %s86
    %p1088 = scmp.lt.s32.totalorder %s86, 3
    %p1089 = pnand %p1087, %p1088
    %p1090 = pneg %p1089
    // Predicated region
    $region161: #{predict_forward.1} parent=5 // pred_check
      _
    $region162: #{predict_forward.1} parent=5 // pred_check_branch
      %1092 = sbr.rel (%p1089) target = $region164
    $region163: #{predict_forward.1} parent=5 // pred_region
      %s1093 = ssub.s32 %s86, 1
      %s1094 = smul.u32 2, %s91
      %p1095 = scmp.lt.s32.totalorder %s1094, 3
      %s1096 = scalar_select %p1095, %s1094, 3
      %s1097 = smul.addr %s1096, 8
      %s1098 = scalar_lea.vmem %s1, %s1097
      %p1099 = pneg %p112
      %p1100 = pneg %p109
      %s1101 = smul.u32 2, %s91
      %p1102 = scmp.lt.s32.totalorder %s1101, 3
      %s1103 = scalar_select %p1102, %s1101, 3
      %s1104 = smul.addr %s1103, 8
      %s1105 = scalar_lea.vmem %s3, %s1104
      %p1106 = pneg %p138
      %p1107 = pneg %p135
      %p1108 = scmp.lt.s32.totalorder %s91, 1
      %s1109 = scalar_select %p1108, %s91, 1
      %s1110 = smul.addr %s1109, 8
      %s1111 = scalar_lea.vmem %s5, %s1110
      %p1112 = pneg %p164
      %p1113 = pneg %p161
      %p1114 = scmp.lt.s32.totalorder %s91, 1
      %s1115 = scalar_select %p1114, %s91, 1
      %s1116 = smul.addr %s1115, 8
      %s1117 = scalar_lea.vmem %s7, %s1116
      %p1118 = pneg %p190
      %p1119 = pneg %p187
      %p1120 = pneg %p211
      %p1121 = pneg %p208
      %p1122 = pneg %p232
      %p1123 = pneg %p229
      %p1124 = pneg %p253
      %p1125 = pneg %p250
      %p1126 = pneg %p274
      %p1127 = pneg %p271
      %p1128 = pneg %p295
      %p1129 = pneg %p292
      %p1130 = pneg %p316
      %p1131 = pneg %p313
      %p1132 = pneg %p337
      %p1133 = pneg %p334
      %p1134 = pneg %p358
      %p1135 = pneg %p355
      %p1136 = pneg %p379
      %p1137 = pneg %p376
      %p1138 = pneg %p400
      %p1139 = pneg %p397
      %p1140 = pneg %p421
      %p1141 = pneg %p418
      %p1142 = pneg %p442
      %p1143 = pneg %p439
      %p1144 = pneg %p463
      %p1145 = pneg %p460
      %p1146 = pneg %p484
      %p1147 = pneg %p481
      %p1148 = pneg %p505
      %p1149 = pneg %p502
      %p1150 = pneg %p526
      %p1151 = pneg %p523
      %p1152 = pneg %p547
      %p1153 = pneg %p544
      %p1154 = pneg %p568
      %p1155 = pneg %p565
      %p1156 = pneg %p589
      %p1157 = pneg %p586
      %p1158 = pneg %p610
      %p1159 = pneg %p607
      %p1160 = pneg %p631
      %p1161 = pneg %p628
      %p1162 = pneg %p652
      %p1163 = pneg %p649
      %p1164 = pneg %p673
      %p1165 = pneg %p670
      %p1166 = pneg %p694
      %p1167 = pneg %p691
      %p1168 = pneg %p715
      %p1169 = pneg %p712
      %p1170 = pneg %p736
      %p1171 = pneg %p733
      %p1172 = pneg %p757
      %p1173 = pneg %p754
      %p1174 = pneg %p778
      %p1175 = pneg %p775
      %p1176 = pneg %p799
      %p1177 = pneg %p796
      %p1178 = pneg %p820
      %p1179 = pneg %p817
      %p1180 = pneg %p841
      %p1181 = pneg %p838
      %p1182 = pneg %p862
      %p1183 = pneg %p859
      %p1184 = pneg %p888
      %p1185 = pneg %p885
      %p1186 = scmp.lt.s32.totalorder %s91, 1
      %s1187 = scalar_select %p1186, %s91, 1
      %s1188 = smul.addr %s1187, 8
      %s1189 = scalar_lea.vmem %s73, %s1188
      %p1190 = pneg %p914
      %p1191 = pneg %p911
      %p1192 = scmp.lt.s32.totalorder %s91, 1
      %s1193 = scalar_select %p1192, %s91, 1
      %s1194 = smul.addr %s1193, 8
      %s1195 = scalar_lea.vmem %s75, %s1194
      %p1196 = pneg %p940
      %p1197 = pneg %p937
      %p1198 = scmp.lt.s32.totalorder %s91, 1
      %s1199 = scalar_select %p1198, %s91, 1
      %s1200 = smul.addr %s1199, 8
      %s1201 = scalar_lea.vmem %s77, %s1200
      %s1202 = smul.u32 2, %s91
      %p1203 = scmp.lt.s32.totalorder %s1202, 3
      %s1204 = scalar_select %p1203, %s1202, 3
      %s1205 = smul.addr %s1204, 8
      %s1206 = scalar_lea.vmem %s1, %s1205
      %s1207 = smul.u32 2, %s91
      %s1208 = smul.u32 2, %s91
      %p1209 = scmp.lt.s32.totalorder %s1208, 3
      %s1210 = scalar_select %p1209, %s1208, 3
      %s1211 = smul.addr %s1210, 8
      %s1212 = scalar_lea.vmem %s3, %s1211
      %s1213 = smul.u32 2, %s91
      %p1214 = scmp.lt.s32.totalorder %s91, 1
      %s1215 = scalar_select %p1214, %s91, 1
      %s1216 = smul.addr %s1215, 8
      %s1217 = scalar_lea.vmem %s5, %s1216
      %p1218 = scmp.lt.s32.totalorder %s91, 1
      %s1219 = scalar_select %p1218, %s91, 1
      %s1220 = smul.addr %s1219, 8
      %s1221 = scalar_lea.vmem %s7, %s1220
      %p1222 = scmp.lt.s32.totalorder %s91, 1
      %s1223 = scalar_select %p1222, %s91, 1
      %s1224 = smul.addr %s1223, 8
      %s1225 = scalar_lea.vmem %s73, %s1224
      %p1226 = scmp.lt.s32.totalorder %s91, 1
      %s1227 = scalar_select %p1226, %s91, 1
      %s1228 = smul.addr %s1227, 8
      %s1229 = scalar_lea.vmem %s75, %s1228
      %p1230 = scmp.lt.s32.totalorder %s91, 1
      %s1231 = scalar_select %p1230, %s91, 1
      %s1232 = smul.addr %s1231, 8
      %s1233 = scalar_lea.vmem %s77, %s1232
      %v1235 = vld [vmem:[%s1206] sm:$0xff]
      %v1236 = vld [vmem:[%s1206 + $0x8] sm:$0xff]
      %v1237 = vld [vmem:[%s1212] sm:$0xff]
      %v1238 = vld [vmem:[%s1212 + $0x8] sm:$0xff]
      %v1239 = vld [vmem:[%s1217] sm:$0xff]
      %v1240 = vpack.c.bf16 %v1236, %v1235
      %v1241 = vld [vmem:[%s9] sm:$0xf]
      %v1242 = vld [vmem:[%s11] sm:$0x1]
      %v1244 = vlaneseq
      %v1245 = vshrl.u32 %v1244, 7
      %v1246 = vsub.s32 0, %v1245
      %v1247 = vrot.slane %v1242, %v1246
      %vm1249 = vcmask 64512
      %v1251 = vsel %vm1249, %v1240, 0
      %vm1253 = vcmask 1043456
      %v1255 = vsel %vm1253, %v1241, 0
      %1257 = vmatprep.subr.bf16.mxu0 0
      %1258 = vmatpush1.bf16.msra.mxu0 %v1255
      %1259 = vmatprep.subr.bf16.mxu0 0
      %1260 = vmatpush1.bf16.msra.mxu0 0
      %1261 = vmatprep.subr.bf16.mxu0 0
      %1262 = vmatpush1.bf16.msra.mxu0 0
      %1263 = vmatprep.subr.bf16.mxu0 0
      %1264 = vmatpush1.bf16.msra.mxu0 0
      %1265 = vmatprep.subr.bf16.mxu0 0
      %1266 = vmatpush1.bf16.msra.mxu0 0
      %1267 = vmatprep.subr.bf16.mxu0 0
      %1268 = vmatpush1.bf16.msra.mxu0 0
      %1269 = vmatprep.subr.bf16.mxu0 0
      %1270 = vmatpush1.bf16.msra.mxu0 0
      %1271 = vmatprep.subr.bf16.mxu0 0
      %1272 = vmatpush1.bf16.msra.mxu0 0
      %1273 = vmatprep.subr.bf16.mxu0 0
      %1274 = vmatpush1.bf16.msra.mxu0 0
      %1275 = vmatprep.subr.bf16.mxu0 0
      %1276 = vmatpush1.bf16.msra.mxu0 0
      %1277 = vmatprep.subr.bf16.mxu0 0
      %1278 = vmatpush1.bf16.msra.mxu0 0
      %1279 = vmatprep.subr.bf16.mxu0 0
      %1280 = vmatpush1.bf16.msra.mxu0 0
      %1281 = vmatprep.subr.bf16.mxu0 0
      %1282 = vmatpush1.bf16.msra.mxu0 0
      %1283 = vmatprep.subr.bf16.mxu0 0
      %1284 = vmatpush1.bf16.msra.mxu0 0
      %1285 = vmatprep.subr.bf16.mxu0 0
      %1286 = vmatpush1.bf16.msra.mxu0 0
      %1287 = vmatprep.subr.bf16.mxu0 0
      %1288 = vmatpush1.bf16.msra.mxu0 0
      %1289 = vmatprep.mubr.bf16.mxu0 0
      %1290 = vmatmul.mubr.bf16.gmra.mrb[0].mxu0 %v1251
      %v1291 = vpop.f32.mrb[0].mxu0
      %v1292 = vadd.f32 %v1247, %v1291
      %v1293 = vpop.f32.mrb[0].mxu0
      %v1294 = vpop.f32.mrb[0].mxu0
      %v1295 = vadd.f32 %v1247, %v1294
      %v1296 = vpop.f32.mrb[0].mxu0
      %1297 = vdwg.mxu0
      %v1298 = vadd.f32 %v1292, %v1237
      %v1299 = vadd.f32 %v1295, %v1238
      %v1300 = vpack.c.bf16 %v1299, %v1298
      %v1301 = vld [vmem:[%s13] sm:$0xf]
      %v1302 = vld [vmem:[%s13 + $0x4] sm:$0xf]
      %v1303 = vld [vmem:[%s13 + $0x8] sm:$0xf]
      %v1304 = vld [vmem:[%s13 + $0xc] sm:$0xf]
      %v1305 = vld [vmem:[%s15] sm:$0x1]
      %v1307 = vlaneseq
      %v1308 = vshrl.u32 %v1307, 7
      %v1309 = vsub.s32 0, %v1308
      %v1310 = vrot.slane %v1305, %v1309
      %v1316 = vunpack.c.l.b16 %v1301
      %v1317 = vunpack.c.l.b16 %v1302
      %v1318 = vunpack.c.l.b16 %v1303
      %v1319 = vunpack.c.l.b16 %v1304
      %v1320 = vpack.c.b16 %v1317, %v1316
      %v1321 = vpack.c.b16 %v1319, %v1318
      %vm1324 = vcmask 261120
      %v1326 = vsel %vm1324, %v1300, 0
      %1328 = vmatprep.subr.bf16.mxu0 0
      %1329 = vmatpush1.bf16.msra.mxu0 %v1320
      %1330 = vmatprep.subr.bf16.mxu0 0
      %1331 = vmatpush1.bf16.msra.mxu0 %v1321
      %1332 = vmatprep.subr.bf16.mxu0 0
      %1333 = vmatpush1.bf16.msra.mxu0 0
      %1334 = vmatprep.subr.bf16.mxu0 0
      %1335 = vmatpush1.bf16.msra.mxu0 0
      %1336 = vmatprep.subr.bf16.mxu0 0
      %1337 = vmatpush1.bf16.msra.mxu0 0
      %1338 = vmatprep.subr.bf16.mxu0 0
      %1339 = vmatpush1.bf16.msra.mxu0 0
      %1340 = vmatprep.subr.bf16.mxu0 0
      %1341 = vmatpush1.bf16.msra.mxu0 0
      %1342 = vmatprep.subr.bf16.mxu0 0
      %1343 = vmatpush1.bf16.msra.mxu0 0
      %1344 = vmatprep.subr.bf16.mxu0 0
      %1345 = vmatpush1.bf16.msra.mxu0 0
      %1346 = vmatprep.subr.bf16.mxu0 0
      %1347 = vmatpush1.bf16.msra.mxu0 0
      %1348 = vmatprep.subr.bf16.mxu0 0
      %1349 = vmatpush1.bf16.msra.mxu0 0
      %1350 = vmatprep.subr.bf16.mxu0 0
      %1351 = vmatpush1.bf16.msra.mxu0 0
      %1352 = vmatprep.subr.bf16.mxu0 0
      %1353 = vmatpush1.bf16.msra.mxu0 0
      %1354 = vmatprep.subr.bf16.mxu0 0
      %1355 = vmatpush1.bf16.msra.mxu0 0
      %1356 = vmatprep.subr.bf16.mxu0 0
      %1357 = vmatpush1.bf16.msra.mxu0 0
      %1358 = vmatprep.subr.bf16.mxu0 0
      %1359 = vmatpush1.bf16.msra.mxu0 0
      %1360 = vmatprep.mubr.bf16.mxu0 0
      %1361 = vmatmul.mubr.bf16.gmra.mrb[0].mxu0 %v1326
      %v1362 = vpop.f32.mrb[0].mxu0
      %v1363 = vadd.f32 %v1310, %v1362
      %v1364 = vpop.f32.mrb[0].mxu0
      %v1365 = vpop.f32.mrb[0].mxu0
      %v1366 = vadd.f32 %v1310, %v1365
      %v1367 = vpop.f32.mrb[0].mxu0
      %1368 = vdwg.mxu0
      %v1369 = vpack.c.bf16 %v1295, %v1292
      %v1370 = vld [vmem:[%s17] sm:$0xf]
      %v1371 = vld [vmem:[%s17 + $0x4] sm:$0xf]
      %v1372 = vld [vmem:[%s17 + $0x8] sm:$0xf]
      %v1373 = vld [vmem:[%s17 + $0xc] sm:$0xf]
      %v1374 = vld [vmem:[%s19] sm:$0x1]
      %v1376 = vlaneseq
      %v1377 = vshrl.u32 %v1376, 7
      %v1378 = vsub.s32 0, %v1377
      %v1379 = vrot.slane %v1374, %v1378
      %v1385 = vunpack.c.l.b16 %v1370
      %v1386 = vunpack.c.l.b16 %v1371
      %v1387 = vunpack.c.l.b16 %v1372
      %v1388 = vunpack.c.l.b16 %v1373
      %v1389 = vpack.c.b16 %v1386, %v1385
      %v1390 = vpack.c.b16 %v1388, %v1387
      %v1394 = vsel %vm1324, %v1369, 0
      %1396 = vmatprep.subr.bf16.mxu0 0
      %1397 = vmatpush1.bf16.msra.mxu0 %v1389
      %1398 = vmatprep.subr.bf16.mxu0 0
      %1399 = vmatpush1.bf16.msra.mxu0 %v1390
      %1400 = vmatprep.subr.bf16.mxu0 0
      %1401 = vmatpush1.bf16.msra.mxu0 0
      %1402 = vmatprep.subr.bf16.mxu0 0
      %1403 = vmatpush1.bf16.msra.mxu0 0
      %1404 = vmatprep.subr.bf16.mxu0 0
      %1405 = vmatpush1.bf16.msra.mxu0 0
      %1406 = vmatprep.subr.bf16.mxu0 0
      %1407 = vmatpush1.bf16.msra.mxu0 0
      %1408 = vmatprep.subr.bf16.mxu0 0
      %1409 = vmatpush1.bf16.msra.mxu0 0
      %1410 = vmatprep.subr.bf16.mxu0 0
      %1411 = vmatpush1.bf16.msra.mxu0 0
      %1412 = vmatprep.subr.bf16.mxu0 0
      %1413 = vmatpush1.bf16.msra.mxu0 0
      %1414 = vmatprep.subr.bf16.mxu0 0
      %1415 = vmatpush1.bf16.msra.mxu0 0
      %1416 = vmatprep.subr.bf16.mxu0 0
      %1417 = vmatpush1.bf16.msra.mxu0 0
      %1418 = vmatprep.subr.bf16.mxu0 0
      %1419 = vmatpush1.bf16.msra.mxu0 0
      %1420 = vmatprep.subr.bf16.mxu0 0
      %1421 = vmatpush1.bf16.msra.mxu0 0
      %1422 = vmatprep.subr.bf16.mxu0 0
      %1423 = vmatpush1.bf16.msra.mxu0 0
      %1424 = vmatprep.subr.bf16.mxu0 0
      %1425 = vmatpush1.bf16.msra.mxu0 0
      %1426 = vmatprep.subr.bf16.mxu0 0
      %1427 = vmatpush1.bf16.msra.mxu0 0
      %1428 = vmatprep.mubr.bf16.mxu0 0
      %1429 = vmatmul.mubr.bf16.gmra.mrb[0].mxu0 %v1394
      %v1430 = vpop.f32.mrb[0].mxu0
      %v1431 = vadd.f32 %v1379, %v1430
      %v1432 = vpop.f32.mrb[0].mxu0
      %v1433 = vpop.f32.mrb[0].mxu0
      %v1434 = vadd.f32 %v1379, %v1433
      %v1435 = vpop.f32.mrb[0].mxu0
      %1436 = vdwg.mxu0
      %v1437 = vpack.c.bf16 %v1366, %v1363
      %v1438 = vpack.c.bf16 %v1434, %v1431
      %v1439 = vlaneseq
      %v1440 = vshrl.u32 %v1439, 7
      %v1441 = vsub.s32 0, %v1440
      %v1442 = vrot.slane %v1239, %v1441
      %1444 = vrot.lane.b32.xlu0 %v1437, 96
      %v1445 = vpop.permute.xlu0 %1444
      %v1447 = vsel %vm1249, %v1437, 0
      %v1450 = vsel %vm1249, %v1445, 0
      %1452 = vmatprep.subr.bf16.mxu0 0
      %1453 = vmatpush1.bf16.xpose.msra.mxu0 %v1450
      %1454 = vmatprep.subr.bf16.mxu0 0
      %1455 = vmatpush1.bf16.xpose.msra.mxu0 0
      %1456 = vmatprep.subr.bf16.mxu0 0
      %1457 = vmatpush1.bf16.xpose.msra.mxu0 0
      %1458 = vmatprep.subr.bf16.mxu0 0
      %1459 = vmatpush1.bf16.xpose.msra.mxu0 0
      %1460 = vmatprep.subr.bf16.mxu0 0
      %1461 = vmatpush1.bf16.xpose.msra.mxu0 0
      %1462 = vmatprep.subr.bf16.mxu0 0
      %1463 = vmatpush1.bf16.xpose.msra.mxu0 0
      %1464 = vmatprep.subr.bf16.mxu0 0
      %1465 = vmatpush1.bf16.xpose.msra.mxu0 0
      %1466 = vmatprep.subr.bf16.mxu0 0
      %1467 = vmatpush1.bf16.xpose.msra.mxu0 0
      %1468 = vmatprep.subr.bf16.mxu0 0
      %1469 = vmatpush1.bf16.xpose.msra.mxu0 0
      %1470 = vmatprep.subr.bf16.mxu0 0
      %1471 = vmatpush1.bf16.xpose.msra.mxu0 0
      %1472 = vmatprep.subr.bf16.mxu0 0
      %1473 = vmatpush1.bf16.xpose.msra.mxu0 0
      %1474 = vmatprep.subr.bf16.mxu0 0
      %1475 = vmatpush1.bf16.xpose.msra.mxu0 0
      %1476 = vmatprep.subr.bf16.mxu0 0
      %1477 = vmatpush1.bf16.xpose.msra.mxu0 0
      %1478 = vmatprep.subr.bf16.mxu0 0
      %1479 = vmatpush1.bf16.xpose.msra.mxu0 0
      %1480 = vmatprep.subr.bf16.mxu0 0
      %1481 = vmatpush1.bf16.xpose.msra.mxu0 0
      %1482 = vmatprep.subr.bf16.mxu0 0
      %1483 = vmatpush1.bf16.xpose.msra.mxu0 0
      %1484 = vmatprep.mubr.bf16.mxu0 0
      %1485 = vmatmul.mubr.bf16.gmra.mrb[0].mxu0 %v1447
      %v1486 = vpop.f32.mrb[0].mxu0
      %v1487 = vadd.f32 %v1442, %v1486
      %v1488 = vpop.f32.mrb[0].mxu0
      %v1489 = vpop.f32.mrb[0].mxu0
      %v1490 = vadd.f32 %v1442, %v1489
      %v1491 = vpop.f32.mrb[0].mxu0
      %1492 = vdwg.mxu0
      %vm1493 = vcmask 130048
      %v1494 = vsel %vm1493, %v1487, -inf
      %1495 = vmax.xlane.f32.xlu0 %v1494
      %v1496 = vpop.xlane.xlu0 %1495
      %v1497 = vsel %vm1493, %v1490, -inf
      %1498 = vmax.xlane.f32.xlu0 %v1497
      %v1499 = vpop.xlane.xlu0 %1498
      %v1500 = vsub.f32 %v1487, %v1496
      %v1501 = vsub.f32 %v1490, %v1499
      %v1502 = vmul.f32 %v1500, 1.442695
      %v1503 = vpow.pop %v1502
      %v1504 = vmul.f32 %v1501, 1.442695
      %v1505 = vpow.pop %v1504
      %v1506 = vsel %vm1493, %v1503, 0.0
      %1507 = vadd.xlane.f32.xlu0 %v1506
      %v1508 = vpop.xlane.xlu0 %1507
      %v1509 = vsel %vm1493, %v1505, 0.0
      %1510 = vadd.xlane.f32.xlu0 %v1509
      %v1511 = vpop.xlane.xlu0 %1510
      %v1512 = vrcp.pop %v1508
      %v1513 = vrcp.pop %v1511
      %v1514 = vmul.f32 %v1503, %v1512
      %v1515 = vmul.f32 %v1505, %v1513
      %v1516 = vpack.c.bf16 %v1515, %v1514
      %v1518 = vsel %vm1493, %v1516, 0
      %1520 = vmatprep.subr.bf16.mxu0 0
      %1521 = vmatpush1.bf16.msra.mxu0 %v1438
      %1522 = vmatprep.subr.bf16.mxu0 0
      %1523 = vmatpush1.bf16.msra.mxu0 0
      %1524 = vmatprep.subr.bf16.mxu0 0
      %1525 = vmatpush1.bf16.msra.mxu0 0
      %1526 = vmatprep.subr.bf16.mxu0 0
      %1527 = vmatpush1.bf16.msra.mxu0 0
      %1528 = vmatprep.subr.bf16.mxu0 0
      %1529 = vmatpush1.bf16.msra.mxu0 0
      %1530 = vmatprep.subr.bf16.mxu0 0
      %1531 = vmatpush1.bf16.msra.mxu0 0
      %1532 = vmatprep.subr.bf16.mxu0 0
      %1533 = vmatpush1.bf16.msra.mxu0 0
      %1534 = vmatprep.subr.bf16.mxu0 0
      %1535 = vmatpush1.bf16.msra.mxu0 0
      %1536 = vmatprep.subr.bf16.mxu0 0
      %1537 = vmatpush1.bf16.msra.mxu0 0
      %1538 = vmatprep.subr.bf16.mxu0 0
      %1539 = vmatpush1.bf16.msra.mxu0 0
      %1540 = vmatprep.subr.bf16.mxu0 0
      %1541 = vmatpush1.bf16.msra.mxu0 0
      %1542 = vmatprep.subr.bf16.mxu0 0
      %1543 = vmatpush1.bf16.msra.mxu0 0
      %1544 = vmatprep.subr.bf16.mxu0 0
      %1545 = vmatpush1.bf16.msra.mxu0 0
      %1546 = vmatprep.subr.bf16.mxu0 0
      %1547 = vmatpush1.bf16.msra.mxu0 0
      %1548 = vmatprep.subr.bf16.mxu0 0
      %1549 = vmatpush1.bf16.msra.mxu0 0
      %1550 = vmatprep.subr.bf16.mxu0 0
      %1551 = vmatpush1.bf16.msra.mxu0 0
      %1552 = vmatprep.mubr.bf16.mxu0 0
      %1553 = vmatmul.mubr.bf16.gmra.mrb[0].mxu0 %v1518
      %v1554 = vpop.f32.mrb[0].mxu0
      %v1555 = vadd.f32 0.0, %v1554
      %v1556 = vpop.f32.mrb[0].mxu0
      %v1557 = vpop.f32.mrb[0].mxu0
      %v1558 = vadd.f32 0.0, %v1557
      %v1559 = vpop.f32.mrb[0].mxu0
      %1560 = vdwg.mxu0
      %1561 = vrot.lane.b32.xlu0 %v1437, 120
      %v1562 = vpop.permute.xlu0 %1561
      %1563 = vrot.lane.b32.xlu0 %v1437, 88
      %v1564 = vpop.permute.xlu0 %1563
      %v1566 = vsel %vm1249, %v1562, 0
      %v1569 = vsel %vm1249, %v1564, 0
      %1571 = vmatprep.subr.bf16.mxu0 0
      %1572 = vmatpush1.bf16.xpose.msra.mxu0 %v1569
      %1573 = vmatprep.subr.bf16.mxu0 0
      %1574 = vmatpush1.bf16.xpose.msra.mxu0 0
      %1575 = vmatprep.subr.bf16.mxu0 0
      %1576 = vmatpush1.bf16.xpose.msra.mxu0 0
      %1577 = vmatprep.subr.bf16.mxu0 0
      %1578 = vmatpush1.bf16.xpose.msra.mxu0 0
      %1579 = vmatprep.subr.bf16.mxu0 0
      %1580 = vmatpush1.bf16.xpose.msra.mxu0 0
      %1581 = vmatprep.subr.bf16.mxu0 0
      %1582 = vmatpush1.bf16.xpose.msra.mxu0 0
      %1583 = vmatprep.subr.bf16.mxu0 0
      %1584 = vmatpush1.bf16.xpose.msra.mxu0 0
      %1585 = vmatprep.subr.bf16.mxu0 0
      %1586 = vmatpush1.bf16.xpose.msra.mxu0 0
      %1587 = vmatprep.subr.bf16.mxu0 0
      %1588 = vmatpush1.bf16.xpose.msra.mxu0 0
      %1589 = vmatprep.subr.bf16.mxu0 0
      %1590 = vmatpush1.bf16.xpose.msra.mxu0 0
      %1591 = vmatprep.subr.bf16.mxu0 0
      %1592 = vmatpush1.bf16.xpose.msra.mxu0 0
      %1593 = vmatprep.subr.bf16.mxu0 0
      %1594 = vmatpush1.bf16.xpose.msra.mxu0 0
      %1595 = vmatprep.subr.bf16.mxu0 0
      %1596 = vmatpush1.bf16.xpose.msra.mxu0 0
      %1597 = vmatprep.subr.bf16.mxu0 0
      %1598 = vmatpush1.bf16.xpose.msra.mxu0 0
      %1599 = vmatprep.subr.bf16.mxu0 0
      %1600 = vmatpush1.bf16.xpose.msra.mxu0 0
      %1601 = vmatprep.subr.bf16.mxu0 0
      %1602 = vmatpush1.bf16.xpose.msra.mxu0 0
      %1603 = vmatprep.mubr.bf16.mxu0 0
      %1604 = vmatmul.mubr.bf16.gmra.mrb[0].mxu0 %v1566
      %v1605 = vpop.f32.mrb[0].mxu0
      %v1606 = vadd.f32 %v1442, %v1605
      %v1607 = vpop.f32.mrb[0].mxu0
      %v1608 = vpop.f32.mrb[0].mxu0
      %v1609 = vadd.f32 %v1442, %v1608
      %v1610 = vpop.f32.mrb[0].mxu0
      %1611 = vdwg.mxu0
      %v1612 = vsel %vm1493, %v1606, -inf
      %1613 = vmax.xlane.f32.xlu0 %v1612
      %v1614 = vpop.xlane.xlu0 %1613
      %v1615 = vsel %vm1493, %v1609, -inf
      %1616 = vmax.xlane.f32.xlu0 %v1615
      %v1617 = vpop.xlane.xlu0 %1616
      %v1618 = vsub.f32 %v1606, %v1614
      %v1619 = vsub.f32 %v1609, %v1617
      %v1620 = vmul.f32 %v1618, 1.442695
      %v1621 = vpow.pop %v1620
      %v1622 = vmul.f32 %v1619, 1.442695
      %v1623 = vpow.pop %v1622
      %v1624 = vsel %vm1493, %v1621, 0.0
      %1625 = vadd.xlane.f32.xlu0 %v1624
      %v1626 = vpop.xlane.xlu0 %1625
      %v1627 = vsel %vm1493, %v1623, 0.0
      %1628 = vadd.xlane.f32.xlu0 %v1627
      %v1629 = vpop.xlane.xlu0 %1628
      %v1630 = vrcp.pop %v1626
      %v1631 = vrcp.pop %v1629
      %v1632 = vmul.f32 %v1621, %v1630
      %v1633 = vmul.f32 %v1623, %v1631
      %v1634 = vpack.c.bf16 %v1633, %v1632
      %1636 = vrot.lane.b32.xlu0 %v1438, 120
      %v1637 = vpop.permute.xlu0 %1636
      %v1640 = vsel %vm1493, %v1634, 0
      %1642 = vmatprep.subr.bf16.mxu0 0
      %1643 = vmatpush1.bf16.msra.mxu0 %v1637
      %1644 = vmatprep.subr.bf16.mxu0 0
      %1645 = vmatpush1.bf16.msra.mxu0 0
      %1646 = vmatprep.subr.bf16.mxu0 0
      %1647 = vmatpush1.bf16.msra.mxu0 0
      %1648 = vmatprep.subr.bf16.mxu0 0
      %1649 = vmatpush1.bf16.msra.mxu0 0
      %1650 = vmatprep.subr.bf16.mxu0 0
      %1651 = vmatpush1.bf16.msra.mxu0 0
      %1652 = vmatprep.subr.bf16.mxu0 0
      %1653 = vmatpush1.bf16.msra.mxu0 0
      %1654 = vmatprep.subr.bf16.mxu0 0
      %1655 = vmatpush1.bf16.msra.mxu0 0
      %1656 = vmatprep.subr.bf16.mxu0 0
      %1657 = vmatpush1.bf16.msra.mxu0 0
      %1658 = vmatprep.subr.bf16.mxu0 0
      %1659 = vmatpush1.bf16.msra.mxu0 0
      %1660 = vmatprep.subr.bf16.mxu0 0
      %1661 = vmatpush1.bf16.msra.mxu0 0
      %1662 = vmatprep.subr.bf16.mxu0 0
      %1663 = vmatpush1.bf16.msra.mxu0 0
      %1664 = vmatprep.subr.bf16.mxu0 0
      %1665 = vmatpush1.bf16.msra.mxu0 0
      %1666 = vmatprep.subr.bf16.mxu0 0
      %1667 = vmatpush1.bf16.msra.mxu0 0
      %1668 = vmatprep.subr.bf16.mxu0 0
      %1669 = vmatpush1.bf16.msra.mxu0 0
      %1670 = vmatprep.subr.bf16.mxu0 0
      %1671 = vmatpush1.bf16.msra.mxu0 0
      %1672 = vmatprep.subr.bf16.mxu0 0
      %1673 = vmatpush1.bf16.msra.mxu0 0
      %1674 = vmatprep.mubr.bf16.mxu0 0
      %1675 = vmatmul.mubr.bf16.gmra.mrb[0].mxu0 %v1640
      %v1676 = vpop.f32.mrb[0].mxu0
      %v1677 = vadd.f32 0.0, %v1676
      %v1678 = vpop.f32.mrb[0].mxu0
      %v1679 = vpop.f32.mrb[0].mxu0
      %v1680 = vadd.f32 0.0, %v1679
      %v1681 = vpop.f32.mrb[0].mxu0
      %1682 = vdwg.mxu0
      %1683 = vrot.lane.b32.xlu0 %v1437, 112
      %v1684 = vpop.permute.xlu0 %1683
      %1685 = vrot.lane.b32.xlu0 %v1437, 80
      %v1686 = vpop.permute.xlu0 %1685
      %v1688 = vsel %vm1249, %v1684, 0
      %v1691 = vsel %vm1249, %v1686, 0
      %1693 = vmatprep.subr.bf16.mxu0 0
      %1694 = vmatpush1.bf16.xpose.msra.mxu0 %v1691
      %1695 = vmatprep.subr.bf16.mxu0 0
      %1696 = vmatpush1.bf16.xpose.msra.mxu0 0
      %1697 = vmatprep.subr.bf16.mxu0 0
      %1698 = vmatpush1.bf16.xpose.msra.mxu0 0
      %1699 = vmatprep.subr.bf16.mxu0 0
      %1700 = vmatpush1.bf16.xpose.msra.mxu0 0
      %1701 = vmatprep.subr.bf16.mxu0 0
      %1702 = vmatpush1.bf16.xpose.msra.mxu0 0
      %1703 = vmatprep.subr.bf16.mxu0 0
      %1704 = vmatpush1.bf16.xpose.msra.mxu0 0
      %1705 = vmatprep.subr.bf16.mxu0 0
      %1706 = vmatpush1.bf16.xpose.msra.mxu0 0
      %1707 = vmatprep.subr.bf16.mxu0 0
      %1708 = vmatpush1.bf16.xpose.msra.mxu0 0
      %1709 = vmatprep.subr.bf16.mxu0 0
      %1710 = vmatpush1.bf16.xpose.msra.mxu0 0
      %1711 = vmatprep.subr.bf16.mxu0 0
      %1712 = vmatpush1.bf16.xpose.msra.mxu0 0
      %1713 = vmatprep.subr.bf16.mxu0 0
      %1714 = vmatpush1.bf16.xpose.msra.mxu0 0
      %1715 = vmatprep.subr.bf16.mxu0 0
      %1716 = vmatpush1.bf16.xpose.msra.mxu0 0
      %1717 = vmatprep.subr.bf16.mxu0 0
      %1718 = vmatpush1.bf16.xpose.msra.mxu0 0
      %1719 = vmatprep.subr.bf16.mxu0 0
      %1720 = vmatpush1.bf16.xpose.msra.mxu0 0
      %1721 = vmatprep.subr.bf16.mxu0 0
      %1722 = vmatpush1.bf16.xpose.msra.mxu0 0
      %1723 = vmatprep.subr.bf16.mxu0 0
      %1724 = vmatpush1.bf16.xpose.msra.mxu0 0
      %1725 = vmatprep.mubr.bf16.mxu0 0
      %1726 = vmatmul.mubr.bf16.gmra.mrb[0].mxu0 %v1688
      %v1727 = vpop.f32.mrb[0].mxu0
      %v1728 = vadd.f32 %v1442, %v1727
      %v1729 = vpop.f32.mrb[0].mxu0
      %v1730 = vpop.f32.mrb[0].mxu0
      %v1731 = vadd.f32 %v1442, %v1730
      %v1732 = vpop.f32.mrb[0].mxu0
      %1733 = vdwg.mxu0
      %v1734 = vsel %vm1493, %v1728, -inf
      %1735 = vmax.xlane.f32.xlu0 %v1734
      %v1736 = vpop.xlane.xlu0 %1735
      %v1737 = vsel %vm1493, %v1731, -inf
      %1738 = vmax.xlane.f32.xlu0 %v1737
      %v1739 = vpop.xlane.xlu0 %1738
      %v1740 = vsub.f32 %v1728, %v1736
      %v1741 = vsub.f32 %v1731, %v1739
      %v1742 = vmul.f32 %v1740, 1.442695
      %v1743 = vpow.pop %v1742
      %v1744 = vmul.f32 %v1741, 1.442695
      %v1745 = vpow.pop %v1744
      %v1746 = vsel %vm1493, %v1743, 0.0
      %1747 = vadd.xlane.f32.xlu0 %v1746
      %v1748 = vpop.xlane.xlu0 %1747
      %v1749 = vsel %vm1493, %v1745, 0.0
      %1750 = vadd.xlane.f32.xlu0 %v1749
      %v1751 = vpop.xlane.xlu0 %1750
      %v1752 = vrcp.pop %v1748
      %v1753 = vrcp.pop %v1751
      %v1754 = vmul.f32 %v1743, %v1752
      %v1755 = vmul.f32 %v1745, %v1753
      %v1756 = vpack.c.bf16 %v1755, %v1754
      %1757 = vrot.lane.b32.xlu0 %v1438, 112
      %v1758 = vpop.permute.xlu0 %1757
      %v1761 = vsel %vm1493, %v1756, 0
      %1763 = vmatprep.subr.bf16.mxu0 0
      %1764 = vmatpush1.bf16.msra.mxu0 %v1758
      %1765 = vmatprep.subr.bf16.mxu0 0
      %1766 = vmatpush1.bf16.msra.mxu0 0
      %1767 = vmatprep.subr.bf16.mxu0 0
      %1768 = vmatpush1.bf16.msra.mxu0 0
      %1769 = vmatprep.subr.bf16.mxu0 0
      %1770 = vmatpush1.bf16.msra.mxu0 0
      %1771 = vmatprep.subr.bf16.mxu0 0
      %1772 = vmatpush1.bf16.msra.mxu0 0
      %1773 = vmatprep.subr.bf16.mxu0 0
      %1774 = vmatpush1.bf16.msra.mxu0 0
      %1775 = vmatprep.subr.bf16.mxu0 0
      %1776 = vmatpush1.bf16.msra.mxu0 0
      %1777 = vmatprep.subr.bf16.mxu0 0
      %1778 = vmatpush1.bf16.msra.mxu0 0
      %1779 = vmatprep.subr.bf16.mxu0 0
      %1780 = vmatpush1.bf16.msra.mxu0 0
      %1781 = vmatprep.subr.bf16.mxu0 0
      %1782 = vmatpush1.bf16.msra.mxu0 0
      %1783 = vmatprep.subr.bf16.mxu0 0
      %1784 = vmatpush1.bf16.msra.mxu0 0
      %1785 = vmatprep.subr.bf16.mxu0 0
      %1786 = vmatpush1.bf16.msra.mxu0 0
      %1787 = vmatprep.subr.bf16.mxu0 0
      %1788 = vmatpush1.bf16.msra.mxu0 0
      %1789 = vmatprep.subr.bf16.mxu0 0
      %1790 = vmatpush1.bf16.msra.mxu0 0
      %1791 = vmatprep.subr.bf16.mxu0 0
      %1792 = vmatpush1.bf16.msra.mxu0 0
      %1793 = vmatprep.subr.bf16.mxu0 0
      %1794 = vmatpush1.bf16.msra.mxu0 0
      %1795 = vmatprep.mubr.bf16.mxu0 0
      %1796 = vmatmul.mubr.bf16.gmra.mrb[0].mxu0 %v1761
      %v1797 = vpop.f32.mrb[0].mxu0
      %v1798 = vadd.f32 0.0, %v1797
      %v1799 = vpop.f32.mrb[0].mxu0
      %v1800 = vpop.f32.mrb[0].mxu0
      %v1801 = vadd.f32 0.0, %v1800
      %v1802 = vpop.f32.mrb[0].mxu0
      %1803 = vdwg.mxu0
      %1804 = vrot.lane.b32.xlu0 %v1437, 104
      %v1805 = vpop.permute.xlu0 %1804
      %1806 = vrot.lane.b32.xlu0 %v1437, 72
      %v1807 = vpop.permute.xlu0 %1806
      %v1809 = vsel %vm1249, %v1805, 0
      %v1812 = vsel %vm1249, %v1807, 0
      %1814 = vmatprep.subr.bf16.mxu0 0
      %1815 = vmatpush1.bf16.xpose.msra.mxu0 %v1812
      %1816 = vmatprep.subr.bf16.mxu0 0
      %1817 = vmatpush1.bf16.xpose.msra.mxu0 0
      %1818 = vmatprep.subr.bf16.mxu0 0
      %1819 = vmatpush1.bf16.xpose.msra.mxu0 0
      %1820 = vmatprep.subr.bf16.mxu0 0
      %1821 = vmatpush1.bf16.xpose.msra.mxu0 0
      %1822 = vmatprep.subr.bf16.mxu0 0
      %1823 = vmatpush1.bf16.xpose.msra.mxu0 0
      %1824 = vmatprep.subr.bf16.mxu0 0
      %1825 = vmatpush1.bf16.xpose.msra.mxu0 0
      %1826 = vmatprep.subr.bf16.mxu0 0
      %1827 = vmatpush1.bf16.xpose.msra.mxu0 0
      %1828 = vmatprep.subr.bf16.mxu0 0
      %1829 = vmatpush1.bf16.xpose.msra.mxu0 0
      %1830 = vmatprep.subr.bf16.mxu0 0
      %1831 = vmatpush1.bf16.xpose.msra.mxu0 0
      %1832 = vmatprep.subr.bf16.mxu0 0
      %1833 = vmatpush1.bf16.xpose.msra.mxu0 0
      %1834 = vmatprep.subr.bf16.mxu0 0
      %1835 = vmatpush1.bf16.xpose.msra.mxu0 0
      %1836 = vmatprep.subr.bf16.mxu0 0
      %1837 = vmatpush1.bf16.xpose.msra.mxu0 0
      %1838 = vmatprep.subr.bf16.mxu0 0
      %1839 = vmatpush1.bf16.xpose.msra.mxu0 0
      %1840 = vmatprep.subr.bf16.mxu0 0
      %1841 = vmatpush1.bf16.xpose.msra.mxu0 0
      %1842 = vmatprep.subr.bf16.mxu0 0
      %1843 = vmatpush1.bf16.xpose.msra.mxu0 0
      %1844 = vmatprep.subr.bf16.mxu0 0
      %1845 = vmatpush1.bf16.xpose.msra.mxu0 0
      %1846 = vmatprep.mubr.bf16.mxu0 0
      %1847 = vmatmul.mubr.bf16.gmra.mrb[0].mxu0 %v1809
      %v1848 = vpop.f32.mrb[0].mxu0
      %v1849 = vadd.f32 %v1442, %v1848
      %v1850 = vpop.f32.mrb[0].mxu0
      %v1851 = vpop.f32.mrb[0].mxu0
      %v1852 = vadd.f32 %v1442, %v1851
      %v1853 = vpop.f32.mrb[0].mxu0
      %1854 = vdwg.mxu0
      %v1855 = vsel %vm1493, %v1849, -inf
      %1856 = vmax.xlane.f32.xlu0 %v1855
      %v1857 = vpop.xlane.xlu0 %1856
      %v1858 = vsel %vm1493, %v1852, -inf
      %1859 = vmax.xlane.f32.xlu0 %v1858
      %v1860 = vpop.xlane.xlu0 %1859
      %v1861 = vsub.f32 %v1849, %v1857
      %v1862 = vsub.f32 %v1852, %v1860
      %v1863 = vmul.f32 %v1861, 1.442695
      %v1864 = vpow.pop %v1863
      %v1865 = vmul.f32 %v1862, 1.442695
      %v1866 = vpow.pop %v1865
      %v1867 = vsel %vm1493, %v1864, 0.0
      %1868 = vadd.xlane.f32.xlu0 %v1867
      %v1869 = vpop.xlane.xlu0 %1868
      %v1870 = vsel %vm1493, %v1866, 0.0
      %1871 = vadd.xlane.f32.xlu0 %v1870
      %v1872 = vpop.xlane.xlu0 %1871
      %v1873 = vrcp.pop %v1869
      %v1874 = vrcp.pop %v1872
      %v1875 = vmul.f32 %v1864, %v1873
      %v1876 = vmul.f32 %v1866, %v1874
      %v1877 = vpack.c.bf16 %v1876, %v1875
      %1878 = vrot.lane.b32.xlu0 %v1438, 104
      %v1879 = vpop.permute.xlu0 %1878
      %v1882 = vsel %vm1493, %v1877, 0
      %1884 = vmatprep.subr.bf16.mxu0 0
      %1885 = vmatpush1.bf16.msra.mxu0 %v1879
      %1886 = vmatprep.subr.bf16.mxu0 0
      %1887 = vmatpush1.bf16.msra.mxu0 0
      %1888 = vmatprep.subr.bf16.mxu0 0
      %1889 = vmatpush1.bf16.msra.mxu0 0
      %1890 = vmatprep.subr.bf16.mxu0 0
      %1891 = vmatpush1.bf16.msra.mxu0 0
      %1892 = vmatprep.subr.bf16.mxu0 0
      %1893 = vmatpush1.bf16.msra.mxu0 0
      %1894 = vmatprep.subr.bf16.mxu0 0
      %1895 = vmatpush1.bf16.msra.mxu0 0
      %1896 = vmatprep.subr.bf16.mxu0 0
      %1897 = vmatpush1.bf16.msra.mxu0 0
      %1898 = vmatprep.subr.bf16.mxu0 0
      %1899 = vmatpush1.bf16.msra.mxu0 0
      %1900 = vmatprep.subr.bf16.mxu0 0
      %1901 = vmatpush1.bf16.msra.mxu0 0
      %1902 = vmatprep.subr.bf16.mxu0 0
      %1903 = vmatpush1.bf16.msra.mxu0 0
      %1904 = vmatprep.subr.bf16.mxu0 0
      %1905 = vmatpush1.bf16.msra.mxu0 0
      %1906 = vmatprep.subr.bf16.mxu0 0
      %1907 = vmatpush1.bf16.msra.mxu0 0
      %1908 = vmatprep.subr.bf16.mxu0 0
      %1909 = vmatpush1.bf16.msra.mxu0 0
      %1910 = vmatprep.subr.bf16.mxu0 0
      %1911 = vmatpush1.bf16.msra.mxu0 0
      %1912 = vmatprep.subr.bf16.mxu0 0
      %1913 = vmatpush1.bf16.msra.mxu0 0
      %1914 = vmatprep.subr.bf16.mxu0 0
      %1915 = vmatpush1.bf16.msra.mxu0 0
      %1916 = vmatprep.mubr.bf16.mxu0 0
      %1917 = vmatmul.mubr.bf16.gmra.mrb[0].mxu0 %v1882
      %v1918 = vpop.f32.mrb[0].mxu0
      %v1919 = vadd.f32 0.0, %v1918
      %v1920 = vpop.f32.mrb[0].mxu0
      %v1921 = vpop.f32.mrb[0].mxu0
      %v1922 = vadd.f32 0.0, %v1921
      %v1923 = vpop.f32.mrb[0].mxu0
      %1924 = vdwg.mxu0
      %1927 = vrot.lane.b32.xlu0 %v1677, 8
      %v1928 = vpop.permute.xlu0 %1927
      %1929 = vrot.lane.b32.xlu0 %v1680, 8
      %v1930 = vpop.permute.xlu0 %1929
      %1935 = vrot.lane.b32.xlu0 %v1798, 16
      %v1936 = vpop.permute.xlu0 %1935
      %1937 = vrot.lane.b32.xlu0 %v1801, 16
      %v1938 = vpop.permute.xlu0 %1937
      %1943 = vrot.lane.b32.xlu0 %v1919, 24
      %v1944 = vpop.permute.xlu0 %1943
      %1945 = vrot.lane.b32.xlu0 %v1922, 24
      %v1946 = vpop.permute.xlu0 %1945
      %v1949 = vsel %vm1249, %v1555, %v1928
      %v1950 = vsel %vm1249, %v1558, %v1930
      %v1951 = vsel %vm1493, %v1949, %v1936
      %v1952 = vsel %vm1493, %v1950, %v1938
      %vm1953 = vcmask 195584
      %v1954 = vsel %vm1953, %v1951, %v1944
      %v1955 = vsel %vm1953, %v1952, %v1946
      %v1956 = vpack.c.bf16 %v1955, %v1954
      %v1957 = vld [vmem:[%s21] sm:$0xf]
      %v1958 = vld [vmem:[%s21 + $0x4] sm:$0xf]
      %v1959 = vld [vmem:[%s21 + $0x8] sm:$0xf]
      %v1960 = vld [vmem:[%s21 + $0xc] sm:$0xf]
      %v1961 = vld [vmem:[%s23] sm:$0x1]
      %v1963 = vlaneseq
      %v1964 = vshrl.u32 %v1963, 7
      %v1965 = vsub.s32 0, %v1964
      %v1966 = vrot.slane %v1961, %v1965
      %v1972 = vunpack.c.l.b16 %v1957
      %v1973 = vunpack.c.l.b16 %v1958
      %v1974 = vunpack.c.l.b16 %v1959
      %v1975 = vunpack.c.l.b16 %v1960
      %v1976 = vpack.c.b16 %v1973, %v1972
      %v1977 = vpack.c.b16 %v1975, %v1974
      %v1981 = vsel %vm1324, %v1956, 0
      %1983 = vmatprep.subr.bf16.mxu0 0
      %1984 = vmatpush1.bf16.msra.mxu0 %v1976
      %1985 = vmatprep.subr.bf16.mxu0 0
      %1986 = vmatpush1.bf16.msra.mxu0 %v1977
      %1987 = vmatprep.subr.bf16.mxu0 0
      %1988 = vmatpush1.bf16.msra.mxu0 0
      %1989 = vmatprep.subr.bf16.mxu0 0
      %1990 = vmatpush1.bf16.msra.mxu0 0
      %1991 = vmatprep.subr.bf16.mxu0 0
      %1992 = vmatpush1.bf16.msra.mxu0 0
      %1993 = vmatprep.subr.bf16.mxu0 0
      %1994 = vmatpush1.bf16.msra.mxu0 0
      %1995 = vmatprep.subr.bf16.mxu0 0
      %1996 = vmatpush1.bf16.msra.mxu0 0
      %1997 = vmatprep.subr.bf16.mxu0 0
      %1998 = vmatpush1.bf16.msra.mxu0 0
      %1999 = vmatprep.subr.bf16.mxu0 0
      %2000 = vmatpush1.bf16.msra.mxu0 0
      %2001 = vmatprep.subr.bf16.mxu0 0
      %2002 = vmatpush1.bf16.msra.mxu0 0
      %2003 = vmatprep.subr.bf16.mxu0 0
      %2004 = vmatpush1.bf16.msra.mxu0 0
      %2005 = vmatprep.subr.bf16.mxu0 0
      %2006 = vmatpush1.bf16.msra.mxu0 0
      %2007 = vmatprep.subr.bf16.mxu0 0
      %2008 = vmatpush1.bf16.msra.mxu0 0
      %2009 = vmatprep.subr.bf16.mxu0 0
      %2010 = vmatpush1.bf16.msra.mxu0 0
      %2011 = vmatprep.subr.bf16.mxu0 0
      %2012 = vmatpush1.bf16.msra.mxu0 0
      %2013 = vmatprep.subr.bf16.mxu0 0
      %2014 = vmatpush1.bf16.msra.mxu0 0
      %2015 = vmatprep.mubr.bf16.mxu0 0
      %2016 = vmatmul.mubr.bf16.gmra.mrb[0].mxu0 %v1981
      %v2017 = vpop.f32.mrb[0].mxu0
      %v2018 = vadd.f32 %v1966, %v2017
      %v2019 = vpop.f32.mrb[0].mxu0
      %v2020 = vpop.f32.mrb[0].mxu0
      %v2021 = vadd.f32 %v1966, %v2020
      %v2022 = vpop.f32.mrb[0].mxu0
      %2023 = vdwg.mxu0
      %v2024 = vadd.f32 %v2018, %v1292
      %v2025 = vadd.f32 %v2021, %v1295
      %v2026 = vsel %vm1324, %v2024, 0.0
      %2027 = vadd.xlane.f32.xlu0 %v2026
      %v2028 = vpop.xlane.xlu0 %2027
      %v2029 = vsel %vm1324, %v2025, 0.0
      %2030 = vadd.xlane.f32.xlu0 %v2029
      %v2031 = vpop.xlane.xlu0 %2030
      %v2032 = vrcp.pop 32.0
      %v2033 = vmul.f32 %v2028, %v2032
      %v2034 = vmul.f32 %v2031, %v2032
      %v2035 = vsub.f32 %v2024, %v2033
      %v2036 = vsub.f32 %v2025, %v2034
      %v2037 = vmul.f32 %v2035, %v2035
      %v2038 = vmul.f32 %v2036, %v2036
      %v2039 = vsel %vm1324, %v2037, 0.0
      %2040 = vadd.xlane.f32.xlu0 %v2039
      %v2041 = vpop.xlane.xlu0 %2040
      %v2042 = vsel %vm1324, %v2038, 0.0
      %2043 = vadd.xlane.f32.xlu0 %v2042
      %v2044 = vpop.xlane.xlu0 %2043
      %v2045 = vmul.f32 %v2041, %v2032
      %v2046 = vmul.f32 %v2044, %v2032
      %v2047 = vadd.f32 %v2045, 1e-05
      %v2048 = vadd.f32 %v2046, 1e-05
      %v2049 = vrsqrt.pop %v2047
      %v2050 = vrsqrt.pop %v2048
      %v2051 = vmul.f32 %v2035, %v2049
      %v2052 = vmul.f32 %v2036, %v2050
      %v2053 = vld [vmem:[%s25] sm:$0x1]
      %v2055 = vlaneseq
      %v2056 = vshrl.u32 %v2055, 7
      %v2057 = vsub.s32 0, %v2056
      %v2058 = vrot.slane %v2053, %v2057
      %v2060 = vmul.f32 %v2051, %v2058
      %v2061 = vmul.f32 %v2052, %v2058
      %v2062 = vld [vmem:[%s27] sm:$0x1]
      %v2064 = vlaneseq
      %v2065 = vshrl.u32 %v2064, 7
      %v2066 = vsub.s32 0, %v2065
      %v2067 = vrot.slane %v2062, %v2066
      %v2069 = vadd.f32 %v2060, %v2067
      %v2070 = vadd.f32 %v2061, %v2067
      %v2071 = vpack.c.bf16 %v2070, %v2069
      %v2072 = vld [vmem:[%s29] sm:$0xf]
      %v2073 = vld [vmem:[%s29 + $0x4] sm:$0xf]
      %v2074 = vld [vmem:[%s29 + $0x8] sm:$0xf]
      %v2075 = vld [vmem:[%s29 + $0xc] sm:$0xf]
      %v2076 = vld [vmem:[%s31] sm:$0x1]
      %v2078 = vlaneseq
      %v2079 = vshrl.u32 %v2078, 7
      %v2080 = vsub.s32 0, %v2079
      %v2081 = vrot.slane %v2076, %v2080
      %v2087 = vunpack.c.l.b16 %v2072
      %v2088 = vunpack.c.l.b16 %v2073
      %v2089 = vunpack.c.l.b16 %v2074
      %v2090 = vunpack.c.l.b16 %v2075
      %v2091 = vpack.c.b16 %v2088, %v2087
      %v2092 = vpack.c.b16 %v2090, %v2089
      %v2096 = vsel %vm1324, %v2071, 0
      %2098 = vmatprep.subr.bf16.mxu0 0
      %2099 = vmatpush1.bf16.msra.mxu0 %v2091
      %2100 = vmatprep.subr.bf16.mxu0 0
      %2101 = vmatpush1.bf16.msra.mxu0 %v2092
      %2102 = vmatprep.subr.bf16.mxu0 0
      %2103 = vmatpush1.bf16.msra.mxu0 0
      %2104 = vmatprep.subr.bf16.mxu0 0
      %2105 = vmatpush1.bf16.msra.mxu0 0
      %2106 = vmatprep.subr.bf16.mxu0 0
      %2107 = vmatpush1.bf16.msra.mxu0 0
      %2108 = vmatprep.subr.bf16.mxu0 0
      %2109 = vmatpush1.bf16.msra.mxu0 0
      %2110 = vmatprep.subr.bf16.mxu0 0
      %2111 = vmatpush1.bf16.msra.mxu0 0
      %2112 = vmatprep.subr.bf16.mxu0 0
      %2113 = vmatpush1.bf16.msra.mxu0 0
      %2114 = vmatprep.subr.bf16.mxu0 0
      %2115 = vmatpush1.bf16.msra.mxu0 0
      %2116 = vmatprep.subr.bf16.mxu0 0
      %2117 = vmatpush1.bf16.msra.mxu0 0
      %2118 = vmatprep.subr.bf16.mxu0 0
      %2119 = vmatpush1.bf16.msra.mxu0 0
      %2120 = vmatprep.subr.bf16.mxu0 0
      %2121 = vmatpush1.bf16.msra.mxu0 0
      %2122 = vmatprep.subr.bf16.mxu0 0
      %2123 = vmatpush1.bf16.msra.mxu0 0
      %2124 = vmatprep.subr.bf16.mxu0 0
      %2125 = vmatpush1.bf16.msra.mxu0 0
      %2126 = vmatprep.subr.bf16.mxu0 0
      %2127 = vmatpush1.bf16.msra.mxu0 0
      %2128 = vmatprep.subr.bf16.mxu0 0
      %2129 = vmatpush1.bf16.msra.mxu0 0
      %2130 = vmatprep.mubr.bf16.mxu0 0
      %2131 = vmatmul.mubr.bf16.gmra.mrb[0].mxu0 %v2096
      %v2132 = vpop.f32.mrb[0].mxu0
      %v2133 = vadd.f32 %v2081, %v2132
      %v2134 = vpop.f32.mrb[0].mxu0
      %v2135 = vpop.f32.mrb[0].mxu0
      %v2136 = vadd.f32 %v2081, %v2135
      %v2137 = vpop.f32.mrb[0].mxu0
      %2138 = vdwg.mxu0
      %v2139 = vmax.f32 %v2133, 0.0
      %v2140 = vmax.f32 %v2136, 0.0
      %v2141 = vpack.c.bf16 %v2140, %v2139
      %v2142 = vld [vmem:[%s33] sm:$0xf]
      %v2143 = vld [vmem:[%s33 + $0x4] sm:$0xf]
      %v2144 = vld [vmem:[%s33 + $0x8] sm:$0xf]
      %v2145 = vld [vmem:[%s33 + $0xc] sm:$0xf]
      %v2146 = vld [vmem:[%s35] sm:$0x1]
      %v2148 = vlaneseq
      %v2149 = vshrl.u32 %v2148, 7
      %v2150 = vsub.s32 0, %v2149
      %v2151 = vrot.slane %v2146, %v2150
      %v2157 = vunpack.c.l.b16 %v2142
      %v2158 = vunpack.c.l.b16 %v2143
      %v2159 = vunpack.c.l.b16 %v2144
      %v2160 = vunpack.c.l.b16 %v2145
      %v2161 = vpack.c.b16 %v2158, %v2157
      %v2162 = vpack.c.b16 %v2160, %v2159
      %v2166 = vsel %vm1324, %v2141, 0
      %2168 = vmatprep.subr.bf16.mxu0 0
      %2169 = vmatpush1.bf16.msra.mxu0 %v2161
      %2170 = vmatprep.subr.bf16.mxu0 0
      %2171 = vmatpush1.bf16.msra.mxu0 %v2162
      %2172 = vmatprep.subr.bf16.mxu0 0
      %2173 = vmatpush1.bf16.msra.mxu0 0
      %2174 = vmatprep.subr.bf16.mxu0 0
      %2175 = vmatpush1.bf16.msra.mxu0 0
      %2176 = vmatprep.subr.bf16.mxu0 0
      %2177 = vmatpush1.bf16.msra.mxu0 0
      %2178 = vmatprep.subr.bf16.mxu0 0
      %2179 = vmatpush1.bf16.msra.mxu0 0
      %2180 = vmatprep.subr.bf16.mxu0 0
      %2181 = vmatpush1.bf16.msra.mxu0 0
      %2182 = vmatprep.subr.bf16.mxu0 0
      %2183 = vmatpush1.bf16.msra.mxu0 0
      %2184 = vmatprep.subr.bf16.mxu0 0
      %2185 = vmatpush1.bf16.msra.mxu0 0
      %2186 = vmatprep.subr.bf16.mxu0 0
      %2187 = vmatpush1.bf16.msra.mxu0 0
      %2188 = vmatprep.subr.bf16.mxu0 0
      %2189 = vmatpush1.bf16.msra.mxu0 0
      %2190 = vmatprep.subr.bf16.mxu0 0
      %2191 = vmatpush1.bf16.msra.mxu0 0
      %2192 = vmatprep.subr.bf16.mxu0 0
      %2193 = vmatpush1.bf16.msra.mxu0 0
      %2194 = vmatprep.subr.bf16.mxu0 0
      %2195 = vmatpush1.bf16.msra.mxu0 0
      %2196 = vmatprep.subr.bf16.mxu0 0
      %2197 = vmatpush1.bf16.msra.mxu0 0
      %2198 = vmatprep.subr.bf16.mxu0 0
      %2199 = vmatpush1.bf16.msra.mxu0 0
      %2200 = vmatprep.mubr.bf16.mxu0 0
      %2201 = vmatmul.mubr.bf16.gmra.mrb[0].mxu0 %v2166
      %v2202 = vpop.f32.mrb[0].mxu0
      %v2203 = vadd.f32 %v2151, %v2202
      %v2204 = vpop.f32.mrb[0].mxu0
      %v2205 = vpop.f32.mrb[0].mxu0
      %v2206 = vadd.f32 %v2151, %v2205
      %v2207 = vpop.f32.mrb[0].mxu0
      %2208 = vdwg.mxu0
      %v2209 = vadd.f32 %v2203, %v2069
      %v2210 = vadd.f32 %v2206, %v2070
      %v2211 = vsel %vm1324, %v2209, 0.0
      %2212 = vadd.xlane.f32.xlu0 %v2211
      %v2213 = vpop.xlane.xlu0 %2212
      %v2214 = vsel %vm1324, %v2210, 0.0
      %2215 = vadd.xlane.f32.xlu0 %v2214
      %v2216 = vpop.xlane.xlu0 %2215
      %v2217 = vmul.f32 %v2213, %v2032
      %v2218 = vmul.f32 %v2216, %v2032
      %v2219 = vsub.f32 %v2209, %v2217
      %v2220 = vsub.f32 %v2210, %v2218
      %v2221 = vmul.f32 %v2219, %v2219
      %v2222 = vmul.f32 %v2220, %v2220
      %v2223 = vsel %vm1324, %v2221, 0.0
      %2224 = vadd.xlane.f32.xlu0 %v2223
      %v2225 = vpop.xlane.xlu0 %2224
      %v2226 = vsel %vm1324, %v2222, 0.0
      %2227 = vadd.xlane.f32.xlu0 %v2226
      %v2228 = vpop.xlane.xlu0 %2227
      %v2229 = vmul.f32 %v2225, %v2032
      %v2230 = vmul.f32 %v2228, %v2032
      %v2231 = vadd.f32 %v2229, 1e-05
      %v2232 = vadd.f32 %v2230, 1e-05
      %v2233 = vrsqrt.pop %v2231
      %v2234 = vrsqrt.pop %v2232
      %v2235 = vmul.f32 %v2219, %v2233
      %v2236 = vmul.f32 %v2220, %v2234
      %v2237 = vld [vmem:[%s37] sm:$0x1]
      %v2239 = vlaneseq
      %v2240 = vshrl.u32 %v2239, 7
      %v2241 = vsub.s32 0, %v2240
      %v2242 = vrot.slane %v2237, %v2241
      %v2244 = vmul.f32 %v2235, %v2242
      %v2245 = vmul.f32 %v2236, %v2242
      %v2246 = vld [vmem:[%s39] sm:$0x1]
      %v2248 = vlaneseq
      %v2249 = vshrl.u32 %v2248, 7
      %v2250 = vsub.s32 0, %v2249
      %v2251 = vrot.slane %v2246, %v2250
      %v2253 = vadd.f32 %v2244, %v2251
      %v2254 = vadd.f32 %v2245, %v2251
      %v2255 = vadd.f32 %v2253, %v1237
      %v2256 = vadd.f32 %v2254, %v1238
      %v2257 = vpack.c.bf16 %v2256, %v2255
      %v2258 = vld [vmem:[%s41] sm:$0xf]
      %v2259 = vld [vmem:[%s41 + $0x4] sm:$0xf]
      %v2260 = vld [vmem:[%s41 + $0x8] sm:$0xf]
      %v2261 = vld [vmem:[%s41 + $0xc] sm:$0xf]
      %v2262 = vld [vmem:[%s43] sm:$0x1]
      %v2264 = vlaneseq
      %v2265 = vshrl.u32 %v2264, 7
      %v2266 = vsub.s32 0, %v2265
      %v2267 = vrot.slane %v2262, %v2266
      %v2273 = vunpack.c.l.b16 %v2258
      %v2274 = vunpack.c.l.b16 %v2259
      %v2275 = vunpack.c.l.b16 %v2260
      %v2276 = vunpack.c.l.b16 %v2261
      %v2277 = vpack.c.b16 %v2274, %v2273
      %v2278 = vpack.c.b16 %v2276, %v2275
      %v2282 = vsel %vm1324, %v2257, 0
      %2284 = vmatprep.subr.bf16.mxu0 0
      %2285 = vmatpush1.bf16.msra.mxu0 %v2277
      %2286 = vmatprep.subr.bf16.mxu0 0
      %2287 = vmatpush1.bf16.msra.mxu0 %v2278
      %2288 = vmatprep.subr.bf16.mxu0 0
      %2289 = vmatpush1.bf16.msra.mxu0 0
      %2290 = vmatprep.subr.bf16.mxu0 0
      %2291 = vmatpush1.bf16.msra.mxu0 0
      %2292 = vmatprep.subr.bf16.mxu0 0
      %2293 = vmatpush1.bf16.msra.mxu0 0
      %2294 = vmatprep.subr.bf16.mxu0 0
      %2295 = vmatpush1.bf16.msra.mxu0 0
      %2296 = vmatprep.subr.bf16.mxu0 0
      %2297 = vmatpush1.bf16.msra.mxu0 0
      %2298 = vmatprep.subr.bf16.mxu0 0
      %2299 = vmatpush1.bf16.msra.mxu0 0
      %2300 = vmatprep.subr.bf16.mxu0 0
      %2301 = vmatpush1.bf16.msra.mxu0 0
      %2302 = vmatprep.subr.bf16.mxu0 0
      %2303 = vmatpush1.bf16.msra.mxu0 0
      %2304 = vmatprep.subr.bf16.mxu0 0
      %2305 = vmatpush1.bf16.msra.mxu0 0
      %2306 = vmatprep.subr.bf16.mxu0 0
      %2307 = vmatpush1.bf16.msra.mxu0 0
      %2308 = vmatprep.subr.bf16.mxu0 0
      %2309 = vmatpush1.bf16.msra.mxu0 0
      %2310 = vmatprep.subr.bf16.mxu0 0
      %2311 = vmatpush1.bf16.msra.mxu0 0
      %2312 = vmatprep.subr.bf16.mxu0 0
      %2313 = vmatpush1.bf16.msra.mxu0 0
      %2314 = vmatprep.subr.bf16.mxu0 0
      %2315 = vmatpush1.bf16.msra.mxu0 0
      %2316 = vmatprep.mubr.bf16.mxu0 0
      %2317 = vmatmul.mubr.bf16.gmra.mrb[0].mxu0 %v2282
      %v2318 = vpop.f32.mrb[0].mxu0
      %v2319 = vadd.f32 %v2267, %v2318
      %v2320 = vpop.f32.mrb[0].mxu0
      %v2321 = vpop.f32.mrb[0].mxu0
      %v2322 = vadd.f32 %v2267, %v2321
      %v2323 = vpop.f32.mrb[0].mxu0
      %2324 = vdwg.mxu0
      %v2325 = vpack.c.bf16 %v2254, %v2253
      %v2326 = vld [vmem:[%s45] sm:$0xf]
      %v2327 = vld [vmem:[%s45 + $0x4] sm:$0xf]
      %v2328 = vld [vmem:[%s45 + $0x8] sm:$0xf]
      %v2329 = vld [vmem:[%s45 + $0xc] sm:$0xf]
      %v2330 = vld [vmem:[%s47] sm:$0x1]
      %v2332 = vlaneseq
      %v2333 = vshrl.u32 %v2332, 7
      %v2334 = vsub.s32 0, %v2333
      %v2335 = vrot.slane %v2330, %v2334
      %v2341 = vunpack.c.l.b16 %v2326
      %v2342 = vunpack.c.l.b16 %v2327
      %v2343 = vunpack.c.l.b16 %v2328
      %v2344 = vunpack.c.l.b16 %v2329
      %v2345 = vpack.c.b16 %v2342, %v2341
      %v2346 = vpack.c.b16 %v2344, %v2343
      %v2350 = vsel %vm1324, %v2325, 0
      %2352 = vmatprep.subr.bf16.mxu0 0
      %2353 = vmatpush1.bf16.msra.mxu0 %v2345
      %2354 = vmatprep.subr.bf16.mxu0 0
      %2355 = vmatpush1.bf16.msra.mxu0 %v2346
      %2356 = vmatprep.subr.bf16.mxu0 0
      %2357 = vmatpush1.bf16.msra.mxu0 0
      %2358 = vmatprep.subr.bf16.mxu0 0
      %2359 = vmatpush1.bf16.msra.mxu0 0
      %2360 = vmatprep.subr.bf16.mxu0 0
      %2361 = vmatpush1.bf16.msra.mxu0 0
      %2362 = vmatprep.subr.bf16.mxu0 0
      %2363 = vmatpush1.bf16.msra.mxu0 0
      %2364 = vmatprep.subr.bf16.mxu0 0
      %2365 = vmatpush1.bf16.msra.mxu0 0
      %2366 = vmatprep.subr.bf16.mxu0 0
      %2367 = vmatpush1.bf16.msra.mxu0 0
      %2368 = vmatprep.subr.bf16.mxu0 0
      %2369 = vmatpush1.bf16.msra.mxu0 0
      %2370 = vmatprep.subr.bf16.mxu0 0
      %2371 = vmatpush1.bf16.msra.mxu0 0
      %2372 = vmatprep.subr.bf16.mxu0 0
      %2373 = vmatpush1.bf16.msra.mxu0 0
      %2374 = vmatprep.subr.bf16.mxu0 0
      %2375 = vmatpush1.bf16.msra.mxu0 0
      %2376 = vmatprep.subr.bf16.mxu0 0
      %2377 = vmatpush1.bf16.msra.mxu0 0
      %2378 = vmatprep.subr.bf16.mxu0 0
      %2379 = vmatpush1.bf16.msra.mxu0 0
      %2380 = vmatprep.subr.bf16.mxu0 0
      %2381 = vmatpush1.bf16.msra.mxu0 0
      %2382 = vmatprep.subr.bf16.mxu0 0
      %2383 = vmatpush1.bf16.msra.mxu0 0
      %2384 = vmatprep.mubr.bf16.mxu0 0
      %2385 = vmatmul.mubr.bf16.gmra.mrb[0].mxu0 %v2350
      %v2386 = vpop.f32.mrb[0].mxu0
      %v2387 = vadd.f32 %v2335, %v2386
      %v2388 = vpop.f32.mrb[0].mxu0
      %v2389 = vpop.f32.mrb[0].mxu0
      %v2390 = vadd.f32 %v2335, %v2389
      %v2391 = vpop.f32.mrb[0].mxu0
      %2392 = vdwg.mxu0
      %v2393 = vpack.c.bf16 %v2322, %v2319
      %v2394 = vpack.c.bf16 %v2390, %v2387
      %2396 = vrot.lane.b32.xlu0 %v2393, 96
      %v2397 = vpop.permute.xlu0 %2396
      %v2399 = vsel %vm1249, %v2393, 0
      %v2402 = vsel %vm1249, %v2397, 0
      %2404 = vmatprep.subr.bf16.mxu0 0
      %2405 = vmatpush1.bf16.xpose.msra.mxu0 %v2402
      %2406 = vmatprep.subr.bf16.mxu0 0
      %2407 = vmatpush1.bf16.xpose.msra.mxu0 0
      %2408 = vmatprep.subr.bf16.mxu0 0
      %2409 = vmatpush1.bf16.xpose.msra.mxu0 0
      %2410 = vmatprep.subr.bf16.mxu0 0
      %2411 = vmatpush1.bf16.xpose.msra.mxu0 0
      %2412 = vmatprep.subr.bf16.mxu0 0
      %2413 = vmatpush1.bf16.xpose.msra.mxu0 0
      %2414 = vmatprep.subr.bf16.mxu0 0
      %2415 = vmatpush1.bf16.xpose.msra.mxu0 0
      %2416 = vmatprep.subr.bf16.mxu0 0
      %2417 = vmatpush1.bf16.xpose.msra.mxu0 0
      %2418 = vmatprep.subr.bf16.mxu0 0
      %2419 = vmatpush1.bf16.xpose.msra.mxu0 0
      %2420 = vmatprep.subr.bf16.mxu0 0
      %2421 = vmatpush1.bf16.xpose.msra.mxu0 0
      %2422 = vmatprep.subr.bf16.mxu0 0
      %2423 = vmatpush1.bf16.xpose.msra.mxu0 0
      %2424 = vmatprep.subr.bf16.mxu0 0
      %2425 = vmatpush1.bf16.xpose.msra.mxu0 0
      %2426 = vmatprep.subr.bf16.mxu0 0
      %2427 = vmatpush1.bf16.xpose.msra.mxu0 0
      %2428 = vmatprep.subr.bf16.mxu0 0
      %2429 = vmatpush1.bf16.xpose.msra.mxu0 0
      %2430 = vmatprep.subr.bf16.mxu0 0
      %2431 = vmatpush1.bf16.xpose.msra.mxu0 0
      %2432 = vmatprep.subr.bf16.mxu0 0
      %2433 = vmatpush1.bf16.xpose.msra.mxu0 0
      %2434 = vmatprep.subr.bf16.mxu0 0
      %2435 = vmatpush1.bf16.xpose.msra.mxu0 0
      %2436 = vmatprep.mubr.bf16.mxu0 0
      %2437 = vmatmul.mubr.bf16.gmra.mrb[0].mxu0 %v2399
      %v2438 = vpop.f32.mrb[0].mxu0
      %v2439 = vadd.f32 %v1442, %v2438
      %v2440 = vpop.f32.mrb[0].mxu0
      %v2441 = vpop.f32.mrb[0].mxu0
      %v2442 = vadd.f32 %v1442, %v2441
      %v2443 = vpop.f32.mrb[0].mxu0
      %2444 = vdwg.mxu0
      %v2445 = vsel %vm1493, %v2439, -inf
      %2446 = vmax.xlane.f32.xlu0 %v2445
      %v2447 = vpop.xlane.xlu0 %2446
      %v2448 = vsel %vm1493, %v2442, -inf
      %2449 = vmax.xlane.f32.xlu0 %v2448
      %v2450 = vpop.xlane.xlu0 %2449
      %v2451 = vsub.f32 %v2439, %v2447
      %v2452 = vsub.f32 %v2442, %v2450
      %v2453 = vmul.f32 %v2451, 1.442695
      %v2454 = vpow.pop %v2453
      %v2455 = vmul.f32 %v2452, 1.442695
      %v2456 = vpow.pop %v2455
      %v2457 = vsel %vm1493, %v2454, 0.0
      %2458 = vadd.xlane.f32.xlu0 %v2457
      %v2459 = vpop.xlane.xlu0 %2458
      %v2460 = vsel %vm1493, %v2456, 0.0
      %2461 = vadd.xlane.f32.xlu0 %v2460
      %v2462 = vpop.xlane.xlu0 %2461
      %v2463 = vrcp.pop %v2459
      %v2464 = vrcp.pop %v2462
      %v2465 = vmul.f32 %v2454, %v2463
      %v2466 = vmul.f32 %v2456, %v2464
      %v2467 = vpack.c.bf16 %v2466, %v2465
      %v2469 = vsel %vm1493, %v2467, 0
      %2471 = vmatprep.subr.bf16.mxu0 0
      %2472 = vmatpush1.bf16.msra.mxu0 %v2394
      %2473 = vmatprep.subr.bf16.mxu0 0
      %2474 = vmatpush1.bf16.msra.mxu0 0
      %2475 = vmatprep.subr.bf16.mxu0 0
      %2476 = vmatpush1.bf16.msra.mxu0 0
      %2477 = vmatprep.subr.bf16.mxu0 0
      %2478 = vmatpush1.bf16.msra.mxu0 0
      %2479 = vmatprep.subr.bf16.mxu0 0
      %2480 = vmatpush1.bf16.msra.mxu0 0
      %2481 = vmatprep.subr.bf16.mxu0 0
      %2482 = vmatpush1.bf16.msra.mxu0 0
      %2483 = vmatprep.subr.bf16.mxu0 0
      %2484 = vmatpush1.bf16.msra.mxu0 0
      %2485 = vmatprep.subr.bf16.mxu0 0
      %2486 = vmatpush1.bf16.msra.mxu0 0
      %2487 = vmatprep.subr.bf16.mxu0 0
      %2488 = vmatpush1.bf16.msra.mxu0 0
      %2489 = vmatprep.subr.bf16.mxu0 0
      %2490 = vmatpush1.bf16.msra.mxu0 0
      %2491 = vmatprep.subr.bf16.mxu0 0
      %2492 = vmatpush1.bf16.msra.mxu0 0
      %2493 = vmatprep.subr.bf16.mxu0 0
      %2494 = vmatpush1.bf16.msra.mxu0 0
      %2495 = vmatprep.subr.bf16.mxu0 0
      %2496 = vmatpush1.bf16.msra.mxu0 0
      %2497 = vmatprep.subr.bf16.mxu0 0
      %2498 = vmatpush1.bf16.msra.mxu0 0
      %2499 = vmatprep.subr.bf16.mxu0 0
      %2500 = vmatpush1.bf16.msra.mxu0 0
      %2501 = vmatprep.subr.bf16.mxu0 0
      %2502 = vmatpush1.bf16.msra.mxu0 0
      %2503 = vmatprep.mubr.bf16.mxu0 0
      %2504 = vmatmul.mubr.bf16.gmra.mrb[0].mxu0 %v2469
      %v2505 = vpop.f32.mrb[0].mxu0
      %v2506 = vadd.f32 0.0, %v2505
      %v2507 = vpop.f32.mrb[0].mxu0
      %v2508 = vpop.f32.mrb[0].mxu0
      %v2509 = vadd.f32 0.0, %v2508
      %v2510 = vpop.f32.mrb[0].mxu0
      %2511 = vdwg.mxu0
      %2512 = vrot.lane.b32.xlu0 %v2393, 120
      %v2513 = vpop.permute.xlu0 %2512
      %2514 = vrot.lane.b32.xlu0 %v2393, 88
      %v2515 = vpop.permute.xlu0 %2514
      %v2517 = vsel %vm1249, %v2513, 0
      %v2520 = vsel %vm1249, %v2515, 0
      %2522 = vmatprep.subr.bf16.mxu0 0
      %2523 = vmatpush1.bf16.xpose.msra.mxu0 %v2520
      %2524 = vmatprep.subr.bf16.mxu0 0
      %2525 = vmatpush1.bf16.xpose.msra.mxu0 0
      %2526 = vmatprep.subr.bf16.mxu0 0
      %2527 = vmatpush1.bf16.xpose.msra.mxu0 0
      %2528 = vmatprep.subr.bf16.mxu0 0
      %2529 = vmatpush1.bf16.xpose.msra.mxu0 0
      %2530 = vmatprep.subr.bf16.mxu0 0
      %2531 = vmatpush1.bf16.xpose.msra.mxu0 0
      %2532 = vmatprep.subr.bf16.mxu0 0
      %2533 = vmatpush1.bf16.xpose.msra.mxu0 0
      %2534 = vmatprep.subr.bf16.mxu0 0
      %2535 = vmatpush1.bf16.xpose.msra.mxu0 0
      %2536 = vmatprep.subr.bf16.mxu0 0
      %2537 = vmatpush1.bf16.xpose.msra.mxu0 0
      %2538 = vmatprep.subr.bf16.mxu0 0
      %2539 = vmatpush1.bf16.xpose.msra.mxu0 0
      %2540 = vmatprep.subr.bf16.mxu0 0
      %2541 = vmatpush1.bf16.xpose.msra.mxu0 0
      %2542 = vmatprep.subr.bf16.mxu0 0
      %2543 = vmatpush1.bf16.xpose.msra.mxu0 0
      %2544 = vmatprep.subr.bf16.mxu0 0
      %2545 = vmatpush1.bf16.xpose.msra.mxu0 0
      %2546 = vmatprep.subr.bf16.mxu0 0
      %2547 = vmatpush1.bf16.xpose.msra.mxu0 0
      %2548 = vmatprep.subr.bf16.mxu0 0
      %2549 = vmatpush1.bf16.xpose.msra.mxu0 0
      %2550 = vmatprep.subr.bf16.mxu0 0
      %2551 = vmatpush1.bf16.xpose.msra.mxu0 0
      %2552 = vmatprep.subr.bf16.mxu0 0
      %2553 = vmatpush1.bf16.xpose.msra.mxu0 0
      %2554 = vmatprep.mubr.bf16.mxu0 0
      %2555 = vmatmul.mubr.bf16.gmra.mrb[0].mxu0 %v2517
      %v2556 = vpop.f32.mrb[0].mxu0
      %v2557 = vadd.f32 %v1442, %v2556
      %v2558 = vpop.f32.mrb[0].mxu0
      %v2559 = vpop.f32.mrb[0].mxu0
      %v2560 = vadd.f32 %v1442, %v2559
      %v2561 = vpop.f32.mrb[0].mxu0
      %2562 = vdwg.mxu0
      %v2563 = vsel %vm1493, %v2557, -inf
      %2564 = vmax.xlane.f32.xlu0 %v2563
      %v2565 = vpop.xlane.xlu0 %2564
      %v2566 = vsel %vm1493, %v2560, -inf
      %2567 = vmax.xlane.f32.xlu0 %v2566
      %v2568 = vpop.xlane.xlu0 %2567
      %v2569 = vsub.f32 %v2557, %v2565
      %v2570 = vsub.f32 %v2560, %v2568
      %v2571 = vmul.f32 %v2569, 1.442695
      %v2572 = vpow.pop %v2571
      %v2573 = vmul.f32 %v2570, 1.442695
      %v2574 = vpow.pop %v2573
      %v2575 = vsel %vm1493, %v2572, 0.0
      %2576 = vadd.xlane.f32.xlu0 %v2575
      %v2577 = vpop.xlane.xlu0 %2576
      %v2578 = vsel %vm1493, %v2574, 0.0
      %2579 = vadd.xlane.f32.xlu0 %v2578
      %v2580 = vpop.xlane.xlu0 %2579
      %v2581 = vrcp.pop %v2577
      %v2582 = vrcp.pop %v2580
      %v2583 = vmul.f32 %v2572, %v2581
      %v2584 = vmul.f32 %v2574, %v2582
      %v2585 = vpack.c.bf16 %v2584, %v2583
      %2587 = vrot.lane.b32.xlu0 %v2394, 120
      %v2588 = vpop.permute.xlu0 %2587
      %v2591 = vsel %vm1493, %v2585, 0
      %2593 = vmatprep.subr.bf16.mxu0 0
      %2594 = vmatpush1.bf16.msra.mxu0 %v2588
      %2595 = vmatprep.subr.bf16.mxu0 0
      %2596 = vmatpush1.bf16.msra.mxu0 0
      %2597 = vmatprep.subr.bf16.mxu0 0
      %2598 = vmatpush1.bf16.msra.mxu0 0
      %2599 = vmatprep.subr.bf16.mxu0 0
      %2600 = vmatpush1.bf16.msra.mxu0 0
      %2601 = vmatprep.subr.bf16.mxu0 0
      %2602 = vmatpush1.bf16.msra.mxu0 0
      %2603 = vmatprep.subr.bf16.mxu0 0
      %2604 = vmatpush1.bf16.msra.mxu0 0
      %2605 = vmatprep.subr.bf16.mxu0 0
      %2606 = vmatpush1.bf16.msra.mxu0 0
      %2607 = vmatprep.subr.bf16.mxu0 0
      %2608 = vmatpush1.bf16.msra.mxu0 0
      %2609 = vmatprep.subr.bf16.mxu0 0
      %2610 = vmatpush1.bf16.msra.mxu0 0
      %2611 = vmatprep.subr.bf16.mxu0 0
      %2612 = vmatpush1.bf16.msra.mxu0 0
      %2613 = vmatprep.subr.bf16.mxu0 0
      %2614 = vmatpush1.bf16.msra.mxu0 0
      %2615 = vmatprep.subr.bf16.mxu0 0
      %2616 = vmatpush1.bf16.msra.mxu0 0
      %2617 = vmatprep.subr.bf16.mxu0 0
      %2618 = vmatpush1.bf16.msra.mxu0 0
      %2619 = vmatprep.subr.bf16.mxu0 0
      %2620 = vmatpush1.bf16.msra.mxu0 0
      %2621 = vmatprep.subr.bf16.mxu0 0
      %2622 = vmatpush1.bf16.msra.mxu0 0
      %2623 = vmatprep.subr.bf16.mxu0 0
      %2624 = vmatpush1.bf16.msra.mxu0 0
      %2625 = vmatprep.mubr.bf16.mxu0 0
      %2626 = vmatmul.mubr.bf16.gmra.mrb[0].mxu0 %v2591
      %v2627 = vpop.f32.mrb[0].mxu0
      %v2628 = vadd.f32 0.0, %v2627
      %v2629 = vpop.f32.mrb[0].mxu0
      %v2630 = vpop.f32.mrb[0].mxu0
      %v2631 = vadd.f32 0.0, %v2630
      %v2632 = vpop.f32.mrb[0].mxu0
      %2633 = vdwg.mxu0
      %2634 = vrot.lane.b32.xlu0 %v2393, 112
      %v2635 = vpop.permute.xlu0 %2634
      %2636 = vrot.lane.b32.xlu0 %v2393, 80
      %v2637 = vpop.permute.xlu0 %2636
      %v2639 = vsel %vm1249, %v2635, 0
      %v2642 = vsel %vm1249, %v2637, 0
      %2644 = vmatprep.subr.bf16.mxu0 0
      %2645 = vmatpush1.bf16.xpose.msra.mxu0 %v2642
      %2646 = vmatprep.subr.bf16.mxu0 0
      %2647 = vmatpush1.bf16.xpose.msra.mxu0 0
      %2648 = vmatprep.subr.bf16.mxu0 0
      %2649 = vmatpush1.bf16.xpose.msra.mxu0 0
      %2650 = vmatprep.subr.bf16.mxu0 0
      %2651 = vmatpush1.bf16.xpose.msra.mxu0 0
      %2652 = vmatprep.subr.bf16.mxu0 0
      %2653 = vmatpush1.bf16.xpose.msra.mxu0 0
      %2654 = vmatprep.subr.bf16.mxu0 0
      %2655 = vmatpush1.bf16.xpose.msra.mxu0 0
      %2656 = vmatprep.subr.bf16.mxu0 0
      %2657 = vmatpush1.bf16.xpose.msra.mxu0 0
      %2658 = vmatprep.subr.bf16.mxu0 0
      %2659 = vmatpush1.bf16.xpose.msra.mxu0 0
      %2660 = vmatprep.subr.bf16.mxu0 0
      %2661 = vmatpush1.bf16.xpose.msra.mxu0 0
      %2662 = vmatprep.subr.bf16.mxu0 0
      %2663 = vmatpush1.bf16.xpose.msra.mxu0 0
      %2664 = vmatprep.subr.bf16.mxu0 0
      %2665 = vmatpush1.bf16.xpose.msra.mxu0 0
      %2666 = vmatprep.subr.bf16.mxu0 0
      %2667 = vmatpush1.bf16.xpose.msra.mxu0 0
      %2668 = vmatprep.subr.bf16.mxu0 0
      %2669 = vmatpush1.bf16.xpose.msra.mxu0 0
      %2670 = vmatprep.subr.bf16.mxu0 0
      %2671 = vmatpush1.bf16.xpose.msra.mxu0 0
      %2672 = vmatprep.subr.bf16.mxu0 0
      %2673 = vmatpush1.bf16.xpose.msra.mxu0 0
      %2674 = vmatprep.subr.bf16.mxu0 0
      %2675 = vmatpush1.bf16.xpose.msra.mxu0 0
      %2676 = vmatprep.mubr.bf16.mxu0 0
      %2677 = vmatmul.mubr.bf16.gmra.mrb[0].mxu0 %v2639
      %v2678 = vpop.f32.mrb[0].mxu0
      %v2679 = vadd.f32 %v1442, %v2678
      %v2680 = vpop.f32.mrb[0].mxu0
      %v2681 = vpop.f32.mrb[0].mxu0
      %v2682 = vadd.f32 %v1442, %v2681
      %v2683 = vpop.f32.mrb[0].mxu0
      %2684 = vdwg.mxu0
      %v2685 = vsel %vm1493, %v2679, -inf
      %2686 = vmax.xlane.f32.xlu0 %v2685
      %v2687 = vpop.xlane.xlu0 %2686
      %v2688 = vsel %vm1493, %v2682, -inf
      %2689 = vmax.xlane.f32.xlu0 %v2688
      %v2690 = vpop.xlane.xlu0 %2689
      %v2691 = vsub.f32 %v2679, %v2687
      %v2692 = vsub.f32 %v2682, %v2690
      %v2693 = vmul.f32 %v2691, 1.442695
      %v2694 = vpow.pop %v2693
      %v2695 = vmul.f32 %v2692, 1.442695
      %v2696 = vpow.pop %v2695
      %v2697 = vsel %vm1493, %v2694, 0.0
      %2698 = vadd.xlane.f32.xlu0 %v2697
      %v2699 = vpop.xlane.xlu0 %2698
      %v2700 = vsel %vm1493, %v2696, 0.0
      %2701 = vadd.xlane.f32.xlu0 %v2700
      %v2702 = vpop.xlane.xlu0 %2701
      %v2703 = vrcp.pop %v2699
      %v2704 = vrcp.pop %v2702
      %v2705 = vmul.f32 %v2694, %v2703
      %v2706 = vmul.f32 %v2696, %v2704
      %v2707 = vpack.c.bf16 %v2706, %v2705
      %2708 = vrot.lane.b32.xlu0 %v2394, 112
      %v2709 = vpop.permute.xlu0 %2708
      %v2712 = vsel %vm1493, %v2707, 0
      %2714 = vmatprep.subr.bf16.mxu0 0
      %2715 = vmatpush1.bf16.msra.mxu0 %v2709
      %2716 = vmatprep.subr.bf16.mxu0 0
      %2717 = vmatpush1.bf16.msra.mxu0 0
      %2718 = vmatprep.subr.bf16.mxu0 0
      %2719 = vmatpush1.bf16.msra.mxu0 0
      %2720 = vmatprep.subr.bf16.mxu0 0
      %2721 = vmatpush1.bf16.msra.mxu0 0
      %2722 = vmatprep.subr.bf16.mxu0 0
      %2723 = vmatpush1.bf16.msra.mxu0 0
      %2724 = vmatprep.subr.bf16.mxu0 0
      %2725 = vmatpush1.bf16.msra.mxu0 0
      %2726 = vmatprep.subr.bf16.mxu0 0
      %2727 = vmatpush1.bf16.msra.mxu0 0
      %2728 = vmatprep.subr.bf16.mxu0 0
      %2729 = vmatpush1.bf16.msra.mxu0 0
      %2730 = vmatprep.subr.bf16.mxu0 0
      %2731 = vmatpush1.bf16.msra.mxu0 0
      %2732 = vmatprep.subr.bf16.mxu0 0
      %2733 = vmatpush1.bf16.msra.mxu0 0
      %2734 = vmatprep.subr.bf16.mxu0 0
      %2735 = vmatpush1.bf16.msra.mxu0 0
      %2736 = vmatprep.subr.bf16.mxu0 0
      %2737 = vmatpush1.bf16.msra.mxu0 0
      %2738 = vmatprep.subr.bf16.mxu0 0
      %2739 = vmatpush1.bf16.msra.mxu0 0
      %2740 = vmatprep.subr.bf16.mxu0 0
      %2741 = vmatpush1.bf16.msra.mxu0 0
      %2742 = vmatprep.subr.bf16.mxu0 0
      %2743 = vmatpush1.bf16.msra.mxu0 0
      %2744 = vmatprep.subr.bf16.mxu0 0
      %2745 = vmatpush1.bf16.msra.mxu0 0
      %2746 = vmatprep.mubr.bf16.mxu0 0
      %2747 = vmatmul.mubr.bf16.gmra.mrb[0].mxu0 %v2712
      %v2748 = vpop.f32.mrb[0].mxu0
      %v2749 = vadd.f32 0.0, %v2748
      %v2750 = vpop.f32.mrb[0].mxu0
      %v2751 = vpop.f32.mrb[0].mxu0
      %v2752 = vadd.f32 0.0, %v2751
      %v2753 = vpop.f32.mrb[0].mxu0
      %2754 = vdwg.mxu0
      %2755 = vrot.lane.b32.xlu0 %v2393, 104
      %v2756 = vpop.permute.xlu0 %2755
      %2757 = vrot.lane.b32.xlu0 %v2393, 72
      %v2758 = vpop.permute.xlu0 %2757
      %v2760 = vsel %vm1249, %v2756, 0
      %v2763 = vsel %vm1249, %v2758, 0
      %2765 = vmatprep.subr.bf16.mxu0 0
      %2766 = vmatpush1.bf16.xpose.msra.mxu0 %v2763
      %2767 = vmatprep.subr.bf16.mxu0 0
      %2768 = vmatpush1.bf16.xpose.msra.mxu0 0
      %2769 = vmatprep.subr.bf16.mxu0 0
      %2770 = vmatpush1.bf16.xpose.msra.mxu0 0
      %2771 = vmatprep.subr.bf16.mxu0 0
      %2772 = vmatpush1.bf16.xpose.msra.mxu0 0
      %2773 = vmatprep.subr.bf16.mxu0 0
      %2774 = vmatpush1.bf16.xpose.msra.mxu0 0
      %2775 = vmatprep.subr.bf16.mxu0 0
      %2776 = vmatpush1.bf16.xpose.msra.mxu0 0
      %2777 = vmatprep.subr.bf16.mxu0 0
      %2778 = vmatpush1.bf16.xpose.msra.mxu0 0
      %2779 = vmatprep.subr.bf16.mxu0 0
      %2780 = vmatpush1.bf16.xpose.msra.mxu0 0
      %2781 = vmatprep.subr.bf16.mxu0 0
      %2782 = vmatpush1.bf16.xpose.msra.mxu0 0
      %2783 = vmatprep.subr.bf16.mxu0 0
      %2784 = vmatpush1.bf16.xpose.msra.mxu0 0
      %2785 = vmatprep.subr.bf16.mxu0 0
      %2786 = vmatpush1.bf16.xpose.msra.mxu0 0
      %2787 = vmatprep.subr.bf16.mxu0 0
      %2788 = vmatpush1.bf16.xpose.msra.mxu0 0
      %2789 = vmatprep.subr.bf16.mxu0 0
      %2790 = vmatpush1.bf16.xpose.msra.mxu0 0
      %2791 = vmatprep.subr.bf16.mxu0 0
      %2792 = vmatpush1.bf16.xpose.msra.mxu0 0
      %2793 = vmatprep.subr.bf16.mxu0 0
      %2794 = vmatpush1.bf16.xpose.msra.mxu0 0
      %2795 = vmatprep.subr.bf16.mxu0 0
      %2796 = vmatpush1.bf16.xpose.msra.mxu0 0
      %2797 = vmatprep.mubr.bf16.mxu0 0
      %2798 = vmatmul.mubr.bf16.gmra.mrb[0].mxu0 %v2760
      %v2799 = vpop.f32.mrb[0].mxu0
      %v2800 = vadd.f32 %v1442, %v2799
      %v2801 = vpop.f32.mrb[0].mxu0
      %v2802 = vpop.f32.mrb[0].mxu0
      %v2803 = vadd.f32 %v1442, %v2802
      %v2804 = vpop.f32.mrb[0].mxu0
      %2805 = vdwg.mxu0
      %v2806 = vsel %vm1493, %v2800, -inf
      %2807 = vmax.xlane.f32.xlu0 %v2806
      %v2808 = vpop.xlane.xlu0 %2807
      %v2809 = vsel %vm1493, %v2803, -inf
      %2810 = vmax.xlane.f32.xlu0 %v2809
      %v2811 = vpop.xlane.xlu0 %2810
      %v2812 = vsub.f32 %v2800, %v2808
      %v2813 = vsub.f32 %v2803, %v2811
      %v2814 = vmul.f32 %v2812, 1.442695
      %v2815 = vpow.pop %v2814
      %v2816 = vmul.f32 %v2813, 1.442695
      %v2817 = vpow.pop %v2816
      %v2818 = vsel %vm1493, %v2815, 0.0
      %2819 = vadd.xlane.f32.xlu0 %v2818
      %v2820 = vpop.xlane.xlu0 %2819
      %v2821 = vsel %vm1493, %v2817, 0.0
      %2822 = vadd.xlane.f32.xlu0 %v2821
      %v2823 = vpop.xlane.xlu0 %2822
      %v2824 = vrcp.pop %v2820
      %v2825 = vrcp.pop %v2823
      %v2826 = vmul.f32 %v2815, %v2824
      %v2827 = vmul.f32 %v2817, %v2825
      %v2828 = vpack.c.bf16 %v2827, %v2826
      %2829 = vrot.lane.b32.xlu0 %v2394, 104
      %v2830 = vpop.permute.xlu0 %2829
      %v2833 = vsel %vm1493, %v2828, 0
      %2835 = vmatprep.subr.bf16.mxu0 0
      %2836 = vmatpush1.bf16.msra.mxu0 %v2830
      %2837 = vmatprep.subr.bf16.mxu0 0
      %2838 = vmatpush1.bf16.msra.mxu0 0
      %2839 = vmatprep.subr.bf16.mxu0 0
      %2840 = vmatpush1.bf16.msra.mxu0 0
      %2841 = vmatprep.subr.bf16.mxu0 0
      %2842 = vmatpush1.bf16.msra.mxu0 0
      %2843 = vmatprep.subr.bf16.mxu0 0
      %2844 = vmatpush1.bf16.msra.mxu0 0
      %2845 = vmatprep.subr.bf16.mxu0 0
      %2846 = vmatpush1.bf16.msra.mxu0 0
      %2847 = vmatprep.subr.bf16.mxu0 0
      %2848 = vmatpush1.bf16.msra.mxu0 0
      %2849 = vmatprep.subr.bf16.mxu0 0
      %2850 = vmatpush1.bf16.msra.mxu0 0
      %2851 = vmatprep.subr.bf16.mxu0 0
      %2852 = vmatpush1.bf16.msra.mxu0 0
      %2853 = vmatprep.subr.bf16.mxu0 0
      %2854 = vmatpush1.bf16.msra.mxu0 0
      %2855 = vmatprep.subr.bf16.mxu0 0
      %2856 = vmatpush1.bf16.msra.mxu0 0
      %2857 = vmatprep.subr.bf16.mxu0 0
      %2858 = vmatpush1.bf16.msra.mxu0 0
      %2859 = vmatprep.subr.bf16.mxu0 0
      %2860 = vmatpush1.bf16.msra.mxu0 0
      %2861 = vmatprep.subr.bf16.mxu0 0
      %2862 = vmatpush1.bf16.msra.mxu0 0
      %2863 = vmatprep.subr.bf16.mxu0 0
      %2864 = vmatpush1.bf16.msra.mxu0 0
      %2865 = vmatprep.subr.bf16.mxu0 0
      %2866 = vmatpush1.bf16.msra.mxu0 0
      %2867 = vmatprep.mubr.bf16.mxu0 0
      %2868 = vmatmul.mubr.bf16.gmra.mrb[0].mxu0 %v2833
      %v2869 = vpop.f32.mrb[0].mxu0
      %v2870 = vadd.f32 0.0, %v2869
      %v2871 = vpop.f32.mrb[0].mxu0
      %v2872 = vpop.f32.mrb[0].mxu0
      %v2873 = vadd.f32 0.0, %v2872
      %v2874 = vpop.f32.mrb[0].mxu0
      %2875 = vdwg.mxu0
      %2878 = vrot.lane.b32.xlu0 %v2628, 8
      %v2879 = vpop.permute.xlu0 %2878
      %2880 = vrot.lane.b32.xlu0 %v2631, 8
      %v2881 = vpop.permute.xlu0 %2880
      %2886 = vrot.lane.b32.xlu0 %v2749, 16
      %v2887 = vpop.permute.xlu0 %2886
      %2888 = vrot.lane.b32.xlu0 %v2752, 16
      %v2889 = vpop.permute.xlu0 %2888
      %2894 = vrot.lane.b32.xlu0 %v2870, 24
      %v2895 = vpop.permute.xlu0 %2894
      %2896 = vrot.lane.b32.xlu0 %v2873, 24
      %v2897 = vpop.permute.xlu0 %2896
      %v2900 = vsel %vm1249, %v2506, %v2879
      %v2901 = vsel %vm1249, %v2509, %v2881
      %v2902 = vsel %vm1493, %v2900, %v2887
      %v2903 = vsel %vm1493, %v2901, %v2889
      %v2904 = vsel %vm1953, %v2902, %v2895
      %v2905 = vsel %vm1953, %v2903, %v2897
      %v2906 = vpack.c.bf16 %v2905, %v2904
      %v2907 = vld [vmem:[%s49] sm:$0xf]
      %v2908 = vld [vmem:[%s49 + $0x4] sm:$0xf]
      %v2909 = vld [vmem:[%s49 + $0x8] sm:$0xf]
      %v2910 = vld [vmem:[%s49 + $0xc] sm:$0xf]
      %v2911 = vld [vmem:[%s51] sm:$0x1]
      %v2913 = vlaneseq
      %v2914 = vshrl.u32 %v2913, 7
      %v2915 = vsub.s32 0, %v2914
      %v2916 = vrot.slane %v2911, %v2915
      %v2922 = vunpack.c.l.b16 %v2907
      %v2923 = vunpack.c.l.b16 %v2908
      %v2924 = vunpack.c.l.b16 %v2909
      %v2925 = vunpack.c.l.b16 %v2910
      %v2926 = vpack.c.b16 %v2923, %v2922
      %v2927 = vpack.c.b16 %v2925, %v2924
      %v2931 = vsel %vm1324, %v2906, 0
      %2933 = vmatprep.subr.bf16.mxu0 0
      %2934 = vmatpush1.bf16.msra.mxu0 %v2926
      %2935 = vmatprep.subr.bf16.mxu0 0
      %2936 = vmatpush1.bf16.msra.mxu0 %v2927
      %2937 = vmatprep.subr.bf16.mxu0 0
      %2938 = vmatpush1.bf16.msra.mxu0 0
      %2939 = vmatprep.subr.bf16.mxu0 0
      %2940 = vmatpush1.bf16.msra.mxu0 0
      %2941 = vmatprep.subr.bf16.mxu0 0
      %2942 = vmatpush1.bf16.msra.mxu0 0
      %2943 = vmatprep.subr.bf16.mxu0 0
      %2944 = vmatpush1.bf16.msra.mxu0 0
      %2945 = vmatprep.subr.bf16.mxu0 0
      %2946 = vmatpush1.bf16.msra.mxu0 0
      %2947 = vmatprep.subr.bf16.mxu0 0
      %2948 = vmatpush1.bf16.msra.mxu0 0
      %2949 = vmatprep.subr.bf16.mxu0 0
      %2950 = vmatpush1.bf16.msra.mxu0 0
      %2951 = vmatprep.subr.bf16.mxu0 0
      %2952 = vmatpush1.bf16.msra.mxu0 0
      %2953 = vmatprep.subr.bf16.mxu0 0
      %2954 = vmatpush1.bf16.msra.mxu0 0
      %2955 = vmatprep.subr.bf16.mxu0 0
      %2956 = vmatpush1.bf16.msra.mxu0 0
      %2957 = vmatprep.subr.bf16.mxu0 0
      %2958 = vmatpush1.bf16.msra.mxu0 0
      %2959 = vmatprep.subr.bf16.mxu0 0
      %2960 = vmatpush1.bf16.msra.mxu0 0
      %2961 = vmatprep.subr.bf16.mxu0 0
      %2962 = vmatpush1.bf16.msra.mxu0 0
      %2963 = vmatprep.subr.bf16.mxu0 0
      %2964 = vmatpush1.bf16.msra.mxu0 0
      %2965 = vmatprep.mubr.bf16.mxu0 0
      %2966 = vmatmul.mubr.bf16.gmra.mrb[0].mxu0 %v2931
      %v2967 = vpop.f32.mrb[0].mxu0
      %v2968 = vadd.f32 %v2916, %v2967
      %v2969 = vpop.f32.mrb[0].mxu0
      %v2970 = vpop.f32.mrb[0].mxu0
      %v2971 = vadd.f32 %v2916, %v2970
      %v2972 = vpop.f32.mrb[0].mxu0
      %2973 = vdwg.mxu0
      %v2974 = vadd.f32 %v2968, %v2253
      %v2975 = vadd.f32 %v2971, %v2254
      %v2976 = vsel %vm1324, %v2974, 0.0
      %2977 = vadd.xlane.f32.xlu0 %v2976
      %v2978 = vpop.xlane.xlu0 %2977
      %v2979 = vsel %vm1324, %v2975, 0.0
      %2980 = vadd.xlane.f32.xlu0 %v2979
      %v2981 = vpop.xlane.xlu0 %2980
      %v2982 = vmul.f32 %v2978, %v2032
      %v2983 = vmul.f32 %v2981, %v2032
      %v2984 = vsub.f32 %v2974, %v2982
      %v2985 = vsub.f32 %v2975, %v2983
      %v2986 = vmul.f32 %v2984, %v2984
      %v2987 = vmul.f32 %v2985, %v2985
      %v2988 = vsel %vm1324, %v2986, 0.0
      %2989 = vadd.xlane.f32.xlu0 %v2988
      %v2990 = vpop.xlane.xlu0 %2989
      %v2991 = vsel %vm1324, %v2987, 0.0
      %2992 = vadd.xlane.f32.xlu0 %v2991
      %v2993 = vpop.xlane.xlu0 %2992
      %v2994 = vmul.f32 %v2990, %v2032
      %v2995 = vmul.f32 %v2993, %v2032
      %v2996 = vadd.f32 %v2994, 1e-05
      %v2997 = vadd.f32 %v2995, 1e-05
      %v2998 = vrsqrt.pop %v2996
      %v2999 = vrsqrt.pop %v2997
      %v3000 = vmul.f32 %v2984, %v2998
      %v3001 = vmul.f32 %v2985, %v2999
      %v3002 = vld [vmem:[%s53] sm:$0x1]
      %v3004 = vlaneseq
      %v3005 = vshrl.u32 %v3004, 7
      %v3006 = vsub.s32 0, %v3005
      %v3007 = vrot.slane %v3002, %v3006
      %v3009 = vmul.f32 %v3000, %v3007
      %v3010 = vmul.f32 %v3001, %v3007
      %v3011 = vld [vmem:[%s55] sm:$0x1]
      %v3013 = vlaneseq
      %v3014 = vshrl.u32 %v3013, 7
      %v3015 = vsub.s32 0, %v3014
      %v3016 = vrot.slane %v3011, %v3015
      %v3018 = vadd.f32 %v3009, %v3016
      %v3019 = vadd.f32 %v3010, %v3016
      %v3020 = vpack.c.bf16 %v3019, %v3018
      %v3021 = vld [vmem:[%s57] sm:$0xf]
      %v3022 = vld [vmem:[%s57 + $0x4] sm:$0xf]
      %v3023 = vld [vmem:[%s57 + $0x8] sm:$0xf]
      %v3024 = vld [vmem:[%s57 + $0xc] sm:$0xf]
      %v3025 = vld [vmem:[%s59] sm:$0x1]
      %v3027 = vlaneseq
      %v3028 = vshrl.u32 %v3027, 7
      %v3029 = vsub.s32 0, %v3028
      %v3030 = vrot.slane %v3025, %v3029
      %v3036 = vunpack.c.l.b16 %v3021
      %v3037 = vunpack.c.l.b16 %v3022
      %v3038 = vunpack.c.l.b16 %v3023
      %v3039 = vunpack.c.l.b16 %v3024
      %v3040 = vpack.c.b16 %v3037, %v3036
      %v3041 = vpack.c.b16 %v3039, %v3038
      %v3045 = vsel %vm1324, %v3020, 0
      %3047 = vmatprep.subr.bf16.mxu0 0
      %3048 = vmatpush1.bf16.msra.mxu0 %v3040
      %3049 = vmatprep.subr.bf16.mxu0 0
      %3050 = vmatpush1.bf16.msra.mxu0 %v3041
      %3051 = vmatprep.subr.bf16.mxu0 0
      %3052 = vmatpush1.bf16.msra.mxu0 0
      %3053 = vmatprep.subr.bf16.mxu0 0
      %3054 = vmatpush1.bf16.msra.mxu0 0
      %3055 = vmatprep.subr.bf16.mxu0 0
      %3056 = vmatpush1.bf16.msra.mxu0 0
      %3057 = vmatprep.subr.bf16.mxu0 0
      %3058 = vmatpush1.bf16.msra.mxu0 0
      %3059 = vmatprep.subr.bf16.mxu0 0
      %3060 = vmatpush1.bf16.msra.mxu0 0
      %3061 = vmatprep.subr.bf16.mxu0 0
      %3062 = vmatpush1.bf16.msra.mxu0 0
      %3063 = vmatprep.subr.bf16.mxu0 0
      %3064 = vmatpush1.bf16.msra.mxu0 0
      %3065 = vmatprep.subr.bf16.mxu0 0
      %3066 = vmatpush1.bf16.msra.mxu0 0
      %3067 = vmatprep.subr.bf16.mxu0 0
      %3068 = vmatpush1.bf16.msra.mxu0 0
      %3069 = vmatprep.subr.bf16.mxu0 0
      %3070 = vmatpush1.bf16.msra.mxu0 0
      %3071 = vmatprep.subr.bf16.mxu0 0
      %3072 = vmatpush1.bf16.msra.mxu0 0
      %3073 = vmatprep.subr.bf16.mxu0 0
      %3074 = vmatpush1.bf16.msra.mxu0 0
      %3075 = vmatprep.subr.bf16.mxu0 0
      %3076 = vmatpush1.bf16.msra.mxu0 0
      %3077 = vmatprep.subr.bf16.mxu0 0
      %3078 = vmatpush1.bf16.msra.mxu0 0
      %3079 = vmatprep.mubr.bf16.mxu0 0
      %3080 = vmatmul.mubr.bf16.gmra.mrb[0].mxu0 %v3045
      %v3081 = vpop.f32.mrb[0].mxu0
      %v3082 = vadd.f32 %v3030, %v3081
      %v3083 = vpop.f32.mrb[0].mxu0
      %v3084 = vpop.f32.mrb[0].mxu0
      %v3085 = vadd.f32 %v3030, %v3084
      %v3086 = vpop.f32.mrb[0].mxu0
      %3087 = vdwg.mxu0
      %v3088 = vmax.f32 %v3082, 0.0
      %v3089 = vmax.f32 %v3085, 0.0
      %v3090 = vpack.c.bf16 %v3089, %v3088
      %v3091 = vld [vmem:[%s61] sm:$0xf]
      %v3092 = vld [vmem:[%s61 + $0x4] sm:$0xf]
      %v3093 = vld [vmem:[%s61 + $0x8] sm:$0xf]
      %v3094 = vld [vmem:[%s61 + $0xc] sm:$0xf]
      %v3095 = vld [vmem:[%s63] sm:$0x1]
      %v3097 = vlaneseq
      %v3098 = vshrl.u32 %v3097, 7
      %v3099 = vsub.s32 0, %v3098
      %v3100 = vrot.slane %v3095, %v3099
      %v3106 = vunpack.c.l.b16 %v3091
      %v3107 = vunpack.c.l.b16 %v3092
      %v3108 = vunpack.c.l.b16 %v3093
      %v3109 = vunpack.c.l.b16 %v3094
      %v3110 = vpack.c.b16 %v3107, %v3106
      %v3111 = vpack.c.b16 %v3109, %v3108
      %v3115 = vsel %vm1324, %v3090, 0
      %3117 = vmatprep.subr.bf16.mxu0 0
      %3118 = vmatpush1.bf16.msra.mxu0 %v3110
      %3119 = vmatprep.subr.bf16.mxu0 0
      %3120 = vmatpush1.bf16.msra.mxu0 %v3111
      %3121 = vmatprep.subr.bf16.mxu0 0
      %3122 = vmatpush1.bf16.msra.mxu0 0
      %3123 = vmatprep.subr.bf16.mxu0 0
      %3124 = vmatpush1.bf16.msra.mxu0 0
      %3125 = vmatprep.subr.bf16.mxu0 0
      %3126 = vmatpush1.bf16.msra.mxu0 0
      %3127 = vmatprep.subr.bf16.mxu0 0
      %3128 = vmatpush1.bf16.msra.mxu0 0
      %3129 = vmatprep.subr.bf16.mxu0 0
      %3130 = vmatpush1.bf16.msra.mxu0 0
      %3131 = vmatprep.subr.bf16.mxu0 0
      %3132 = vmatpush1.bf16.msra.mxu0 0
      %3133 = vmatprep.subr.bf16.mxu0 0
      %3134 = vmatpush1.bf16.msra.mxu0 0
      %3135 = vmatprep.subr.bf16.mxu0 0
      %3136 = vmatpush1.bf16.msra.mxu0 0
      %3137 = vmatprep.subr.bf16.mxu0 0
      %3138 = vmatpush1.bf16.msra.mxu0 0
      %3139 = vmatprep.subr.bf16.mxu0 0
      %3140 = vmatpush1.bf16.msra.mxu0 0
      %3141 = vmatprep.subr.bf16.mxu0 0
      %3142 = vmatpush1.bf16.msra.mxu0 0
      %3143 = vmatprep.subr.bf16.mxu0 0
      %3144 = vmatpush1.bf16.msra.mxu0 0
      %3145 = vmatprep.subr.bf16.mxu0 0
      %3146 = vmatpush1.bf16.msra.mxu0 0
      %3147 = vmatprep.subr.bf16.mxu0 0
      %3148 = vmatpush1.bf16.msra.mxu0 0
      %3149 = vmatprep.mubr.bf16.mxu0 0
      %3150 = vmatmul.mubr.bf16.gmra.mrb[0].mxu0 %v3115
      %v3151 = vpop.f32.mrb[0].mxu0
      %v3152 = vadd.f32 %v3100, %v3151
      %v3153 = vpop.f32.mrb[0].mxu0
      %v3154 = vpop.f32.mrb[0].mxu0
      %v3155 = vpop.f32.mrb[0].mxu0
      %3156 = vdwg.mxu0
      %v3157 = vadd.f32 %v3152, %v3018
      %v3158 = vsel %vm1324, %v3157, 0.0
      %3159 = vadd.xlane.f32.xlu0 %v3158
      %v3160 = vpop.xlane.xlu0 %3159
      %v3161 = vmul.f32 %v3160, %v2032
      %v3162 = vsub.f32 %v3157, %v3161
      %v3163 = vmul.f32 %v3162, %v3162
      %v3164 = vsel %vm1324, %v3163, 0.0
      %3165 = vadd.xlane.f32.xlu0 %v3164
      %v3166 = vpop.xlane.xlu0 %3165
      %v3167 = vmul.f32 %v3166, %v2032
      %v3168 = vadd.f32 %v3167, 1e-05
      %v3169 = vrsqrt.pop %v3168
      %v3170 = vmul.f32 %v3162, %v3169
      %v3171 = vld [vmem:[%s65] sm:$0x1]
      %v3173 = vlaneseq
      %v3174 = vshrl.u32 %v3173, 7
      %v3175 = vsub.s32 0, %v3174
      %v3176 = vrot.slane %v3171, %v3175
      %v3178 = vmul.f32 %v3170, %v3176
      %v3179 = vld [vmem:[%s67] sm:$0x1]
      %v3181 = vlaneseq
      %v3182 = vshrl.u32 %v3181, 7
      %v3183 = vsub.s32 0, %v3182
      %v3184 = vrot.slane %v3179, %v3183
      %v3186 = vadd.f32 %v3178, %v3184
      %v3187 = vlaneseq
      %v3188 = vshrl.u32 %v3187, 7
      %v3189 = vsub.s32 0, %v3188
      %v3190 = vrot.slane %v3186, %v3189
      %3191 = vst.msk [vmem:[%s1225] sm:$0xff] %vm1324, %v3190
      %v3192 = vld [vmem:[%s69] sm:$0x1]
      %v3193 = vmul.f32 %v3186, %v3192
      %vm3194 = vcmask 253952
      %v3195 = vsel %vm3194, %v3193, 0.0
      %3196 = vadd.xlane.f32.xlu0 %v3195
      %v3197 = vpop.xlane.xlu0 %3196
      %v3198 = vld [vmem:[#allocation2] sm:$0x1]
      %v3199 = vadd.f32 %v3197, %v3198
      %v3200 = vand.u32 2147483647, %v3199
      %v3201 = vsub.f32 0.0, %v3200
      %v3202 = vmul.f32 %v3201, 1.442695
      %v3203 = vpow.pop %v3202
      %v3204 = vadd.f32 %v3203, 1.0
      %v3205 = vlog2.pop %v3204
      %v3206 = vmul.f32 %v3205, 0.6931472
      %v3207 = vmax.f32 %v3199, 0.0
      %v3208 = vadd.f32 %v3207, %v3206
      %v3209 = vsub.f32 0.0, %v3199
      %v3210 = vmax.f32 %v3209, 0.0
      %v3211 = vadd.f32 %v3210, %v3206
      %v3212 = vsub.f32 0.0, %v3211
      %v3213 = vmul.f32 %v3212, 1.442695
      %v3214 = vpow.pop %v3213
      %v3215 = vld [vmem:[%s1221] sm:$0xff]
      %v3216 = vmul.f32 %v3215, %v3211
      %v3217 = vsub.f32 1.0, %v3215
      %v3218 = vmul.f32 %v3217, %v3208
      %v3219 = vadd.f32 %v3216, %v3218
      %v3220 = vlaneseq
      %v3221 = vshrl.u32 %v3220, 7
      %v3222 = vsub.s32 0, %v3221
      %v3223 = vrot.slane %v3214, %v3222
      %vm3224 = vcmask 7168
      %3225 = vst.msk [vmem:[%s1229] sm:$0xff] %vm3224, %v3223
      %v3226 = vlaneseq
      %v3227 = vshrl.u32 %v3226, 7
      %v3228 = vsub.s32 0, %v3227
      %v3229 = vrot.slane %v3219, %v3228
      %3230 = vst.msk [vmem:[%s1233] sm:$0xff] %vm3224, %v3229
      %p3231 = scmp.lt.s32.totalorder %s91, 1
      %s3232 = scalar_select %p3231, %s91, 1
      %s3233 = smul.addr %s3232, 8
      %s3234 = scalar_lea.vmem %s73, %s3233
      %p3235 = scmp.lt.s32.totalorder %s91, 1
      %s3236 = scalar_select %p3235, %s91, 1
      %s3237 = smul.addr %s3236, 8
      %s3238 = scalar_lea.vmem %s75, %s3237
      %p3239 = scmp.lt.s32.totalorder %s91, 1
      %s3240 = scalar_select %p3239, %s91, 1
      %s3241 = smul.addr %s3240, 8
      %s3242 = scalar_lea.vmem %s77, %s3241
      // Predicated region
      $region165: #{predict_forward.1} parent=163 // pred_check
        %p3243 = pneg %p885
      $region166: #{predict_forward.1} parent=163 // pred_check_branch
        %3245 = sbr.rel (%p3243) target = $region168
      $region167: #{predict_forward.1} parent=163 // pred_region
        _
      $region168: #{predict_forward.1} parent=163 // pred_fallthru
        _
      // Predicated region
      $region169: #{predict_forward.1} parent=163 // pred_check
        %p3246 = pneg %p911
      $region170: #{predict_forward.1} parent=163 // pred_check_branch
        %3248 = sbr.rel (%p3246) target = $region172
      $region171: #{predict_forward.1} parent=163 // pred_region
        _
      $region172: #{predict_forward.1} parent=163 // pred_fallthru
        _
      // Predicated region
      $region173: #{predict_forward.1} parent=163 // pred_check
        %p3249 = pneg %p937
      $region174: #{predict_forward.1} parent=163 // pred_check_branch
        %3251 = sbr.rel (%p3249) target = $region176
      $region175: #{predict_forward.1} parent=163 // pred_region
        _
      $region176: #{predict_forward.1} parent=163 // pred_fallthru
        _
    $region164: #{predict_forward.1} parent=5 // pred_fallthru
      _
    %p3252 = scmp.le.s32.totalorder 2, %s86
    // Predicated region
    $region177: #{predict_forward.1} parent=5 // pred_check
      %p3253 = pneg %p3252
    $region178: #{predict_forward.1} parent=5 // pred_check_branch
      %3255 = sbr.rel (%p3253) target = $region180
    $region179: #{predict_forward.1} parent=5 // pred_region
      %s3256 = ssub.s32 %s86, 2
      // Predicated region
      $region181: #{predict_forward.1} parent=179 // pred_check
        %p3257 = pneg %p891
      $region182: #{predict_forward.1} parent=179 // pred_check_branch
        %3259 = sbr.rel (%p3257) target = $region184
      $region183: #{predict_forward.1} parent=179 // pred_region
        %p3260 = scmp.lt.s32.totalorder %s92, 1
        %s3261 = scalar_select %p3260, %s92, 1
        %s3262 = smul.addr %s3261, 8
        %s3263 = scalar_lea.vmem %s73, %s3262
      $region184: #{predict_forward.1} parent=179 // pred_fallthru
        _
      // Predicated region
      $region185: #{predict_forward.1} parent=179 // pred_check
        %p3264 = pneg %p917
      $region186: #{predict_forward.1} parent=179 // pred_check_branch
        %3266 = sbr.rel (%p3264) target = $region188
      $region187: #{predict_forward.1} parent=179 // pred_region
        %p3267 = scmp.lt.s32.totalorder %s92, 1
        %s3268 = scalar_select %p3267, %s92, 1
        %s3269 = smul.addr %s3268, 8
        %s3270 = scalar_lea.vmem %s75, %s3269
      $region188: #{predict_forward.1} parent=179 // pred_fallthru
        _
      // Predicated region
      $region189: #{predict_forward.1} parent=179 // pred_check
        %p3271 = pneg %p943
      $region190: #{predict_forward.1} parent=179 // pred_check_branch
        %3273 = sbr.rel (%p3271) target = $region192
      $region191: #{predict_forward.1} parent=179 // pred_region
        %p3274 = scmp.lt.s32.totalorder %s92, 1
        %s3275 = scalar_select %p3274, %s92, 1
        %s3276 = smul.addr %s3275, 8
        %s3277 = scalar_lea.vmem %s77, %s3276
      $region192: #{predict_forward.1} parent=179 // pred_fallthru
        _
    $region180: #{predict_forward.1} parent=5 // pred_fallthru
      _
  $region6: #{predict_forward.1} parent=0 // loop_footer
    %s90 = sadd.s32 1, %s86
  $region7: #{predict_forward.1} parent=0 // loop_footer_branch
    %85 = sbr.rel target = $region3
  $region8: #{predict_forward.1} parent=0 // loop_exit
    _

</llo_original>
